<compile_context>
chip_gen: v7x
topology: tpu7x:2x2x1
jax: 0.10.0
libtpu: 0.0.40
codegen_flags: <defaults>
</compile_context>

<pallas_src>
import jax
import jax.numpy as jnp
from jax.experimental import pallas as pl
from jax.experimental.pallas import tpu as pltpu

# ----------------------- model hyper-params (small) -----------------------
N, C, H, W = 2, 4, 16, 16        # batch, in-channels, spatial
OC = 8                           # conv out-channels
K = 3                            # conv kernel size (stride 1, padding 1)
PAD = 1
NUM_CLASSES = 10

# Vreg-friendly padded sizes (everything full-vreg inside the kernel).
OC_PAD = 128                     # conv channels on lanes
CLS_PAD = 128                    # classes on lanes
N_PAD = 8                        # batch on sublanes -> output is one (8,128) vreg
HP, WP = H + 2 * PAD, W + 2 * PAD
R = N * H * W                    # rows of the conv GEMM


# ------------------------------ Pallas kernel ------------------------------
def fused_model_kernel(xp_ref, wc_ref, bc_ref, pool_ref, wf_ref, bf_ref, o_ref):
    """Conv(3x3, pad=1) + bias + ReLU + global-avg-pool + Linear, fully fused.

    xp_ref  : [N, H+2, W+2, C]   spatially zero-padded NHWC input
    wc_ref  : [K*K, C, OC_PAD]   per-tap conv weights (lane-padded, zeros past OC)
    bc_ref  : [1, OC_PAD]        conv bias (lane-padded)
    pool_ref: [N_PAD, N*H*W]     block-diagonal averaging matrix, 1/(H*W) folded in
    wf_ref  : [OC_PAD, CLS_PAD]  FC weight (zero-padded)
    bf_ref  : [1, CLS_PAD]       FC bias (zero-padded)
    o_ref   : [N_PAD, CLS_PAD]   lane-dense logits (real data in [:N, :NUM_CLASSES])
    """
    xp = xp_ref[...]                                        # one ~10 KiB VMEM load

    # Conv as 9 shifted-window GEMMs accumulated in f32 -- im2col never materialized.
    # Static Python loop (9 taps) is fully unrolled at trace time.
    acc = jnp.zeros((R, OC_PAD), dtype=jnp.float32)
    for kh in range(K):
        for kw in range(K):
            win = xp[:, kh:kh + H, kw:kw + W, :]            # [N, H, W, C] static slice
            win2d = win.reshape(R, C)                       # collapse major dims; lane dim kept
            acc = acc + jnp.dot(win2d, wc_ref[kh * K + kw],
                                preferred_element_type=jnp.float32)

    # Bias + ReLU on full 128-lane vregs (padded lanes stay exactly zero).
    h = jnp.maximum(acc + bc_ref[...], 0.0)                 # [R, OC_PAD]

    # Global average pool as an MXU matmul (1/(H*W) already folded into pool_ref).
    pooled = jnp.dot(pool_ref[...], h,
                     preferred_element_type=jnp.float32)    # [N_PAD, OC_PAD]

    # Classifier.
    logits = jnp.dot(pooled, wf_ref[...],
                     preferred_element_type=jnp.float32) + bf_ref[...]   # [N_PAD, CLS_PAD]
    o_ref[...] = logits.astype(o_ref.dtype)                 # single unmasked full-vreg store


# ------------------------------- JAX wrapper --------------------------------
_FLOPS = (2 * R * C * OC_PAD * K * K          # 9 conv GEMMs
          + 2 * N_PAD * R * OC_PAD            # pooling matmul
          + 2 * N_PAD * OC_PAD * CLS_PAD)     # FC matmul
_BYTES = 4 * (N * HP * WP * C + K * K * C * OC_PAD + OC_PAD
              + N_PAD * R + OC_PAD * CLS_PAD + CLS_PAD + N_PAD * CLS_PAD)


def _prepare(x, w_conv, b_conv, w_fc, b_fc):
    """Layout-only glue (no 9x im2col expansion): padded NHWC input + packed weights."""
    # Activation: NCHW -> NHWC, zero-pad spatial halo (single cheap op chain, ~10 KiB).
    xp = jnp.pad(jnp.transpose(x, (0, 2, 3, 1)),
                 ((0, 0), (PAD, PAD), (PAD, PAD), (0, 0)))              # [N, H+2, W+2, C]
    # Conv weight [OC, C, K, K] -> per-tap [C, OC] slabs, lane-padded to OC_PAD.
    wc = jnp.transpose(w_conv, (2, 3, 1, 0)).reshape(K * K, C, OC)      # [9, C, OC]
    wc = jnp.pad(wc, ((0, 0), (0, 0), (0, OC_PAD - OC)))                # [9, C, 128]
    bc = jnp.pad(b_conv, (0, OC_PAD - OC)).reshape(1, OC_PAD)
    # Block-diagonal pooling matrix with the mean scale folded in (trace-time iotas).
    rows = jax.lax.broadcasted_iota(jnp.int32, (N_PAD, R), 0)
    cols = jax.lax.broadcasted_iota(jnp.int32, (N_PAD, R), 1)
    pool = jnp.where(cols // (H * W) == rows, 1.0 / (H * W), 0.0).astype(jnp.float32)
    # FC weight / bias zero-padded to full 128 lanes.
    wf = jnp.pad(w_fc, ((0, OC_PAD - OC), (0, CLS_PAD - NUM_CLASSES)))
    bf = jnp.pad(b_fc, (0, CLS_PAD - NUM_CLASSES)).reshape(1, CLS_PAD)
    return xp, wc, bc, pool, wf, bf


@jax.jit
def forward(x, w_conv, b_conv, w_fc, b_fc):
    xp, wc, bc, pool, wf, bf = _prepare(x, w_conv, b_conv, w_fc, b_fc)
    vmem = pl.BlockSpec(memory_space=pltpu.MemorySpace.VMEM)
    out = pl.pallas_call(
        fused_model_kernel,
        out_shape=jax.ShapeDtypeStruct((N_PAD, CLS_PAD), jnp.float32),
        in_specs=[vmem] * 6,
        out_specs=vmem,
        cost_estimate=pl.CostEstimate(flops=_FLOPS, transcendentals=0,
                                      bytes_accessed=_BYTES),
    )(xp, wc, bc, pool, wf, bf)
    # Slice the lane/sublane padding back off (tiny wrapper op, as advised).
    return out[:N, :NUM_CLASSES]


def reference_forward(x, w_conv, b_conv, w_fc, b_fc):
    """Independent pure-JAX reference of the same model, for a silent check."""
    hi = jax.lax.Precision.HIGHEST
    h = jax.lax.conv_general_dilated(
        x, w_conv, window_strides=(1, 1), padding="SAME",
        dimension_numbers=("NCHW", "OIHW", "NCHW"), precision=hi)
    h = jnp.maximum(h + b_conv[None, :, None, None], 0.0)
    pooled = jnp.mean(h, axis=(2, 3))                                   # [N, OC]
    return jnp.dot(pooled, w_fc, precision=hi) + b_fc[None, :]


# --------------------------------- main -------------------------------------
if __name__ == "__main__":
    key = jax.random.PRNGKey(0)
    k_x, k_wc, k_bc, k_wf, k_bf = jax.random.split(key, 5)

    # Deterministic synthetic parameters (shapes follow the module's layers).
    x = jax.random.normal(k_x, (N, C, H, W), dtype=jnp.float32)           # NCHW
    w_conv = jax.random.normal(k_wc, (OC, C, K, K), dtype=jnp.float32) * 0.1
    b_conv = jax.random.normal(k_bc, (OC,), dtype=jnp.float32) * 0.1
    w_fc = jax.random.normal(k_wf, (OC, NUM_CLASSES), dtype=jnp.float32) * 0.1
    b_fc = jax.random.normal(k_bf, (NUM_CLASSES,), dtype=jnp.float32) * 0.1

    out = forward(x, w_conv, b_conv, w_fc, b_fc)
    out = jax.block_until_ready(out)

    # Silent sanity check against the pure-JAX reference.
    ref = reference_forward(x, w_conv, b_conv, w_fc, b_fc)
    assert out.shape == (N, NUM_CLASSES)
    assert jnp.allclose(out, ref, atol=1e-3, rtol=1e-3)

    # TODO(synk): ModelWrapper's optimizer / lr-scheduler plumbing (training-time
    # only) and the sigprop (x, y_onehot) branch have no forward-pass equivalent
    # here and are intentionally omitted.
    print("KERNEL_OK")
</pallas_src>

<mosaic_0001>
module attributes {stable_mosaic.version = 11 : i64} {
  func.func @fused_model_kernel(%arg0: memref<2x18x18x4xf32, #tpu.memory_space<vmem>>, %arg1: memref<9x4x128xf32, #tpu.memory_space<vmem>>, %arg2: memref<1x128xf32, #tpu.memory_space<vmem>>, %arg3: memref<8x512xf32, #tpu.memory_space<vmem>>, %arg4: memref<128x128xf32, #tpu.memory_space<vmem>>, %arg5: memref<1x128xf32, #tpu.memory_space<vmem>>, %arg6: memref<8x128xf32, #tpu.memory_space<vmem>>) attributes {dimension_semantics = [], scalar_prefetch = 0 : i64, scratch_operands = 0 : i64, tpu.core_type = #tpu.core_type<tc>} {
    %c0 = arith.constant 0 : index
    %c0_0 = arith.constant 0 : index
    %c0_1 = arith.constant 0 : index
    %c0_2 = arith.constant 0 : index
    %0 = vector.load %arg0[%c0, %c0_0, %c0_1, %c0_2] : memref<2x18x18x4xf32, #tpu.memory_space<vmem>>, vector<2x18x18x4xf32>
    %cst = arith.constant 0.000000e+00 : f32
    %1 = vector.broadcast %cst : f32 to vector<512x128xf32>
    %2 = vector.extract_strided_slice %0 {offsets = [0, 0, 0, 0], sizes = [2, 16, 16, 4], strides = [1, 1, 1, 1]} : vector<2x18x18x4xf32> to vector<2x16x16x4xf32>
    %3 = vector.shape_cast %2 : vector<2x16x16x4xf32> to vector<512x4xf32>
    %c0_3 = arith.constant 0 : index
    %c0_4 = arith.constant 0 : index
    %c0_5 = arith.constant 0 : index
    %4 = vector.load %arg1[%c0_3, %c0_4, %c0_5] : memref<9x4x128xf32, #tpu.memory_space<vmem>>, vector<1x4x128xf32>
    %5 = vector.shape_cast %4 : vector<1x4x128xf32> to vector<4x128xf32>
    %cst_6 = arith.constant dense<0.000000e+00> : vector<512x128xf32>
    %6 = tpu.matmul %3, %5, %cst_6 {dimension_numbers = #tpu.dot_dimension_numbers<[1], [0], [0], [1], [0, 0, 1, 1], [], []>} : vector<512x4xf32>, vector<4x128xf32>, vector<512x128xf32> -> vector<512x128xf32>
    %7 = arith.addf %1, %6 : vector<512x128xf32>
    %8 = vector.extract_strided_slice %0 {offsets = [0, 0, 1, 0], sizes = [2, 16, 16, 4], strides = [1, 1, 1, 1]} : vector<2x18x18x4xf32> to vector<2x16x16x4xf32>
    %9 = vector.shape_cast %8 : vector<2x16x16x4xf32> to vector<512x4xf32>
    %c1 = arith.constant 1 : index
    %c0_7 = arith.constant 0 : index
    %c0_8 = arith.constant 0 : index
    %10 = vector.load %arg1[%c1, %c0_7, %c0_8] : memref<9x4x128xf32, #tpu.memory_space<vmem>>, vector<1x4x128xf32>
    %11 = vector.shape_cast %10 : vector<1x4x128xf32> to vector<4x128xf32>
    %cst_9 = arith.constant dense<0.000000e+00> : vector<512x128xf32>
    %12 = tpu.matmul %9, %11, %cst_9 {dimension_numbers = #tpu.dot_dimension_numbers<[1], [0], [0], [1], [0, 0, 1, 1], [], []>} : vector<512x4xf32>, vector<4x128xf32>, vector<512x128xf32> -> vector<512x128xf32>
    %13 = arith.addf %7, %12 : vector<512x128xf32>
    %14 = vector.extract_strided_slice %0 {offsets = [0, 0, 2, 0], sizes = [2, 16, 16, 4], strides = [1, 1, 1, 1]} : vector<2x18x18x4xf32> to vector<2x16x16x4xf32>
    %15 = vector.shape_cast %14 : vector<2x16x16x4xf32> to vector<512x4xf32>
    %c2 = arith.constant 2 : index
    %c0_10 = arith.constant 0 : index
    %c0_11 = arith.constant 0 : index
    %16 = vector.load %arg1[%c2, %c0_10, %c0_11] : memref<9x4x128xf32, #tpu.memory_space<vmem>>, vector<1x4x128xf32>
    %17 = vector.shape_cast %16 : vector<1x4x128xf32> to vector<4x128xf32>
    %cst_12 = arith.constant dense<0.000000e+00> : vector<512x128xf32>
    %18 = tpu.matmul %15, %17, %cst_12 {dimension_numbers = #tpu.dot_dimension_numbers<[1], [0], [0], [1], [0, 0, 1, 1], [], []>} : vector<512x4xf32>, vector<4x128xf32>, vector<512x128xf32> -> vector<512x128xf32>
    %19 = arith.addf %13, %18 : vector<512x128xf32>
    %20 = vector.extract_strided_slice %0 {offsets = [0, 1, 0, 0], sizes = [2, 16, 16, 4], strides = [1, 1, 1, 1]} : vector<2x18x18x4xf32> to vector<2x16x16x4xf32>
    %21 = vector.shape_cast %20 : vector<2x16x16x4xf32> to vector<512x4xf32>
    %c3 = arith.constant 3 : index
    %c0_13 = arith.constant 0 : index
    %c0_14 = arith.constant 0 : index
    %22 = vector.load %arg1[%c3, %c0_13, %c0_14] : memref<9x4x128xf32, #tpu.memory_space<vmem>>, vector<1x4x128xf32>
    %23 = vector.shape_cast %22 : vector<1x4x128xf32> to vector<4x128xf32>
    %cst_15 = arith.constant dense<0.000000e+00> : vector<512x128xf32>
    %24 = tpu.matmul %21, %23, %cst_15 {dimension_numbers = #tpu.dot_dimension_numbers<[1], [0], [0], [1], [0, 0, 1, 1], [], []>} : vector<512x4xf32>, vector<4x128xf32>, vector<512x128xf32> -> vector<512x128xf32>
    %25 = arith.addf %19, %24 : vector<512x128xf32>
    %26 = vector.extract_strided_slice %0 {offsets = [0, 1, 1, 0], sizes = [2, 16, 16, 4], strides = [1, 1, 1, 1]} : vector<2x18x18x4xf32> to vector<2x16x16x4xf32>
    %27 = vector.shape_cast %26 : vector<2x16x16x4xf32> to vector<512x4xf32>
    %c4 = arith.constant 4 : index
    %c0_16 = arith.constant 0 : index
    %c0_17 = arith.constant 0 : index
    %28 = vector.load %arg1[%c4, %c0_16, %c0_17] : memref<9x4x128xf32, #tpu.memory_space<vmem>>, vector<1x4x128xf32>
    %29 = vector.shape_cast %28 : vector<1x4x128xf32> to vector<4x128xf32>
    %cst_18 = arith.constant dense<0.000000e+00> : vector<512x128xf32>
    %30 = tpu.matmul %27, %29, %cst_18 {dimension_numbers = #tpu.dot_dimension_numbers<[1], [0], [0], [1], [0, 0, 1, 1], [], []>} : vector<512x4xf32>, vector<4x128xf32>, vector<512x128xf32> -> vector<512x128xf32>
    %31 = arith.addf %25, %30 : vector<512x128xf32>
    %32 = vector.extract_strided_slice %0 {offsets = [0, 1, 2, 0], sizes = [2, 16, 16, 4], strides = [1, 1, 1, 1]} : vector<2x18x18x4xf32> to vector<2x16x16x4xf32>
    %33 = vector.shape_cast %32 : vector<2x16x16x4xf32> to vector<512x4xf32>
    %c5 = arith.constant 5 : index
    %c0_19 = arith.constant 0 : index
    %c0_20 = arith.constant 0 : index
    %34 = vector.load %arg1[%c5, %c0_19, %c0_20] : memref<9x4x128xf32, #tpu.memory_space<vmem>>, vector<1x4x128xf32>
    %35 = vector.shape_cast %34 : vector<1x4x128xf32> to vector<4x128xf32>
    %cst_21 = arith.constant dense<0.000000e+00> : vector<512x128xf32>
    %36 = tpu.matmul %33, %35, %cst_21 {dimension_numbers = #tpu.dot_dimension_numbers<[1], [0], [0], [1], [0, 0, 1, 1], [], []>} : vector<512x4xf32>, vector<4x128xf32>, vector<512x128xf32> -> vector<512x128xf32>
    %37 = arith.addf %31, %36 : vector<512x128xf32>
    %38 = vector.extract_strided_slice %0 {offsets = [0, 2, 0, 0], sizes = [2, 16, 16, 4], strides = [1, 1, 1, 1]} : vector<2x18x18x4xf32> to vector<2x16x16x4xf32>
    %39 = vector.shape_cast %38 : vector<2x16x16x4xf32> to vector<512x4xf32>
    %c6 = arith.constant 6 : index
    %c0_22 = arith.constant 0 : index
    %c0_23 = arith.constant 0 : index
    %40 = vector.load %arg1[%c6, %c0_22, %c0_23] : memref<9x4x128xf32, #tpu.memory_space<vmem>>, vector<1x4x128xf32>
    %41 = vector.shape_cast %40 : vector<1x4x128xf32> to vector<4x128xf32>
    %cst_24 = arith.constant dense<0.000000e+00> : vector<512x128xf32>
    %42 = tpu.matmul %39, %41, %cst_24 {dimension_numbers = #tpu.dot_dimension_numbers<[1], [0], [0], [1], [0, 0, 1, 1], [], []>} : vector<512x4xf32>, vector<4x128xf32>, vector<512x128xf32> -> vector<512x128xf32>
    %43 = arith.addf %37, %42 : vector<512x128xf32>
    %44 = vector.extract_strided_slice %0 {offsets = [0, 2, 1, 0], sizes = [2, 16, 16, 4], strides = [1, 1, 1, 1]} : vector<2x18x18x4xf32> to vector<2x16x16x4xf32>
    %45 = vector.shape_cast %44 : vector<2x16x16x4xf32> to vector<512x4xf32>
    %c7 = arith.constant 7 : index
    %c0_25 = arith.constant 0 : index
    %c0_26 = arith.constant 0 : index
    %46 = vector.load %arg1[%c7, %c0_25, %c0_26] : memref<9x4x128xf32, #tpu.memory_space<vmem>>, vector<1x4x128xf32>
    %47 = vector.shape_cast %46 : vector<1x4x128xf32> to vector<4x128xf32>
    %cst_27 = arith.constant dense<0.000000e+00> : vector<512x128xf32>
    %48 = tpu.matmul %45, %47, %cst_27 {dimension_numbers = #tpu.dot_dimension_numbers<[1], [0], [0], [1], [0, 0, 1, 1], [], []>} : vector<512x4xf32>, vector<4x128xf32>, vector<512x128xf32> -> vector<512x128xf32>
    %49 = arith.addf %43, %48 : vector<512x128xf32>
    %50 = vector.extract_strided_slice %0 {offsets = [0, 2, 2, 0], sizes = [2, 16, 16, 4], strides = [1, 1, 1, 1]} : vector<2x18x18x4xf32> to vector<2x16x16x4xf32>
    %51 = vector.shape_cast %50 : vector<2x16x16x4xf32> to vector<512x4xf32>
    %c8 = arith.constant 8 : index
    %c0_28 = arith.constant 0 : index
    %c0_29 = arith.constant 0 : index
    %52 = vector.load %arg1[%c8, %c0_28, %c0_29] : memref<9x4x128xf32, #tpu.memory_space<vmem>>, vector<1x4x128xf32>
    %53 = vector.shape_cast %52 : vector<1x4x128xf32> to vector<4x128xf32>
    %cst_30 = arith.constant dense<0.000000e+00> : vector<512x128xf32>
    %54 = tpu.matmul %51, %53, %cst_30 {dimension_numbers = #tpu.dot_dimension_numbers<[1], [0], [0], [1], [0, 0, 1, 1], [], []>} : vector<512x4xf32>, vector<4x128xf32>, vector<512x128xf32> -> vector<512x128xf32>
    %55 = arith.addf %49, %54 : vector<512x128xf32>
    %c0_31 = arith.constant 0 : index
    %c0_32 = arith.constant 0 : index
    %56 = vector.load %arg2[%c0_31, %c0_32] : memref<1x128xf32, #tpu.memory_space<vmem>>, vector<1x128xf32>
    %57 = vector.broadcast %56 : vector<1x128xf32> to vector<512x128xf32>
    %58 = arith.addf %55, %57 : vector<512x128xf32>
    %cst_33 = arith.constant 0.000000e+00 : f32
    %59 = vector.broadcast %cst_33 : f32 to vector<512x128xf32>
    %60 = arith.maximumf %58, %59 : vector<512x128xf32>
    %c0_34 = arith.constant 0 : index
    %c0_35 = arith.constant 0 : index
    %61 = vector.load %arg3[%c0_34, %c0_35] : memref<8x512xf32, #tpu.memory_space<vmem>>, vector<8x512xf32>
    %cst_36 = arith.constant dense<0.000000e+00> : vector<8x128xf32>
    %62 = tpu.matmul %61, %60, %cst_36 {dimension_numbers = #tpu.dot_dimension_numbers<[1], [0], [0], [1], [0, 0, 1, 1], [], []>} : vector<8x512xf32>, vector<512x128xf32>, vector<8x128xf32> -> vector<8x128xf32>
    %c0_37 = arith.constant 0 : index
    %c0_38 = arith.constant 0 : index
    %63 = vector.load %arg4[%c0_37, %c0_38] : memref<128x128xf32, #tpu.memory_space<vmem>>, vector<128x128xf32>
    %cst_39 = arith.constant dense<0.000000e+00> : vector<8x128xf32>
    %64 = tpu.matmul %62, %63, %cst_39 {dimension_numbers = #tpu.dot_dimension_numbers<[1], [0], [0], [1], [0, 0, 1, 1], [], []>} : vector<8x128xf32>, vector<128x128xf32>, vector<8x128xf32> -> vector<8x128xf32>
    %c0_40 = arith.constant 0 : index
    %c0_41 = arith.constant 0 : index
    %65 = vector.load %arg5[%c0_40, %c0_41] : memref<1x128xf32, #tpu.memory_space<vmem>>, vector<1x128xf32>
    %66 = vector.broadcast %65 : vector<1x128xf32> to vector<8x128xf32>
    %67 = arith.addf %64, %66 : vector<8x128xf32>
    %c0_42 = arith.constant 0 : index
    %c0_43 = arith.constant 0 : index
    %68 = vector.load %arg6[%c0_42, %c0_43] : memref<8x128xf32, #tpu.memory_space<vmem>>, vector<8x128xf32>
    tpu.vector_store %arg6[%c0_42, %c0_43], %67 {strides = array<i32>} : memref<8x128xf32, #tpu.memory_space<vmem>>, vector<8x128xf32>,
    return
  }
}

</mosaic_0001>

<llo_original>
// kernel: forward.1
$region0: #{forward.1}
  #allocation0 [shape = 'u32[]', space=smem, size = 0x4, offset = 0x4, fixed_abs, tag = 'smem constant byte address 0x4 - core index']
  #allocation1 [shape = 'u32[144,128]{1,0:T(1,128)}', space=vmem, size = 0x12000, scoped, tag = 'internal scratch']
  %s0 = inlined_call_operand.vmem [shape: f32[2,18,18,4], index: 0, kind: input, shape index: {}]
  %s1 = inlined_call_operand.vmem [shape: f32[9,4,128], index: 1, kind: input, shape index: {}]
  %s2 = inlined_call_operand.vmem [shape: f32[1,128], index: 2, kind: input, shape index: {}]
  %s3 = inlined_call_operand.vmem [shape: f32[8,512], index: 3, kind: input, shape index: {}]
  %s4 = inlined_call_operand.vmem [shape: f32[128,128], index: 4, kind: input, shape index: {}]
  %s5 = inlined_call_operand.vmem [shape: f32[1,128], index: 5, kind: input, shape index: {}]
  %s6 = inlined_call_operand.vmem [shape: f32[8,128], index: 6, kind: output, shape index: {}]
  %s7 = sld [smem:[#allocation0]]
  $region34: #{forward.1} parent=0
    _
  %s9 = ssub.s32 1, %s7
  %s10 = scalar_select 0, %s9, %s7
  // Predicated region
  $region2: #{forward.1} parent=0 // pred_check
    _
  $region3: #{forward.1} parent=0 // pred_check_branch
    %12 = sbr.rel (0) target = $region5
  $region4: #{forward.1} parent=0 // pred_region
    _
  $region5: #{forward.1} parent=0 // pred_fallthru
    _
  // Predicated region
  $region6: #{forward.1} parent=0 // pred_check
    _
  $region7: #{forward.1} parent=0 // pred_check_branch
    %14 = sbr.rel (0) target = $region9
  $region8: #{forward.1} parent=0 // pred_region
    _
  $region9: #{forward.1} parent=0 // pred_fallthru
    _
  // Predicated region
  $region10: #{forward.1} parent=0 // pred_check
    _
  $region11: #{forward.1} parent=0 // pred_check_branch
    %16 = sbr.rel (0) target = $region13
  $region12: #{forward.1} parent=0 // pred_region
    _
  $region13: #{forward.1} parent=0 // pred_fallthru
    _
  // Predicated region
  $region14: #{forward.1} parent=0 // pred_check
    _
  $region15: #{forward.1} parent=0 // pred_check_branch
    %18 = sbr.rel (0) target = $region17
  $region16: #{forward.1} parent=0 // pred_region
    _
  $region17: #{forward.1} parent=0 // pred_fallthru
    _
  // Predicated region
  $region18: #{forward.1} parent=0 // pred_check
    _
  $region19: #{forward.1} parent=0 // pred_check_branch
    %20 = sbr.rel (0) target = $region21
  $region20: #{forward.1} parent=0 // pred_region
    _
  $region21: #{forward.1} parent=0 // pred_fallthru
    _
  // Predicated region
  $region22: #{forward.1} parent=0 // pred_check
    _
  $region23: #{forward.1} parent=0 // pred_check_branch
    %22 = sbr.rel (0) target = $region25
  $region24: #{forward.1} parent=0 // pred_region
    _
  $region25: #{forward.1} parent=0 // pred_fallthru
    _
  %v23 = vld [vmem:[%s0] sm:$0xff]
  %v24 = vld [vmem:[%s0 + $0x8] sm:$0xff]
  %v25 = vld [vmem:[%s0 + $0x10] sm:$0x3]
  %v26 = vld [vmem:[%s0 + $0x18] sm:$0xff]
  %v27 = vld [vmem:[%s0 + $0x20] sm:$0xff]
  %v28 = vld [vmem:[%s0 + $0x28] sm:$0x3]
  %v29 = vld [vmem:[%s0 + $0x30] sm:$0xff]
  %v30 = vld [vmem:[%s0 + $0x38] sm:$0xff]
  %v31 = vld [vmem:[%s0 + $0x40] sm:$0x3]
  %v32 = vld [vmem:[%s0 + $0x48] sm:$0xff]
  %v33 = vld [vmem:[%s0 + $0x50] sm:$0xff]
  %v34 = vld [vmem:[%s0 + $0x58] sm:$0x3]
  %v35 = vld [vmem:[%s0 + $0x60] sm:$0xff]
  %v36 = vld [vmem:[%s0 + $0x68] sm:$0xff]
  %v37 = vld [vmem:[%s0 + $0x70] sm:$0x3]
  %v38 = vld [vmem:[%s0 + $0x78] sm:$0xff]
  %v39 = vld [vmem:[%s0 + $0x80] sm:$0xff]
  %v40 = vld [vmem:[%s0 + $0x88] sm:$0x3]
  %v41 = vld [vmem:[%s0 + $0x90] sm:$0xff]
  %v42 = vld [vmem:[%s0 + $0x98] sm:$0xff]
  %v43 = vld [vmem:[%s0 + $0xa0] sm:$0x3]
  %v44 = vld [vmem:[%s0 + $0xa8] sm:$0xff]
  %v45 = vld [vmem:[%s0 + $0xb0] sm:$0xff]
  %v46 = vld [vmem:[%s0 + $0xb8] sm:$0x3]
  %v47 = vld [vmem:[%s0 + $0xc0] sm:$0xff]
  %v48 = vld [vmem:[%s0 + $0xc8] sm:$0xff]
  %v49 = vld [vmem:[%s0 + $0xd0] sm:$0x3]
  %v50 = vld [vmem:[%s0 + $0xd8] sm:$0xff]
  %v51 = vld [vmem:[%s0 + $0xe0] sm:$0xff]
  %v52 = vld [vmem:[%s0 + $0xe8] sm:$0x3]
  %v53 = vld [vmem:[%s0 + $0xf0] sm:$0xff]
  %v54 = vld [vmem:[%s0 + $0xf8] sm:$0xff]
  %v55 = vld [vmem:[%s0 + $0x100] sm:$0x3]
  %v56 = vld [vmem:[%s0 + $0x108] sm:$0xff]
  %v57 = vld [vmem:[%s0 + $0x110] sm:$0xff]
  %v58 = vld [vmem:[%s0 + $0x118] sm:$0x3]
  %v59 = vld [vmem:[%s0 + $0x120] sm:$0xff]
  %v60 = vld [vmem:[%s0 + $0x128] sm:$0xff]
  %v61 = vld [vmem:[%s0 + $0x130] sm:$0x3]
  %v62 = vld [vmem:[%s0 + $0x138] sm:$0xff]
  %v63 = vld [vmem:[%s0 + $0x140] sm:$0xff]
  %v64 = vld [vmem:[%s0 + $0x148] sm:$0x3]
  %v65 = vld [vmem:[%s0 + $0x150] sm:$0xff]
  %v66 = vld [vmem:[%s0 + $0x158] sm:$0xff]
  %v67 = vld [vmem:[%s0 + $0x160] sm:$0x3]
  %v68 = vld [vmem:[%s0 + $0x168] sm:$0xff]
  %v69 = vld [vmem:[%s0 + $0x170] sm:$0xff]
  %v70 = vld [vmem:[%s0 + $0x178] sm:$0x3]
  %v71 = vld [vmem:[%s0 + $0x180] sm:$0xff]
  %v72 = vld [vmem:[%s0 + $0x188] sm:$0xff]
  %v73 = vld [vmem:[%s0 + $0x190] sm:$0x3]
  %v74 = vld [vmem:[%s0 + $0x198] sm:$0xff]
  %v75 = vld [vmem:[%s0 + $0x1a0] sm:$0xff]
  %v76 = vld [vmem:[%s0 + $0x1a8] sm:$0x3]
  %v77 = vld [vmem:[%s0 + $0x1b0] sm:$0xff]
  %v78 = vld [vmem:[%s0 + $0x1b8] sm:$0xff]
  %v79 = vld [vmem:[%s0 + $0x1c0] sm:$0x3]
  %v80 = vld [vmem:[%s0 + $0x1c8] sm:$0xff]
  %v81 = vld [vmem:[%s0 + $0x1d0] sm:$0xff]
  %v82 = vld [vmem:[%s0 + $0x1d8] sm:$0x3]
  %v83 = vld [vmem:[%s0 + $0x1e0] sm:$0xff]
  %v84 = vld [vmem:[%s0 + $0x1e8] sm:$0xff]
  %v85 = vld [vmem:[%s0 + $0x1f0] sm:$0x3]
  %v86 = vld [vmem:[%s0 + $0x1f8] sm:$0xff]
  %v87 = vld [vmem:[%s0 + $0x200] sm:$0xff]
  %v88 = vld [vmem:[%s0 + $0x208] sm:$0x3]
  %v89 = vld [vmem:[%s0 + $0x210] sm:$0xff]
  %v90 = vld [vmem:[%s0 + $0x218] sm:$0xff]
  %v91 = vld [vmem:[%s0 + $0x220] sm:$0x3]
  %v92 = vld [vmem:[%s0 + $0x228] sm:$0xff]
  %v93 = vld [vmem:[%s0 + $0x230] sm:$0xff]
  %v94 = vld [vmem:[%s0 + $0x238] sm:$0x3]
  %v95 = vld [vmem:[%s0 + $0x240] sm:$0xff]
  %v96 = vld [vmem:[%s0 + $0x248] sm:$0xff]
  %v97 = vld [vmem:[%s0 + $0x250] sm:$0x3]
  %v98 = vld [vmem:[%s0 + $0x258] sm:$0xff]
  %v99 = vld [vmem:[%s0 + $0x260] sm:$0xff]
  %v100 = vld [vmem:[%s0 + $0x268] sm:$0x3]
  %v101 = vld [vmem:[%s0 + $0x270] sm:$0xff]
  %v102 = vld [vmem:[%s0 + $0x278] sm:$0xff]
  %v103 = vld [vmem:[%s0 + $0x280] sm:$0x3]
  %v104 = vld [vmem:[%s0 + $0x288] sm:$0xff]
  %v105 = vld [vmem:[%s0 + $0x290] sm:$0xff]
  %v106 = vld [vmem:[%s0 + $0x298] sm:$0x3]
  %v107 = vld [vmem:[%s0 + $0x2a0] sm:$0xff]
  %v108 = vld [vmem:[%s0 + $0x2a8] sm:$0xff]
  %v109 = vld [vmem:[%s0 + $0x2b0] sm:$0x3]
  %v110 = vld [vmem:[%s0 + $0x2b8] sm:$0xff]
  %v111 = vld [vmem:[%s0 + $0x2c0] sm:$0xff]
  %v112 = vld [vmem:[%s0 + $0x2c8] sm:$0x3]
  %v113 = vld [vmem:[%s0 + $0x2d0] sm:$0xff]
  %v114 = vld [vmem:[%s0 + $0x2d8] sm:$0xff]
  %v115 = vld [vmem:[%s0 + $0x2e0] sm:$0x3]
  %v116 = vld [vmem:[%s0 + $0x2e8] sm:$0xff]
  %v117 = vld [vmem:[%s0 + $0x2f0] sm:$0xff]
  %v118 = vld [vmem:[%s0 + $0x2f8] sm:$0x3]
  %v119 = vld [vmem:[%s0 + $0x300] sm:$0xff]
  %v120 = vld [vmem:[%s0 + $0x308] sm:$0xff]
  %v121 = vld [vmem:[%s0 + $0x310] sm:$0x3]
  %v122 = vld [vmem:[%s0 + $0x318] sm:$0xff]
  %v123 = vld [vmem:[%s0 + $0x320] sm:$0xff]
  %v124 = vld [vmem:[%s0 + $0x328] sm:$0x3]
  %v125 = vld [vmem:[%s0 + $0x330] sm:$0xff]
  %v126 = vld [vmem:[%s0 + $0x338] sm:$0xff]
  %v127 = vld [vmem:[%s0 + $0x340] sm:$0x3]
  %v128 = vld [vmem:[%s0 + $0x348] sm:$0xff]
  %v129 = vld [vmem:[%s0 + $0x350] sm:$0xff]
  %v130 = vld [vmem:[%s0 + $0x358] sm:$0x3]
  %v131 = vld [vmem:[%s1] sm:$0xf]
  %vm228 = vcmask 1046528
  %v229 = vrot.slane %v23, 1
  %v230 = vrot.slane %v24, 1
  %v231 = vsel %vm228, %v229, %v230
  %v232 = vrot.slane %v25, 1
  %v233 = vsel %vm228, %v230, %v232
  %v234 = vrot.slane %v26, 1
  %v235 = vrot.slane %v27, 1
  %v236 = vsel %vm228, %v234, %v235
  %v237 = vrot.slane %v28, 1
  %v238 = vsel %vm228, %v235, %v237
  %v239 = vrot.slane %v29, 1
  %v240 = vrot.slane %v30, 1
  %v241 = vsel %vm228, %v239, %v240
  %v242 = vrot.slane %v31, 1
  %v243 = vsel %vm228, %v240, %v242
  %v244 = vrot.slane %v32, 1
  %v245 = vrot.slane %v33, 1
  %v246 = vsel %vm228, %v244, %v245
  %v247 = vrot.slane %v34, 1
  %v248 = vsel %vm228, %v245, %v247
  %v249 = vrot.slane %v35, 1
  %v250 = vrot.slane %v36, 1
  %v251 = vsel %vm228, %v249, %v250
  %v252 = vrot.slane %v37, 1
  %v253 = vsel %vm228, %v250, %v252
  %v254 = vrot.slane %v38, 1
  %v255 = vrot.slane %v39, 1
  %v256 = vsel %vm228, %v254, %v255
  %v257 = vrot.slane %v40, 1
  %v258 = vsel %vm228, %v255, %v257
  %v259 = vrot.slane %v41, 1
  %v260 = vrot.slane %v42, 1
  %v261 = vsel %vm228, %v259, %v260
  %v262 = vrot.slane %v43, 1
  %v263 = vsel %vm228, %v260, %v262
  %v264 = vrot.slane %v44, 1
  %v265 = vrot.slane %v45, 1
  %v266 = vsel %vm228, %v264, %v265
  %v267 = vrot.slane %v46, 1
  %v268 = vsel %vm228, %v265, %v267
  %v269 = vrot.slane %v47, 1
  %v270 = vrot.slane %v48, 1
  %v271 = vsel %vm228, %v269, %v270
  %v272 = vrot.slane %v49, 1
  %v273 = vsel %vm228, %v270, %v272
  %v274 = vrot.slane %v50, 1
  %v275 = vrot.slane %v51, 1
  %v276 = vsel %vm228, %v274, %v275
  %v277 = vrot.slane %v52, 1
  %v278 = vsel %vm228, %v275, %v277
  %v279 = vrot.slane %v53, 1
  %v280 = vrot.slane %v54, 1
  %v281 = vsel %vm228, %v279, %v280
  %v282 = vrot.slane %v55, 1
  %v283 = vsel %vm228, %v280, %v282
  %v284 = vrot.slane %v56, 1
  %v285 = vrot.slane %v57, 1
  %v286 = vsel %vm228, %v284, %v285
  %v287 = vrot.slane %v58, 1
  %v288 = vsel %vm228, %v285, %v287
  %v289 = vrot.slane %v59, 1
  %v290 = vrot.slane %v60, 1
  %v291 = vsel %vm228, %v289, %v290
  %v292 = vrot.slane %v61, 1
  %v293 = vsel %vm228, %v290, %v292
  %v294 = vrot.slane %v62, 1
  %v295 = vrot.slane %v63, 1
  %v296 = vsel %vm228, %v294, %v295
  %v297 = vrot.slane %v64, 1
  %v298 = vsel %vm228, %v295, %v297
  %v299 = vrot.slane %v65, 1
  %v300 = vrot.slane %v66, 1
  %v301 = vsel %vm228, %v299, %v300
  %v302 = vrot.slane %v67, 1
  %v303 = vsel %vm228, %v300, %v302
  %v304 = vrot.slane %v68, 1
  %v305 = vrot.slane %v69, 1
  %v306 = vsel %vm228, %v304, %v305
  %v307 = vrot.slane %v70, 1
  %v308 = vsel %vm228, %v305, %v307
  %v309 = vrot.slane %v77, 1
  %v310 = vrot.slane %v78, 1
  %v311 = vsel %vm228, %v309, %v310
  %v312 = vrot.slane %v79, 1
  %v313 = vsel %vm228, %v310, %v312
  %v314 = vrot.slane %v80, 1
  %v315 = vrot.slane %v81, 1
  %v316 = vsel %vm228, %v314, %v315
  %v317 = vrot.slane %v82, 1
  %v318 = vsel %vm228, %v315, %v317
  %v319 = vrot.slane %v83, 1
  %v320 = vrot.slane %v84, 1
  %v321 = vsel %vm228, %v319, %v320
  %v322 = vrot.slane %v85, 1
  %v323 = vsel %vm228, %v320, %v322
  %v324 = vrot.slane %v86, 1
  %v325 = vrot.slane %v87, 1
  %v326 = vsel %vm228, %v324, %v325
  %v327 = vrot.slane %v88, 1
  %v328 = vsel %vm228, %v325, %v327
  %v329 = vrot.slane %v89, 1
  %v330 = vrot.slane %v90, 1
  %v331 = vsel %vm228, %v329, %v330
  %v332 = vrot.slane %v91, 1
  %v333 = vsel %vm228, %v330, %v332
  %v334 = vrot.slane %v92, 1
  %v335 = vrot.slane %v93, 1
  %v336 = vsel %vm228, %v334, %v335
  %v337 = vrot.slane %v94, 1
  %v338 = vsel %vm228, %v335, %v337
  %v339 = vrot.slane %v95, 1
  %v340 = vrot.slane %v96, 1
  %v341 = vsel %vm228, %v339, %v340
  %v342 = vrot.slane %v97, 1
  %v343 = vsel %vm228, %v340, %v342
  %v344 = vrot.slane %v98, 1
  %v345 = vrot.slane %v99, 1
  %v346 = vsel %vm228, %v344, %v345
  %v347 = vrot.slane %v100, 1
  %v348 = vsel %vm228, %v345, %v347
  %v349 = vrot.slane %v101, 1
  %v350 = vrot.slane %v102, 1
  %v351 = vsel %vm228, %v349, %v350
  %v352 = vrot.slane %v103, 1
  %v353 = vsel %vm228, %v350, %v352
  %v354 = vrot.slane %v104, 1
  %v355 = vrot.slane %v105, 1
  %v356 = vsel %vm228, %v354, %v355
  %v357 = vrot.slane %v106, 1
  %v358 = vsel %vm228, %v355, %v357
  %v359 = vrot.slane %v107, 1
  %v360 = vrot.slane %v108, 1
  %v361 = vsel %vm228, %v359, %v360
  %v362 = vrot.slane %v109, 1
  %v363 = vsel %vm228, %v360, %v362
  %v364 = vrot.slane %v110, 1
  %v365 = vrot.slane %v111, 1
  %v366 = vsel %vm228, %v364, %v365
  %v367 = vrot.slane %v112, 1
  %v368 = vsel %vm228, %v365, %v367
  %v369 = vrot.slane %v113, 1
  %v370 = vrot.slane %v114, 1
  %v371 = vsel %vm228, %v369, %v370
  %v372 = vrot.slane %v115, 1
  %v373 = vsel %vm228, %v370, %v372
  %v374 = vrot.slane %v116, 1
  %v375 = vrot.slane %v117, 1
  %v376 = vsel %vm228, %v374, %v375
  %v377 = vrot.slane %v118, 1
  %v378 = vsel %vm228, %v375, %v377
  %v379 = vrot.slane %v119, 1
  %v380 = vrot.slane %v120, 1
  %v381 = vsel %vm228, %v379, %v380
  %v382 = vrot.slane %v121, 1
  %v383 = vsel %vm228, %v380, %v382
  %v384 = vrot.slane %v122, 1
  %v385 = vrot.slane %v123, 1
  %v386 = vsel %vm228, %v384, %v385
  %v387 = vrot.slane %v124, 1
  %v388 = vsel %vm228, %v385, %v387
  %s389 = scalar_lea.vmem %s1, 4
  %v390 = vld [vmem:[%s389] sm:$0xf]
  %vm391 = vcmask 31744
  %v392 = vsel %vm391, %v231, 0
  %v394 = vsel %vm391, %v233, 0
  %v396 = vsel %vm391, %v236, 0
  %v398 = vsel %vm391, %v238, 0
  %v400 = vsel %vm391, %v241, 0
  %v402 = vsel %vm391, %v243, 0
  %v404 = vsel %vm391, %v246, 0
  %v406 = vsel %vm391, %v248, 0
  %v408 = vsel %vm391, %v251, 0
  %v410 = vsel %vm391, %v253, 0
  %v412 = vsel %vm391, %v256, 0
  %v414 = vsel %vm391, %v258, 0
  %v416 = vsel %vm391, %v261, 0
  %v418 = vsel %vm391, %v263, 0
  %v420 = vsel %vm391, %v266, 0
  %v422 = vsel %vm391, %v268, 0
  %v424 = vsel %vm391, %v271, 0
  %v426 = vsel %vm391, %v273, 0
  %v428 = vsel %vm391, %v276, 0
  %v430 = vsel %vm391, %v278, 0
  %v432 = vsel %vm391, %v281, 0
  %v434 = vsel %vm391, %v283, 0
  %v436 = vsel %vm391, %v286, 0
  %v438 = vsel %vm391, %v288, 0
  %v440 = vsel %vm391, %v291, 0
  %v442 = vsel %vm391, %v293, 0
  %v444 = vsel %vm391, %v296, 0
  %v446 = vsel %vm391, %v298, 0
  %v448 = vsel %vm391, %v301, 0
  %v450 = vsel %vm391, %v303, 0
  %v452 = vsel %vm391, %v306, 0
  %v454 = vsel %vm391, %v308, 0
  %v456 = vsel %vm391, %v311, 0
  %v458 = vsel %vm391, %v313, 0
  %v460 = vsel %vm391, %v316, 0
  %v462 = vsel %vm391, %v318, 0
  %v464 = vsel %vm391, %v321, 0
  %v466 = vsel %vm391, %v323, 0
  %v468 = vsel %vm391, %v326, 0
  %v470 = vsel %vm391, %v328, 0
  %v472 = vsel %vm391, %v331, 0
  %v474 = vsel %vm391, %v333, 0
  %v476 = vsel %vm391, %v336, 0
  %v478 = vsel %vm391, %v338, 0
  %v480 = vsel %vm391, %v341, 0
  %v482 = vsel %vm391, %v343, 0
  %v484 = vsel %vm391, %v346, 0
  %v486 = vsel %vm391, %v348, 0
  %v488 = vsel %vm391, %v351, 0
  %v490 = vsel %vm391, %v353, 0
  %v492 = vsel %vm391, %v356, 0
  %v494 = vsel %vm391, %v358, 0
  %v496 = vsel %vm391, %v361, 0
  %v498 = vsel %vm391, %v363, 0
  %v500 = vsel %vm391, %v366, 0
  %v502 = vsel %vm391, %v368, 0
  %v504 = vsel %vm391, %v371, 0
  %v506 = vsel %vm391, %v373, 0
  %v508 = vsel %vm391, %v376, 0
  %v510 = vsel %vm391, %v378, 0
  %v512 = vsel %vm391, %v381, 0
  %v514 = vsel %vm391, %v383, 0
  %v516 = vsel %vm391, %v386, 0
  %v518 = vsel %vm391, %v388, 0
  %vm520 = vcmask 1043456
  %v522 = vsel %vm520, %v390, 0
  %524 = vmatprep.subr.mxu0 0.0
  %525 = vmatpush1.msra.mxu0 %v522
  %526 = vmatprep.subr.mxu0 0.0
  %527 = vmatpush1.msra.mxu0 0.0
  %528 = vmatprep.subr.mxu0 0.0
  %529 = vmatpush1.msra.mxu0 0.0
  %530 = vmatprep.subr.mxu0 0.0
  %531 = vmatpush1.msra.mxu0 0.0
  %532 = vmatprep.subr.mxu0 0.0
  %533 = vmatpush1.msra.mxu0 0.0
  %534 = vmatprep.subr.mxu0 0.0
  %535 = vmatpush1.msra.mxu0 0.0
  %536 = vmatprep.subr.mxu0 0.0
  %537 = vmatpush1.msra.mxu0 0.0
  %538 = vmatprep.subr.mxu0 0.0
  %539 = vmatpush1.msra.mxu0 0.0
  %540 = vmatprep.subr.mxu0 0.0
  %541 = vmatpush1.msra.mxu0 0.0
  %542 = vmatprep.subr.mxu0 0.0
  %543 = vmatpush1.msra.mxu0 0.0
  %544 = vmatprep.subr.mxu0 0.0
  %545 = vmatpush1.msra.mxu0 0.0
  %546 = vmatprep.subr.mxu0 0.0
  %547 = vmatpush1.msra.mxu0 0.0
  %548 = vmatprep.subr.mxu0 0.0
  %549 = vmatpush1.msra.mxu0 0.0
  %550 = vmatprep.subr.mxu0 0.0
  %551 = vmatpush1.msra.mxu0 0.0
  %552 = vmatprep.subr.mxu0 0.0
  %553 = vmatpush1.msra.mxu0 0.0
  %554 = vmatprep.subr.mxu0 0.0
  %555 = vmatpush1.msra.mxu0 0.0
  %556 = vmatprep.subr.mxu0 0.0
  %557 = vmatpush1.msra.mxu0 0.0
  %558 = vmatprep.subr.mxu0 0.0
  %559 = vmatpush1.msra.mxu0 0.0
  %560 = vmatprep.subr.mxu0 0.0
  %561 = vmatpush1.msra.mxu0 0.0
  %562 = vmatprep.subr.mxu0 0.0
  %563 = vmatpush1.msra.mxu0 0.0
  %564 = vmatprep.subr.mxu0 0.0
  %565 = vmatpush1.msra.mxu0 0.0
  %566 = vmatprep.subr.mxu0 0.0
  %567 = vmatpush1.msra.mxu0 0.0
  %568 = vmatprep.subr.mxu0 0.0
  %569 = vmatpush1.msra.mxu0 0.0
  %570 = vmatprep.subr.mxu0 0.0
  %571 = vmatpush1.msra.mxu0 0.0
  %572 = vmatprep.subr.mxu0 0.0
  %573 = vmatpush1.msra.mxu0 0.0
  %574 = vmatprep.subr.mxu0 0.0
  %575 = vmatpush1.msra.mxu0 0.0
  %576 = vmatprep.subr.mxu0 0.0
  %577 = vmatpush1.msra.mxu0 0.0
  %578 = vmatprep.subr.mxu0 0.0
  %579 = vmatpush1.msra.mxu0 0.0
  %580 = vmatprep.subr.mxu0 0.0
  %581 = vmatpush1.msra.mxu0 0.0
  %582 = vmatprep.subr.mxu0 0.0
  %583 = vmatpush1.msra.mxu0 0.0
  %584 = vmatprep.subr.mxu0 0.0
  %585 = vmatpush1.msra.mxu0 0.0
  %586 = vmatprep.subr.mxu0 0.0
  %587 = vmatpush1.msra.mxu0 0.0
  %588 = vmatprep.mubr.f32.mxu0 0.0
  %589 = vmatmul.mubr.f32.gmra.mrb[0].mxu0 %v392
  %v590 = vpop.f32.mrb[0].mxu0
  %v591 = vadd.f32 0.0, %v590
  %v592 = vpop.f32.mrb[0].mxu0
  %593 = vmatprep.mubr.f32.mxu0 0.0
  %594 = vmatmul.mubr.f32.gmra.mrb[0].mxu0 %v394
  %v595 = vpop.f32.mrb[0].mxu0
  %v596 = vadd.f32 0.0, %v595
  %v597 = vpop.f32.mrb[0].mxu0
  %598 = vmatprep.mubr.f32.mxu0 0.0
  %599 = vmatmul.mubr.f32.gmra.mrb[0].mxu0 %v396
  %v600 = vpop.f32.mrb[0].mxu0
  %v601 = vadd.f32 0.0, %v600
  %v602 = vpop.f32.mrb[0].mxu0
  %603 = vmatprep.mubr.f32.mxu0 0.0
  %604 = vmatmul.mubr.f32.gmra.mrb[0].mxu0 %v398
  %v605 = vpop.f32.mrb[0].mxu0
  %v606 = vadd.f32 0.0, %v605
  %v607 = vpop.f32.mrb[0].mxu0
  %608 = vmatprep.mubr.f32.mxu0 0.0
  %609 = vmatmul.mubr.f32.gmra.mrb[0].mxu0 %v400
  %v610 = vpop.f32.mrb[0].mxu0
  %v611 = vadd.f32 0.0, %v610
  %v612 = vpop.f32.mrb[0].mxu0
  %613 = vmatprep.mubr.f32.mxu0 0.0
  %614 = vmatmul.mubr.f32.gmra.mrb[0].mxu0 %v402
  %v615 = vpop.f32.mrb[0].mxu0
  %v616 = vadd.f32 0.0, %v615
  %v617 = vpop.f32.mrb[0].mxu0
  %618 = vmatprep.mubr.f32.mxu0 0.0
  %619 = vmatmul.mubr.f32.gmra.mrb[0].mxu0 %v404
  %v620 = vpop.f32.mrb[0].mxu0
  %v621 = vadd.f32 0.0, %v620
  %v622 = vpop.f32.mrb[0].mxu0
  %623 = vmatprep.mubr.f32.mxu0 0.0
  %624 = vmatmul.mubr.f32.gmra.mrb[0].mxu0 %v406
  %v625 = vpop.f32.mrb[0].mxu0
  %v626 = vadd.f32 0.0, %v625
  %v627 = vpop.f32.mrb[0].mxu0
  %628 = vmatprep.mubr.f32.mxu0 0.0
  %629 = vmatmul.mubr.f32.gmra.mrb[0].mxu0 %v408
  %v630 = vpop.f32.mrb[0].mxu0
  %v631 = vadd.f32 0.0, %v630
  %v632 = vpop.f32.mrb[0].mxu0
  %633 = vmatprep.mubr.f32.mxu0 0.0
  %634 = vmatmul.mubr.f32.gmra.mrb[0].mxu0 %v410
  %v635 = vpop.f32.mrb[0].mxu0
  %v636 = vadd.f32 0.0, %v635
  %v637 = vpop.f32.mrb[0].mxu0
  %638 = vmatprep.mubr.f32.mxu0 0.0
  %639 = vmatmul.mubr.f32.gmra.mrb[0].mxu0 %v412
  %v640 = vpop.f32.mrb[0].mxu0
  %v641 = vadd.f32 0.0, %v640
  %v642 = vpop.f32.mrb[0].mxu0
  %643 = vmatprep.mubr.f32.mxu0 0.0
  %644 = vmatmul.mubr.f32.gmra.mrb[0].mxu0 %v414
  %v645 = vpop.f32.mrb[0].mxu0
  %v646 = vadd.f32 0.0, %v645
  %v647 = vpop.f32.mrb[0].mxu0
  %648 = vmatprep.mubr.f32.mxu0 0.0
  %649 = vmatmul.mubr.f32.gmra.mrb[0].mxu0 %v416
  %v650 = vpop.f32.mrb[0].mxu0
  %v651 = vadd.f32 0.0, %v650
  %v652 = vpop.f32.mrb[0].mxu0
  %653 = vmatprep.mubr.f32.mxu0 0.0
  %654 = vmatmul.mubr.f32.gmra.mrb[0].mxu0 %v418
  %v655 = vpop.f32.mrb[0].mxu0
  %v656 = vadd.f32 0.0, %v655
  %v657 = vpop.f32.mrb[0].mxu0
  %658 = vmatprep.mubr.f32.mxu0 0.0
  %659 = vmatmul.mubr.f32.gmra.mrb[0].mxu0 %v420
  %v660 = vpop.f32.mrb[0].mxu0
  %v661 = vadd.f32 0.0, %v660
  %v662 = vpop.f32.mrb[0].mxu0
  %663 = vmatprep.mubr.f32.mxu0 0.0
  %664 = vmatmul.mubr.f32.gmra.mrb[0].mxu0 %v422
  %v665 = vpop.f32.mrb[0].mxu0
  %v666 = vadd.f32 0.0, %v665
  %v667 = vpop.f32.mrb[0].mxu0
  %668 = vmatprep.mubr.f32.mxu0 0.0
  %669 = vmatmul.mubr.f32.gmra.mrb[0].mxu0 %v424
  %v670 = vpop.f32.mrb[0].mxu0
  %v671 = vadd.f32 0.0, %v670
  %v672 = vpop.f32.mrb[0].mxu0
  %673 = vmatprep.mubr.f32.mxu0 0.0
  %674 = vmatmul.mubr.f32.gmra.mrb[0].mxu0 %v426
  %v675 = vpop.f32.mrb[0].mxu0
  %v676 = vadd.f32 0.0, %v675
  %v677 = vpop.f32.mrb[0].mxu0
  %678 = vmatprep.mubr.f32.mxu0 0.0
  %679 = vmatmul.mubr.f32.gmra.mrb[0].mxu0 %v428
  %v680 = vpop.f32.mrb[0].mxu0
  %v681 = vadd.f32 0.0, %v680
  %v682 = vpop.f32.mrb[0].mxu0
  %683 = vmatprep.mubr.f32.mxu0 0.0
  %684 = vmatmul.mubr.f32.gmra.mrb[0].mxu0 %v430
  %v685 = vpop.f32.mrb[0].mxu0
  %v686 = vadd.f32 0.0, %v685
  %v687 = vpop.f32.mrb[0].mxu0
  %688 = vmatprep.mubr.f32.mxu0 0.0
  %689 = vmatmul.mubr.f32.gmra.mrb[0].mxu0 %v432
  %v690 = vpop.f32.mrb[0].mxu0
  %v691 = vadd.f32 0.0, %v690
  %v692 = vpop.f32.mrb[0].mxu0
  %693 = vmatprep.mubr.f32.mxu0 0.0
  %694 = vmatmul.mubr.f32.gmra.mrb[0].mxu0 %v434
  %v695 = vpop.f32.mrb[0].mxu0
  %v696 = vadd.f32 0.0, %v695
  %v697 = vpop.f32.mrb[0].mxu0
  %698 = vmatprep.mubr.f32.mxu0 0.0
  %699 = vmatmul.mubr.f32.gmra.mrb[0].mxu0 %v436
  %v700 = vpop.f32.mrb[0].mxu0
  %v701 = vadd.f32 0.0, %v700
  %v702 = vpop.f32.mrb[0].mxu0
  %703 = vmatprep.mubr.f32.mxu0 0.0
  %704 = vmatmul.mubr.f32.gmra.mrb[0].mxu0 %v438
  %v705 = vpop.f32.mrb[0].mxu0
  %v706 = vadd.f32 0.0, %v705
  %v707 = vpop.f32.mrb[0].mxu0
  %708 = vmatprep.mubr.f32.mxu0 0.0
  %709 = vmatmul.mubr.f32.gmra.mrb[0].mxu0 %v440
  %v710 = vpop.f32.mrb[0].mxu0
  %v711 = vadd.f32 0.0, %v710
  %v712 = vpop.f32.mrb[0].mxu0
  %713 = vmatprep.mubr.f32.mxu0 0.0
  %714 = vmatmul.mubr.f32.gmra.mrb[0].mxu0 %v442
  %v715 = vpop.f32.mrb[0].mxu0
  %v716 = vadd.f32 0.0, %v715
  %v717 = vpop.f32.mrb[0].mxu0
  %718 = vmatprep.mubr.f32.mxu0 0.0
  %719 = vmatmul.mubr.f32.gmra.mrb[0].mxu0 %v444
  %v720 = vpop.f32.mrb[0].mxu0
  %v721 = vadd.f32 0.0, %v720
  %v722 = vpop.f32.mrb[0].mxu0
  %723 = vmatprep.mubr.f32.mxu0 0.0
  %724 = vmatmul.mubr.f32.gmra.mrb[0].mxu0 %v446
  %v725 = vpop.f32.mrb[0].mxu0
  %v726 = vadd.f32 0.0, %v725
  %v727 = vpop.f32.mrb[0].mxu0
  %728 = vmatprep.mubr.f32.mxu0 0.0
  %729 = vmatmul.mubr.f32.gmra.mrb[0].mxu0 %v448
  %v730 = vpop.f32.mrb[0].mxu0
  %v731 = vadd.f32 0.0, %v730
  %v732 = vpop.f32.mrb[0].mxu0
  %733 = vmatprep.mubr.f32.mxu0 0.0
  %734 = vmatmul.mubr.f32.gmra.mrb[0].mxu0 %v450
  %v735 = vpop.f32.mrb[0].mxu0
  %v736 = vadd.f32 0.0, %v735
  %v737 = vpop.f32.mrb[0].mxu0
  %738 = vmatprep.mubr.f32.mxu0 0.0
  %739 = vmatmul.mubr.f32.gmra.mrb[0].mxu0 %v452
  %v740 = vpop.f32.mrb[0].mxu0
  %v741 = vadd.f32 0.0, %v740
  %v742 = vpop.f32.mrb[0].mxu0
  %743 = vmatprep.mubr.f32.mxu0 0.0
  %744 = vmatmul.mubr.f32.gmra.mrb[0].mxu0 %v454
  %v745 = vpop.f32.mrb[0].mxu0
  %v746 = vadd.f32 0.0, %v745
  %v747 = vpop.f32.mrb[0].mxu0
  %748 = vmatprep.mubr.f32.mxu0 0.0
  %749 = vmatmul.mubr.f32.gmra.mrb[0].mxu0 %v456
  %v750 = vpop.f32.mrb[0].mxu0
  %v751 = vadd.f32 0.0, %v750
  %v752 = vpop.f32.mrb[0].mxu0
  %753 = vmatprep.mubr.f32.mxu0 0.0
  %754 = vmatmul.mubr.f32.gmra.mrb[0].mxu0 %v458
  %v755 = vpop.f32.mrb[0].mxu0
  %v756 = vadd.f32 0.0, %v755
  %v757 = vpop.f32.mrb[0].mxu0
  %758 = vmatprep.mubr.f32.mxu0 0.0
  %759 = vmatmul.mubr.f32.gmra.mrb[0].mxu0 %v460
  %v760 = vpop.f32.mrb[0].mxu0
  %v761 = vadd.f32 0.0, %v760
  %v762 = vpop.f32.mrb[0].mxu0
  %763 = vmatprep.mubr.f32.mxu0 0.0
  %764 = vmatmul.mubr.f32.gmra.mrb[0].mxu0 %v462
  %v765 = vpop.f32.mrb[0].mxu0
  %v766 = vadd.f32 0.0, %v765
  %v767 = vpop.f32.mrb[0].mxu0
  %768 = vmatprep.mubr.f32.mxu0 0.0
  %769 = vmatmul.mubr.f32.gmra.mrb[0].mxu0 %v464
  %v770 = vpop.f32.mrb[0].mxu0
  %v771 = vadd.f32 0.0, %v770
  %v772 = vpop.f32.mrb[0].mxu0
  %773 = vmatprep.mubr.f32.mxu0 0.0
  %774 = vmatmul.mubr.f32.gmra.mrb[0].mxu0 %v466
  %v775 = vpop.f32.mrb[0].mxu0
  %v776 = vadd.f32 0.0, %v775
  %v777 = vpop.f32.mrb[0].mxu0
  %778 = vmatprep.mubr.f32.mxu0 0.0
  %779 = vmatmul.mubr.f32.gmra.mrb[0].mxu0 %v468
  %v780 = vpop.f32.mrb[0].mxu0
  %v781 = vadd.f32 0.0, %v780
  %v782 = vpop.f32.mrb[0].mxu0
  %783 = vmatprep.mubr.f32.mxu0 0.0
  %784 = vmatmul.mubr.f32.gmra.mrb[0].mxu0 %v470
  %v785 = vpop.f32.mrb[0].mxu0
  %v786 = vadd.f32 0.0, %v785
  %v787 = vpop.f32.mrb[0].mxu0
  %788 = vmatprep.mubr.f32.mxu0 0.0
  %789 = vmatmul.mubr.f32.gmra.mrb[0].mxu0 %v472
  %v790 = vpop.f32.mrb[0].mxu0
  %v791 = vadd.f32 0.0, %v790
  %v792 = vpop.f32.mrb[0].mxu0
  %793 = vmatprep.mubr.f32.mxu0 0.0
  %794 = vmatmul.mubr.f32.gmra.mrb[0].mxu0 %v474
  %v795 = vpop.f32.mrb[0].mxu0
  %v796 = vadd.f32 0.0, %v795
  %v797 = vpop.f32.mrb[0].mxu0
  %798 = vmatprep.mubr.f32.mxu0 0.0
  %799 = vmatmul.mubr.f32.gmra.mrb[0].mxu0 %v476
  %v800 = vpop.f32.mrb[0].mxu0
  %v801 = vadd.f32 0.0, %v800
  %v802 = vpop.f32.mrb[0].mxu0
  %803 = vmatprep.mubr.f32.mxu0 0.0
  %804 = vmatmul.mubr.f32.gmra.mrb[0].mxu0 %v478
  %v805 = vpop.f32.mrb[0].mxu0
  %v806 = vadd.f32 0.0, %v805
  %v807 = vpop.f32.mrb[0].mxu0
  %808 = vmatprep.mubr.f32.mxu0 0.0
  %809 = vmatmul.mubr.f32.gmra.mrb[0].mxu0 %v480
  %v810 = vpop.f32.mrb[0].mxu0
  %v811 = vadd.f32 0.0, %v810
  %v812 = vpop.f32.mrb[0].mxu0
  %813 = vmatprep.mubr.f32.mxu0 0.0
  %814 = vmatmul.mubr.f32.gmra.mrb[0].mxu0 %v482
  %v815 = vpop.f32.mrb[0].mxu0
  %v816 = vadd.f32 0.0, %v815
  %v817 = vpop.f32.mrb[0].mxu0
  %818 = vmatprep.mubr.f32.mxu0 0.0
  %819 = vmatmul.mubr.f32.gmra.mrb[0].mxu0 %v484
  %v820 = vpop.f32.mrb[0].mxu0
  %v821 = vadd.f32 0.0, %v820
  %v822 = vpop.f32.mrb[0].mxu0
  %823 = vmatprep.mubr.f32.mxu0 0.0
  %824 = vmatmul.mubr.f32.gmra.mrb[0].mxu0 %v486
  %v825 = vpop.f32.mrb[0].mxu0
  %v826 = vadd.f32 0.0, %v825
  %v827 = vpop.f32.mrb[0].mxu0
  %828 = vmatprep.mubr.f32.mxu0 0.0
  %829 = vmatmul.mubr.f32.gmra.mrb[0].mxu0 %v488
  %v830 = vpop.f32.mrb[0].mxu0
  %v831 = vadd.f32 0.0, %v830
  %v832 = vpop.f32.mrb[0].mxu0
  %833 = vmatprep.mubr.f32.mxu0 0.0
  %834 = vmatmul.mubr.f32.gmra.mrb[0].mxu0 %v490
  %v835 = vpop.f32.mrb[0].mxu0
  %v836 = vadd.f32 0.0, %v835
  %v837 = vpop.f32.mrb[0].mxu0
  %838 = vmatprep.mubr.f32.mxu0 0.0
  %839 = vmatmul.mubr.f32.gmra.mrb[0].mxu0 %v492
  %v840 = vpop.f32.mrb[0].mxu0
  %v841 = vadd.f32 0.0, %v840
  %v842 = vpop.f32.mrb[0].mxu0
  %843 = vmatprep.mubr.f32.mxu0 0.0
  %844 = vmatmul.mubr.f32.gmra.mrb[0].mxu0 %v494
  %v845 = vpop.f32.mrb[0].mxu0
  %v846 = vadd.f32 0.0, %v845
  %v847 = vpop.f32.mrb[0].mxu0
  %848 = vmatprep.mubr.f32.mxu0 0.0
  %849 = vmatmul.mubr.f32.gmra.mrb[0].mxu0 %v496
  %v850 = vpop.f32.mrb[0].mxu0
  %v851 = vadd.f32 0.0, %v850
  %v852 = vpop.f32.mrb[0].mxu0
  %853 = vmatprep.mubr.f32.mxu0 0.0
  %854 = vmatmul.mubr.f32.gmra.mrb[0].mxu0 %v498
  %v855 = vpop.f32.mrb[0].mxu0
  %v856 = vadd.f32 0.0, %v855
  %v857 = vpop.f32.mrb[0].mxu0
  %858 = vmatprep.mubr.f32.mxu0 0.0
  %859 = vmatmul.mubr.f32.gmra.mrb[0].mxu0 %v500
  %v860 = vpop.f32.mrb[0].mxu0
  %v861 = vadd.f32 0.0, %v860
  %v862 = vpop.f32.mrb[0].mxu0
  %863 = vmatprep.mubr.f32.mxu0 0.0
  %864 = vmatmul.mubr.f32.gmra.mrb[0].mxu0 %v502
  %v865 = vpop.f32.mrb[0].mxu0
  %v866 = vadd.f32 0.0, %v865
  %v867 = vpop.f32.mrb[0].mxu0
  %868 = vmatprep.mubr.f32.mxu0 0.0
  %869 = vmatmul.mubr.f32.gmra.mrb[0].mxu0 %v504
  %v870 = vpop.f32.mrb[0].mxu0
  %v871 = vadd.f32 0.0, %v870
  %v872 = vpop.f32.mrb[0].mxu0
  %873 = vmatprep.mubr.f32.mxu0 0.0
  %874 = vmatmul.mubr.f32.gmra.mrb[0].mxu0 %v506
  %v875 = vpop.f32.mrb[0].mxu0
  %v876 = vadd.f32 0.0, %v875
  %v877 = vpop.f32.mrb[0].mxu0
  %878 = vmatprep.mubr.f32.mxu0 0.0
  %879 = vmatmul.mubr.f32.gmra.mrb[0].mxu0 %v508
  %v880 = vpop.f32.mrb[0].mxu0
  %v881 = vadd.f32 0.0, %v880
  %v882 = vpop.f32.mrb[0].mxu0
  %883 = vmatprep.mubr.f32.mxu0 0.0
  %884 = vmatmul.mubr.f32.gmra.mrb[0].mxu0 %v510
  %v885 = vpop.f32.mrb[0].mxu0
  %v886 = vadd.f32 0.0, %v885
  %v887 = vpop.f32.mrb[0].mxu0
  %888 = vmatprep.mubr.f32.mxu0 0.0
  %889 = vmatmul.mubr.f32.gmra.mrb[0].mxu0 %v512
  %v890 = vpop.f32.mrb[0].mxu0
  %v891 = vadd.f32 0.0, %v890
  %v892 = vpop.f32.mrb[0].mxu0
  %893 = vmatprep.mubr.f32.mxu0 0.0
  %894 = vmatmul.mubr.f32.gmra.mrb[0].mxu0 %v514
  %v895 = vpop.f32.mrb[0].mxu0
  %v896 = vadd.f32 0.0, %v895
  %v897 = vpop.f32.mrb[0].mxu0
  %898 = vmatprep.mubr.f32.mxu0 0.0
  %899 = vmatmul.mubr.f32.gmra.mrb[0].mxu0 %v516
  %v900 = vpop.f32.mrb[0].mxu0
  %v901 = vadd.f32 0.0, %v900
  %v902 = vpop.f32.mrb[0].mxu0
  %903 = vmatprep.mubr.f32.mxu0 0.0
  %904 = vmatmul.mubr.f32.gmra.mrb[0].mxu0 %v518
  %v905 = vpop.f32.mrb[0].mxu0
  %v906 = vadd.f32 0.0, %v905
  %v907 = vpop.f32.mrb[0].mxu0
  %908 = vdwg.mxu0
  %v909 = vsel %vm391, %v23, 0
  %v911 = vsel %vm391, %v24, 0
  %v913 = vsel %vm391, %v26, 0
  %v915 = vsel %vm391, %v27, 0
  %v917 = vsel %vm391, %v29, 0
  %v919 = vsel %vm391, %v30, 0
  %v921 = vsel %vm391, %v32, 0
  %v923 = vsel %vm391, %v33, 0
  %v925 = vsel %vm391, %v35, 0
  %v927 = vsel %vm391, %v36, 0
  %v929 = vsel %vm391, %v38, 0
  %v931 = vsel %vm391, %v39, 0
  %v933 = vsel %vm391, %v41, 0
  %v935 = vsel %vm391, %v42, 0
  %v937 = vsel %vm391, %v44, 0
  %v939 = vsel %vm391, %v45, 0
  %v941 = vsel %vm391, %v47, 0
  %v943 = vsel %vm391, %v48, 0
  %v945 = vsel %vm391, %v50, 0
  %v947 = vsel %vm391, %v51, 0
  %v949 = vsel %vm391, %v53, 0
  %v951 = vsel %vm391, %v54, 0
  %v953 = vsel %vm391, %v56, 0
  %v955 = vsel %vm391, %v57, 0
  %v957 = vsel %vm391, %v59, 0
  %v959 = vsel %vm391, %v60, 0
  %v961 = vsel %vm391, %v62, 0
  %v963 = vsel %vm391, %v63, 0
  %v965 = vsel %vm391, %v65, 0
  %v967 = vsel %vm391, %v66, 0
  %v969 = vsel %vm391, %v68, 0
  %v971 = vsel %vm391, %v69, 0
  %v973 = vsel %vm391, %v77, 0
  %v975 = vsel %vm391, %v78, 0
  %v977 = vsel %vm391, %v80, 0
  %v979 = vsel %vm391, %v81, 0
  %v981 = vsel %vm391, %v83, 0
  %v983 = vsel %vm391, %v84, 0
  %v985 = vsel %vm391, %v86, 0
  %v987 = vsel %vm391, %v87, 0
  %v989 = vsel %vm391, %v89, 0
  %v991 = vsel %vm391, %v90, 0
  %v993 = vsel %vm391, %v92, 0
  %v995 = vsel %vm391, %v93, 0
  %v997 = vsel %vm391, %v95, 0
  %v999 = vsel %vm391, %v96, 0
  %v1001 = vsel %vm391, %v98, 0
  %v1003 = vsel %vm391, %v99, 0
  %v1005 = vsel %vm391, %v101, 0
  %v1007 = vsel %vm391, %v102, 0
  %v1009 = vsel %vm391, %v104, 0
  %v1011 = vsel %vm391, %v105, 0
  %v1013 = vsel %vm391, %v107, 0
  %v1015 = vsel %vm391, %v108, 0
  %v1017 = vsel %vm391, %v110, 0
  %v1019 = vsel %vm391, %v111, 0
  %v1021 = vsel %vm391, %v113, 0
  %v1023 = vsel %vm391, %v114, 0
  %v1025 = vsel %vm391, %v116, 0
  %v1027 = vsel %vm391, %v117, 0
  %v1029 = vsel %vm391, %v119, 0
  %v1031 = vsel %vm391, %v120, 0
  %v1033 = vsel %vm391, %v122, 0
  %v1035 = vsel %vm391, %v123, 0
  %v1038 = vsel %vm520, %v131, 0
  %1040 = vmatprep.subr.mxu0 0.0
  %1041 = vmatpush1.msra.mxu0 %v1038
  %1042 = vmatprep.subr.mxu0 0.0
  %1043 = vmatpush1.msra.mxu0 0.0
  %1044 = vmatprep.subr.mxu0 0.0
  %1045 = vmatpush1.msra.mxu0 0.0
  %1046 = vmatprep.subr.mxu0 0.0
  %1047 = vmatpush1.msra.mxu0 0.0
  %1048 = vmatprep.subr.mxu0 0.0
  %1049 = vmatpush1.msra.mxu0 0.0
  %1050 = vmatprep.subr.mxu0 0.0
  %1051 = vmatpush1.msra.mxu0 0.0
  %1052 = vmatprep.subr.mxu0 0.0
  %1053 = vmatpush1.msra.mxu0 0.0
  %1054 = vmatprep.subr.mxu0 0.0
  %1055 = vmatpush1.msra.mxu0 0.0
  %1056 = vmatprep.subr.mxu0 0.0
  %1057 = vmatpush1.msra.mxu0 0.0
  %1058 = vmatprep.subr.mxu0 0.0
  %1059 = vmatpush1.msra.mxu0 0.0
  %1060 = vmatprep.subr.mxu0 0.0
  %1061 = vmatpush1.msra.mxu0 0.0
  %1062 = vmatprep.subr.mxu0 0.0
  %1063 = vmatpush1.msra.mxu0 0.0
  %1064 = vmatprep.subr.mxu0 0.0
  %1065 = vmatpush1.msra.mxu0 0.0
  %1066 = vmatprep.subr.mxu0 0.0
  %1067 = vmatpush1.msra.mxu0 0.0
  %1068 = vmatprep.subr.mxu0 0.0
  %1069 = vmatpush1.msra.mxu0 0.0
  %1070 = vmatprep.subr.mxu0 0.0
  %1071 = vmatpush1.msra.mxu0 0.0
  %1072 = vmatprep.subr.mxu0 0.0
  %1073 = vmatpush1.msra.mxu0 0.0
  %1074 = vmatprep.subr.mxu0 0.0
  %1075 = vmatpush1.msra.mxu0 0.0
  %1076 = vmatprep.subr.mxu0 0.0
  %1077 = vmatpush1.msra.mxu0 0.0
  %1078 = vmatprep.subr.mxu0 0.0
  %1079 = vmatpush1.msra.mxu0 0.0
  %1080 = vmatprep.subr.mxu0 0.0
  %1081 = vmatpush1.msra.mxu0 0.0
  %1082 = vmatprep.subr.mxu0 0.0
  %1083 = vmatpush1.msra.mxu0 0.0
  %1084 = vmatprep.subr.mxu0 0.0
  %1085 = vmatpush1.msra.mxu0 0.0
  %1086 = vmatprep.subr.mxu0 0.0
  %1087 = vmatpush1.msra.mxu0 0.0
  %1088 = vmatprep.subr.mxu0 0.0
  %1089 = vmatpush1.msra.mxu0 0.0
  %1090 = vmatprep.subr.mxu0 0.0
  %1091 = vmatpush1.msra.mxu0 0.0
  %1092 = vmatprep.subr.mxu0 0.0
  %1093 = vmatpush1.msra.mxu0 0.0
  %1094 = vmatprep.subr.mxu0 0.0
  %1095 = vmatpush1.msra.mxu0 0.0
  %1096 = vmatprep.subr.mxu0 0.0
  %1097 = vmatpush1.msra.mxu0 0.0
  %1098 = vmatprep.subr.mxu0 0.0
  %1099 = vmatpush1.msra.mxu0 0.0
  %1100 = vmatprep.subr.mxu0 0.0
  %1101 = vmatpush1.msra.mxu0 0.0
  %1102 = vmatprep.subr.mxu0 0.0
  %1103 = vmatpush1.msra.mxu0 0.0
  %1104 = vmatprep.mubr.f32.mxu0 0.0
  %1105 = vmatmul.mubr.f32.gmra.mrb[0].mxu0 %v909
  %v1106 = vpop.f32.mrb[0].mxu0
  %v1107 = vadd.f32 %v591, %v1106
  %v1108 = vpop.f32.mrb[0].mxu0
  %1109 = vmatprep.mubr.f32.mxu0 0.0
  %1110 = vmatmul.mubr.f32.gmra.mrb[0].mxu0 %v911
  %v1111 = vpop.f32.mrb[0].mxu0
  %v1112 = vadd.f32 %v596, %v1111
  %v1113 = vpop.f32.mrb[0].mxu0
  %1114 = vmatprep.mubr.f32.mxu0 0.0
  %1115 = vmatmul.mubr.f32.gmra.mrb[0].mxu0 %v913
  %v1116 = vpop.f32.mrb[0].mxu0
  %v1117 = vadd.f32 %v601, %v1116
  %v1118 = vpop.f32.mrb[0].mxu0
  %1119 = vmatprep.mubr.f32.mxu0 0.0
  %1120 = vmatmul.mubr.f32.gmra.mrb[0].mxu0 %v915
  %v1121 = vpop.f32.mrb[0].mxu0
  %v1122 = vadd.f32 %v606, %v1121
  %v1123 = vpop.f32.mrb[0].mxu0
  %1124 = vmatprep.mubr.f32.mxu0 0.0
  %1125 = vmatmul.mubr.f32.gmra.mrb[0].mxu0 %v917
  %v1126 = vpop.f32.mrb[0].mxu0
  %v1127 = vadd.f32 %v611, %v1126
  %v1128 = vpop.f32.mrb[0].mxu0
  %1129 = vmatprep.mubr.f32.mxu0 0.0
  %1130 = vmatmul.mubr.f32.gmra.mrb[0].mxu0 %v919
  %v1131 = vpop.f32.mrb[0].mxu0
  %v1132 = vadd.f32 %v616, %v1131
  %v1133 = vpop.f32.mrb[0].mxu0
  %1134 = vmatprep.mubr.f32.mxu0 0.0
  %1135 = vmatmul.mubr.f32.gmra.mrb[0].mxu0 %v921
  %v1136 = vpop.f32.mrb[0].mxu0
  %v1137 = vadd.f32 %v621, %v1136
  %v1138 = vpop.f32.mrb[0].mxu0
  %1139 = vmatprep.mubr.f32.mxu0 0.0
  %1140 = vmatmul.mubr.f32.gmra.mrb[0].mxu0 %v923
  %v1141 = vpop.f32.mrb[0].mxu0
  %v1142 = vadd.f32 %v626, %v1141
  %v1143 = vpop.f32.mrb[0].mxu0
  %1144 = vmatprep.mubr.f32.mxu0 0.0
  %1145 = vmatmul.mubr.f32.gmra.mrb[0].mxu0 %v925
  %v1146 = vpop.f32.mrb[0].mxu0
  %v1147 = vadd.f32 %v631, %v1146
  %v1148 = vpop.f32.mrb[0].mxu0
  %1149 = vmatprep.mubr.f32.mxu0 0.0
  %1150 = vmatmul.mubr.f32.gmra.mrb[0].mxu0 %v927
  %v1151 = vpop.f32.mrb[0].mxu0
  %v1152 = vadd.f32 %v636, %v1151
  %v1153 = vpop.f32.mrb[0].mxu0
  %1154 = vmatprep.mubr.f32.mxu0 0.0
  %1155 = vmatmul.mubr.f32.gmra.mrb[0].mxu0 %v929
  %v1156 = vpop.f32.mrb[0].mxu0
  %v1157 = vadd.f32 %v641, %v1156
  %v1158 = vpop.f32.mrb[0].mxu0
  %1159 = vmatprep.mubr.f32.mxu0 0.0
  %1160 = vmatmul.mubr.f32.gmra.mrb[0].mxu0 %v931
  %v1161 = vpop.f32.mrb[0].mxu0
  %v1162 = vadd.f32 %v646, %v1161
  %v1163 = vpop.f32.mrb[0].mxu0
  %1164 = vmatprep.mubr.f32.mxu0 0.0
  %1165 = vmatmul.mubr.f32.gmra.mrb[0].mxu0 %v933
  %v1166 = vpop.f32.mrb[0].mxu0
  %v1167 = vadd.f32 %v651, %v1166
  %v1168 = vpop.f32.mrb[0].mxu0
  %1169 = vmatprep.mubr.f32.mxu0 0.0
  %1170 = vmatmul.mubr.f32.gmra.mrb[0].mxu0 %v935
  %v1171 = vpop.f32.mrb[0].mxu0
  %v1172 = vadd.f32 %v656, %v1171
  %v1173 = vpop.f32.mrb[0].mxu0
  %1174 = vmatprep.mubr.f32.mxu0 0.0
  %1175 = vmatmul.mubr.f32.gmra.mrb[0].mxu0 %v937
  %v1176 = vpop.f32.mrb[0].mxu0
  %v1177 = vadd.f32 %v661, %v1176
  %v1178 = vpop.f32.mrb[0].mxu0
  %1179 = vmatprep.mubr.f32.mxu0 0.0
  %1180 = vmatmul.mubr.f32.gmra.mrb[0].mxu0 %v939
  %v1181 = vpop.f32.mrb[0].mxu0
  %v1182 = vadd.f32 %v666, %v1181
  %v1183 = vpop.f32.mrb[0].mxu0
  %1184 = vmatprep.mubr.f32.mxu0 0.0
  %1185 = vmatmul.mubr.f32.gmra.mrb[0].mxu0 %v941
  %v1186 = vpop.f32.mrb[0].mxu0
  %v1187 = vadd.f32 %v671, %v1186
  %v1188 = vpop.f32.mrb[0].mxu0
  %1189 = vmatprep.mubr.f32.mxu0 0.0
  %1190 = vmatmul.mubr.f32.gmra.mrb[0].mxu0 %v943
  %v1191 = vpop.f32.mrb[0].mxu0
  %v1192 = vadd.f32 %v676, %v1191
  %v1193 = vpop.f32.mrb[0].mxu0
  %1194 = vmatprep.mubr.f32.mxu0 0.0
  %1195 = vmatmul.mubr.f32.gmra.mrb[0].mxu0 %v945
  %v1196 = vpop.f32.mrb[0].mxu0
  %v1197 = vadd.f32 %v681, %v1196
  %v1198 = vpop.f32.mrb[0].mxu0
  %1199 = vmatprep.mubr.f32.mxu0 0.0
  %1200 = vmatmul.mubr.f32.gmra.mrb[0].mxu0 %v947
  %v1201 = vpop.f32.mrb[0].mxu0
  %v1202 = vadd.f32 %v686, %v1201
  %v1203 = vpop.f32.mrb[0].mxu0
  %1204 = vmatprep.mubr.f32.mxu0 0.0
  %1205 = vmatmul.mubr.f32.gmra.mrb[0].mxu0 %v949
  %v1206 = vpop.f32.mrb[0].mxu0
  %v1207 = vadd.f32 %v691, %v1206
  %v1208 = vpop.f32.mrb[0].mxu0
  %1209 = vmatprep.mubr.f32.mxu0 0.0
  %1210 = vmatmul.mubr.f32.gmra.mrb[0].mxu0 %v951
  %v1211 = vpop.f32.mrb[0].mxu0
  %v1212 = vadd.f32 %v696, %v1211
  %v1213 = vpop.f32.mrb[0].mxu0
  %1214 = vmatprep.mubr.f32.mxu0 0.0
  %1215 = vmatmul.mubr.f32.gmra.mrb[0].mxu0 %v953
  %v1216 = vpop.f32.mrb[0].mxu0
  %v1217 = vadd.f32 %v701, %v1216
  %v1218 = vpop.f32.mrb[0].mxu0
  %1219 = vmatprep.mubr.f32.mxu0 0.0
  %1220 = vmatmul.mubr.f32.gmra.mrb[0].mxu0 %v955
  %v1221 = vpop.f32.mrb[0].mxu0
  %v1222 = vadd.f32 %v706, %v1221
  %v1223 = vpop.f32.mrb[0].mxu0
  %1224 = vmatprep.mubr.f32.mxu0 0.0
  %1225 = vmatmul.mubr.f32.gmra.mrb[0].mxu0 %v957
  %v1226 = vpop.f32.mrb[0].mxu0
  %v1227 = vadd.f32 %v711, %v1226
  %v1228 = vpop.f32.mrb[0].mxu0
  %1229 = vmatprep.mubr.f32.mxu0 0.0
  %1230 = vmatmul.mubr.f32.gmra.mrb[0].mxu0 %v959
  %v1231 = vpop.f32.mrb[0].mxu0
  %v1232 = vadd.f32 %v716, %v1231
  %v1233 = vpop.f32.mrb[0].mxu0
  %1234 = vmatprep.mubr.f32.mxu0 0.0
  %1235 = vmatmul.mubr.f32.gmra.mrb[0].mxu0 %v961
  %v1236 = vpop.f32.mrb[0].mxu0
  %v1237 = vadd.f32 %v721, %v1236
  %v1238 = vpop.f32.mrb[0].mxu0
  %1239 = vmatprep.mubr.f32.mxu0 0.0
  %1240 = vmatmul.mubr.f32.gmra.mrb[0].mxu0 %v963
  %v1241 = vpop.f32.mrb[0].mxu0
  %v1242 = vadd.f32 %v726, %v1241
  %v1243 = vpop.f32.mrb[0].mxu0
  %1244 = vmatprep.mubr.f32.mxu0 0.0
  %1245 = vmatmul.mubr.f32.gmra.mrb[0].mxu0 %v965
  %v1246 = vpop.f32.mrb[0].mxu0
  %v1247 = vadd.f32 %v731, %v1246
  %v1248 = vpop.f32.mrb[0].mxu0
  %1249 = vmatprep.mubr.f32.mxu0 0.0
  %1250 = vmatmul.mubr.f32.gmra.mrb[0].mxu0 %v967
  %v1251 = vpop.f32.mrb[0].mxu0
  %v1252 = vadd.f32 %v736, %v1251
  %v1253 = vpop.f32.mrb[0].mxu0
  %1254 = vmatprep.mubr.f32.mxu0 0.0
  %1255 = vmatmul.mubr.f32.gmra.mrb[0].mxu0 %v969
  %v1256 = vpop.f32.mrb[0].mxu0
  %v1257 = vadd.f32 %v741, %v1256
  %v1258 = vpop.f32.mrb[0].mxu0
  %1259 = vmatprep.mubr.f32.mxu0 0.0
  %1260 = vmatmul.mubr.f32.gmra.mrb[0].mxu0 %v971
  %v1261 = vpop.f32.mrb[0].mxu0
  %v1262 = vadd.f32 %v746, %v1261
  %v1263 = vpop.f32.mrb[0].mxu0
  %1264 = vmatprep.mubr.f32.mxu0 0.0
  %1265 = vmatmul.mubr.f32.gmra.mrb[0].mxu0 %v973
  %v1266 = vpop.f32.mrb[0].mxu0
  %v1267 = vadd.f32 %v751, %v1266
  %v1268 = vpop.f32.mrb[0].mxu0
  %1269 = vmatprep.mubr.f32.mxu0 0.0
  %1270 = vmatmul.mubr.f32.gmra.mrb[0].mxu0 %v975
  %v1271 = vpop.f32.mrb[0].mxu0
  %v1272 = vadd.f32 %v756, %v1271
  %v1273 = vpop.f32.mrb[0].mxu0
  %1274 = vmatprep.mubr.f32.mxu0 0.0
  %1275 = vmatmul.mubr.f32.gmra.mrb[0].mxu0 %v977
  %v1276 = vpop.f32.mrb[0].mxu0
  %v1277 = vadd.f32 %v761, %v1276
  %v1278 = vpop.f32.mrb[0].mxu0
  %1279 = vmatprep.mubr.f32.mxu0 0.0
  %1280 = vmatmul.mubr.f32.gmra.mrb[0].mxu0 %v979
  %v1281 = vpop.f32.mrb[0].mxu0
  %v1282 = vadd.f32 %v766, %v1281
  %v1283 = vpop.f32.mrb[0].mxu0
  %1284 = vmatprep.mubr.f32.mxu0 0.0
  %1285 = vmatmul.mubr.f32.gmra.mrb[0].mxu0 %v981
  %v1286 = vpop.f32.mrb[0].mxu0
  %v1287 = vadd.f32 %v771, %v1286
  %v1288 = vpop.f32.mrb[0].mxu0
  %1289 = vmatprep.mubr.f32.mxu0 0.0
  %1290 = vmatmul.mubr.f32.gmra.mrb[0].mxu0 %v983
  %v1291 = vpop.f32.mrb[0].mxu0
  %v1292 = vadd.f32 %v776, %v1291
  %v1293 = vpop.f32.mrb[0].mxu0
  %1294 = vmatprep.mubr.f32.mxu0 0.0
  %1295 = vmatmul.mubr.f32.gmra.mrb[0].mxu0 %v985
  %v1296 = vpop.f32.mrb[0].mxu0
  %v1297 = vadd.f32 %v781, %v1296
  %v1298 = vpop.f32.mrb[0].mxu0
  %1299 = vmatprep.mubr.f32.mxu0 0.0
  %1300 = vmatmul.mubr.f32.gmra.mrb[0].mxu0 %v987
  %v1301 = vpop.f32.mrb[0].mxu0
  %v1302 = vadd.f32 %v786, %v1301
  %v1303 = vpop.f32.mrb[0].mxu0
  %1304 = vmatprep.mubr.f32.mxu0 0.0
  %1305 = vmatmul.mubr.f32.gmra.mrb[0].mxu0 %v989
  %v1306 = vpop.f32.mrb[0].mxu0
  %v1307 = vadd.f32 %v791, %v1306
  %v1308 = vpop.f32.mrb[0].mxu0
  %1309 = vmatprep.mubr.f32.mxu0 0.0
  %1310 = vmatmul.mubr.f32.gmra.mrb[0].mxu0 %v991
  %v1311 = vpop.f32.mrb[0].mxu0
  %v1312 = vadd.f32 %v796, %v1311
  %v1313 = vpop.f32.mrb[0].mxu0
  %1314 = vmatprep.mubr.f32.mxu0 0.0
  %1315 = vmatmul.mubr.f32.gmra.mrb[0].mxu0 %v993
  %v1316 = vpop.f32.mrb[0].mxu0
  %v1317 = vadd.f32 %v801, %v1316
  %v1318 = vpop.f32.mrb[0].mxu0
  %1319 = vmatprep.mubr.f32.mxu0 0.0
  %1320 = vmatmul.mubr.f32.gmra.mrb[0].mxu0 %v995
  %v1321 = vpop.f32.mrb[0].mxu0
  %v1322 = vadd.f32 %v806, %v1321
  %v1323 = vpop.f32.mrb[0].mxu0
  %1324 = vmatprep.mubr.f32.mxu0 0.0
  %1325 = vmatmul.mubr.f32.gmra.mrb[0].mxu0 %v997
  %v1326 = vpop.f32.mrb[0].mxu0
  %v1327 = vadd.f32 %v811, %v1326
  %v1328 = vpop.f32.mrb[0].mxu0
  %1329 = vmatprep.mubr.f32.mxu0 0.0
  %1330 = vmatmul.mubr.f32.gmra.mrb[0].mxu0 %v999
  %v1331 = vpop.f32.mrb[0].mxu0
  %v1332 = vadd.f32 %v816, %v1331
  %v1333 = vpop.f32.mrb[0].mxu0
  %1334 = vmatprep.mubr.f32.mxu0 0.0
  %1335 = vmatmul.mubr.f32.gmra.mrb[0].mxu0 %v1001
  %v1336 = vpop.f32.mrb[0].mxu0
  %v1337 = vadd.f32 %v821, %v1336
  %v1338 = vpop.f32.mrb[0].mxu0
  %1339 = vmatprep.mubr.f32.mxu0 0.0
  %1340 = vmatmul.mubr.f32.gmra.mrb[0].mxu0 %v1003
  %v1341 = vpop.f32.mrb[0].mxu0
  %v1342 = vadd.f32 %v826, %v1341
  %v1343 = vpop.f32.mrb[0].mxu0
  %1344 = vmatprep.mubr.f32.mxu0 0.0
  %1345 = vmatmul.mubr.f32.gmra.mrb[0].mxu0 %v1005
  %v1346 = vpop.f32.mrb[0].mxu0
  %v1347 = vadd.f32 %v831, %v1346
  %v1348 = vpop.f32.mrb[0].mxu0
  %1349 = vmatprep.mubr.f32.mxu0 0.0
  %1350 = vmatmul.mubr.f32.gmra.mrb[0].mxu0 %v1007
  %v1351 = vpop.f32.mrb[0].mxu0
  %v1352 = vadd.f32 %v836, %v1351
  %v1353 = vpop.f32.mrb[0].mxu0
  %1354 = vmatprep.mubr.f32.mxu0 0.0
  %1355 = vmatmul.mubr.f32.gmra.mrb[0].mxu0 %v1009
  %v1356 = vpop.f32.mrb[0].mxu0
  %v1357 = vadd.f32 %v841, %v1356
  %v1358 = vpop.f32.mrb[0].mxu0
  %1359 = vmatprep.mubr.f32.mxu0 0.0
  %1360 = vmatmul.mubr.f32.gmra.mrb[0].mxu0 %v1011
  %v1361 = vpop.f32.mrb[0].mxu0
  %v1362 = vadd.f32 %v846, %v1361
  %v1363 = vpop.f32.mrb[0].mxu0
  %1364 = vmatprep.mubr.f32.mxu0 0.0
  %1365 = vmatmul.mubr.f32.gmra.mrb[0].mxu0 %v1013
  %v1366 = vpop.f32.mrb[0].mxu0
  %v1367 = vadd.f32 %v851, %v1366
  %v1368 = vpop.f32.mrb[0].mxu0
  %1369 = vmatprep.mubr.f32.mxu0 0.0
  %1370 = vmatmul.mubr.f32.gmra.mrb[0].mxu0 %v1015
  %v1371 = vpop.f32.mrb[0].mxu0
  %v1372 = vadd.f32 %v856, %v1371
  %v1373 = vpop.f32.mrb[0].mxu0
  %1374 = vmatprep.mubr.f32.mxu0 0.0
  %1375 = vmatmul.mubr.f32.gmra.mrb[0].mxu0 %v1017
  %v1376 = vpop.f32.mrb[0].mxu0
  %v1377 = vadd.f32 %v861, %v1376
  %v1378 = vpop.f32.mrb[0].mxu0
  %1379 = vmatprep.mubr.f32.mxu0 0.0
  %1380 = vmatmul.mubr.f32.gmra.mrb[0].mxu0 %v1019
  %v1381 = vpop.f32.mrb[0].mxu0
  %v1382 = vadd.f32 %v866, %v1381
  %v1383 = vpop.f32.mrb[0].mxu0
  %1384 = vmatprep.mubr.f32.mxu0 0.0
  %1385 = vmatmul.mubr.f32.gmra.mrb[0].mxu0 %v1021
  %v1386 = vpop.f32.mrb[0].mxu0
  %v1387 = vadd.f32 %v871, %v1386
  %v1388 = vpop.f32.mrb[0].mxu0
  %1389 = vmatprep.mubr.f32.mxu0 0.0
  %1390 = vmatmul.mubr.f32.gmra.mrb[0].mxu0 %v1023
  %v1391 = vpop.f32.mrb[0].mxu0
  %v1392 = vadd.f32 %v876, %v1391
  %v1393 = vpop.f32.mrb[0].mxu0
  %1394 = vmatprep.mubr.f32.mxu0 0.0
  %1395 = vmatmul.mubr.f32.gmra.mrb[0].mxu0 %v1025
  %v1396 = vpop.f32.mrb[0].mxu0
  %v1397 = vadd.f32 %v881, %v1396
  %v1398 = vpop.f32.mrb[0].mxu0
  %1399 = vmatprep.mubr.f32.mxu0 0.0
  %1400 = vmatmul.mubr.f32.gmra.mrb[0].mxu0 %v1027
  %v1401 = vpop.f32.mrb[0].mxu0
  %v1402 = vadd.f32 %v886, %v1401
  %v1403 = vpop.f32.mrb[0].mxu0
  %1404 = vmatprep.mubr.f32.mxu0 0.0
  %1405 = vmatmul.mubr.f32.gmra.mrb[0].mxu0 %v1029
  %v1406 = vpop.f32.mrb[0].mxu0
  %v1407 = vadd.f32 %v891, %v1406
  %v1408 = vpop.f32.mrb[0].mxu0
  %1409 = vmatprep.mubr.f32.mxu0 0.0
  %1410 = vmatmul.mubr.f32.gmra.mrb[0].mxu0 %v1031
  %v1411 = vpop.f32.mrb[0].mxu0
  %v1412 = vadd.f32 %v896, %v1411
  %v1413 = vpop.f32.mrb[0].mxu0
  %1414 = vmatprep.mubr.f32.mxu0 0.0
  %1415 = vmatmul.mubr.f32.gmra.mrb[0].mxu0 %v1033
  %v1416 = vpop.f32.mrb[0].mxu0
  %v1417 = vadd.f32 %v901, %v1416
  %v1418 = vpop.f32.mrb[0].mxu0
  %1419 = vmatprep.mubr.f32.mxu0 0.0
  %1420 = vmatmul.mubr.f32.gmra.mrb[0].mxu0 %v1035
  %v1421 = vpop.f32.mrb[0].mxu0
  %v1422 = vadd.f32 %v906, %v1421
  %v1423 = vpop.f32.mrb[0].mxu0
  %1424 = vdwg.mxu0
  %vm1425 = vcmask 1045504
  %v1426 = vrot.slane %v23, 2
  %v1427 = vrot.slane %v24, 2
  %v1428 = vsel %vm1425, %v1426, %v1427
  %v1429 = vrot.slane %v25, 2
  %v1430 = vsel %vm1425, %v1427, %v1429
  %v1431 = vrot.slane %v26, 2
  %v1432 = vrot.slane %v27, 2
  %v1433 = vsel %vm1425, %v1431, %v1432
  %v1434 = vrot.slane %v28, 2
  %v1435 = vsel %vm1425, %v1432, %v1434
  %v1436 = vrot.slane %v29, 2
  %v1437 = vrot.slane %v30, 2
  %v1438 = vsel %vm1425, %v1436, %v1437
  %v1439 = vrot.slane %v31, 2
  %v1440 = vsel %vm1425, %v1437, %v1439
  %v1441 = vrot.slane %v32, 2
  %v1442 = vrot.slane %v33, 2
  %v1443 = vsel %vm1425, %v1441, %v1442
  %v1444 = vrot.slane %v34, 2
  %v1445 = vsel %vm1425, %v1442, %v1444
  %v1446 = vrot.slane %v35, 2
  %v1447 = vrot.slane %v36, 2
  %v1448 = vsel %vm1425, %v1446, %v1447
  %v1449 = vrot.slane %v37, 2
  %v1450 = vsel %vm1425, %v1447, %v1449
  %v1451 = vrot.slane %v38, 2
  %v1452 = vrot.slane %v39, 2
  %v1453 = vsel %vm1425, %v1451, %v1452
  %v1454 = vrot.slane %v40, 2
  %v1455 = vsel %vm1425, %v1452, %v1454
  %v1456 = vrot.slane %v41, 2
  %v1457 = vrot.slane %v42, 2
  %v1458 = vsel %vm1425, %v1456, %v1457
  %v1459 = vrot.slane %v43, 2
  %v1460 = vsel %vm1425, %v1457, %v1459
  %v1461 = vrot.slane %v44, 2
  %v1462 = vrot.slane %v45, 2
  %v1463 = vsel %vm1425, %v1461, %v1462
  %v1464 = vrot.slane %v46, 2
  %v1465 = vsel %vm1425, %v1462, %v1464
  %v1466 = vrot.slane %v47, 2
  %v1467 = vrot.slane %v48, 2
  %v1468 = vsel %vm1425, %v1466, %v1467
  %v1469 = vrot.slane %v49, 2
  %v1470 = vsel %vm1425, %v1467, %v1469
  %v1471 = vrot.slane %v50, 2
  %v1472 = vrot.slane %v51, 2
  %v1473 = vsel %vm1425, %v1471, %v1472
  %v1474 = vrot.slane %v52, 2
  %v1475 = vsel %vm1425, %v1472, %v1474
  %v1476 = vrot.slane %v53, 2
  %v1477 = vrot.slane %v54, 2
  %v1478 = vsel %vm1425, %v1476, %v1477
  %v1479 = vrot.slane %v55, 2
  %v1480 = vsel %vm1425, %v1477, %v1479
  %v1481 = vrot.slane %v56, 2
  %v1482 = vrot.slane %v57, 2
  %v1483 = vsel %vm1425, %v1481, %v1482
  %v1484 = vrot.slane %v58, 2
  %v1485 = vsel %vm1425, %v1482, %v1484
  %v1486 = vrot.slane %v59, 2
  %v1487 = vrot.slane %v60, 2
  %v1488 = vsel %vm1425, %v1486, %v1487
  %v1489 = vrot.slane %v61, 2
  %v1490 = vsel %vm1425, %v1487, %v1489
  %v1491 = vrot.slane %v62, 2
  %v1492 = vrot.slane %v63, 2
  %v1493 = vsel %vm1425, %v1491, %v1492
  %v1494 = vrot.slane %v64, 2
  %v1495 = vsel %vm1425, %v1492, %v1494
  %v1496 = vrot.slane %v65, 2
  %v1497 = vrot.slane %v66, 2
  %v1498 = vsel %vm1425, %v1496, %v1497
  %v1499 = vrot.slane %v67, 2
  %v1500 = vsel %vm1425, %v1497, %v1499
  %v1501 = vrot.slane %v68, 2
  %v1502 = vrot.slane %v69, 2
  %v1503 = vsel %vm1425, %v1501, %v1502
  %v1504 = vrot.slane %v70, 2
  %v1505 = vsel %vm1425, %v1502, %v1504
  %v1506 = vrot.slane %v77, 2
  %v1507 = vrot.slane %v78, 2
  %v1508 = vsel %vm1425, %v1506, %v1507
  %v1509 = vrot.slane %v79, 2
  %v1510 = vsel %vm1425, %v1507, %v1509
  %v1511 = vrot.slane %v80, 2
  %v1512 = vrot.slane %v81, 2
  %v1513 = vsel %vm1425, %v1511, %v1512
  %v1514 = vrot.slane %v82, 2
  %v1515 = vsel %vm1425, %v1512, %v1514
  %v1516 = vrot.slane %v83, 2
  %v1517 = vrot.slane %v84, 2
  %v1518 = vsel %vm1425, %v1516, %v1517
  %v1519 = vrot.slane %v85, 2
  %v1520 = vsel %vm1425, %v1517, %v1519
  %v1521 = vrot.slane %v86, 2
  %v1522 = vrot.slane %v87, 2
  %v1523 = vsel %vm1425, %v1521, %v1522
  %v1524 = vrot.slane %v88, 2
  %v1525 = vsel %vm1425, %v1522, %v1524
  %v1526 = vrot.slane %v89, 2
  %v1527 = vrot.slane %v90, 2
  %v1528 = vsel %vm1425, %v1526, %v1527
  %v1529 = vrot.slane %v91, 2
  %v1530 = vsel %vm1425, %v1527, %v1529
  %v1531 = vrot.slane %v92, 2
  %v1532 = vrot.slane %v93, 2
  %v1533 = vsel %vm1425, %v1531, %v1532
  %v1534 = vrot.slane %v94, 2
  %v1535 = vsel %vm1425, %v1532, %v1534
  %v1536 = vrot.slane %v95, 2
  %v1537 = vrot.slane %v96, 2
  %v1538 = vsel %vm1425, %v1536, %v1537
  %v1539 = vrot.slane %v97, 2
  %v1540 = vsel %vm1425, %v1537, %v1539
  %v1541 = vrot.slane %v98, 2
  %v1542 = vrot.slane %v99, 2
  %v1543 = vsel %vm1425, %v1541, %v1542
  %v1544 = vrot.slane %v100, 2
  %v1545 = vsel %vm1425, %v1542, %v1544
  %v1546 = vrot.slane %v101, 2
  %v1547 = vrot.slane %v102, 2
  %v1548 = vsel %vm1425, %v1546, %v1547
  %v1549 = vrot.slane %v103, 2
  %v1550 = vsel %vm1425, %v1547, %v1549
  %v1551 = vrot.slane %v104, 2
  %v1552 = vrot.slane %v105, 2
  %v1553 = vsel %vm1425, %v1551, %v1552
  %v1554 = vrot.slane %v106, 2
  %v1555 = vsel %vm1425, %v1552, %v1554
  %v1556 = vrot.slane %v107, 2
  %v1557 = vrot.slane %v108, 2
  %v1558 = vsel %vm1425, %v1556, %v1557
  %v1559 = vrot.slane %v109, 2
  %v1560 = vsel %vm1425, %v1557, %v1559
  %v1561 = vrot.slane %v110, 2
  %v1562 = vrot.slane %v111, 2
  %v1563 = vsel %vm1425, %v1561, %v1562
  %v1564 = vrot.slane %v112, 2
  %v1565 = vsel %vm1425, %v1562, %v1564
  %v1566 = vrot.slane %v113, 2
  %v1567 = vrot.slane %v114, 2
  %v1568 = vsel %vm1425, %v1566, %v1567
  %v1569 = vrot.slane %v115, 2
  %v1570 = vsel %vm1425, %v1567, %v1569
  %v1571 = vrot.slane %v116, 2
  %v1572 = vrot.slane %v117, 2
  %v1573 = vsel %vm1425, %v1571, %v1572
  %v1574 = vrot.slane %v118, 2
  %v1575 = vsel %vm1425, %v1572, %v1574
  %v1576 = vrot.slane %v119, 2
  %v1577 = vrot.slane %v120, 2
  %v1578 = vsel %vm1425, %v1576, %v1577
  %v1579 = vrot.slane %v121, 2
  %v1580 = vsel %vm1425, %v1577, %v1579
  %v1581 = vrot.slane %v122, 2
  %v1582 = vrot.slane %v123, 2
  %v1583 = vsel %vm1425, %v1581, %v1582
  %v1584 = vrot.slane %v124, 2
  %v1585 = vsel %vm1425, %v1582, %v1584
  %s1586 = scalar_lea.vmem %s1, 8
  %v1587 = vld [vmem:[%s1586] sm:$0xf]
  %v1588 = vsel %vm391, %v1428, 0
  %v1590 = vsel %vm391, %v1430, 0
  %v1592 = vsel %vm391, %v1433, 0
  %v1594 = vsel %vm391, %v1435, 0
  %v1596 = vsel %vm391, %v1438, 0
  %v1598 = vsel %vm391, %v1440, 0
  %v1600 = vsel %vm391, %v1443, 0
  %v1602 = vsel %vm391, %v1445, 0
  %v1604 = vsel %vm391, %v1448, 0
  %v1606 = vsel %vm391, %v1450, 0
  %v1608 = vsel %vm391, %v1453, 0
  %v1610 = vsel %vm391, %v1455, 0
  %v1612 = vsel %vm391, %v1458, 0
  %v1614 = vsel %vm391, %v1460, 0
  %v1616 = vsel %vm391, %v1463, 0
  %v1618 = vsel %vm391, %v1465, 0
  %v1620 = vsel %vm391, %v1468, 0
  %v1622 = vsel %vm391, %v1470, 0
  %v1624 = vsel %vm391, %v1473, 0
  %v1626 = vsel %vm391, %v1475, 0
  %v1628 = vsel %vm391, %v1478, 0
  %v1630 = vsel %vm391, %v1480, 0
  %v1632 = vsel %vm391, %v1483, 0
  %v1634 = vsel %vm391, %v1485, 0
  %v1636 = vsel %vm391, %v1488, 0
  %v1638 = vsel %vm391, %v1490, 0
  %v1640 = vsel %vm391, %v1493, 0
  %v1642 = vsel %vm391, %v1495, 0
  %v1644 = vsel %vm391, %v1498, 0
  %v1646 = vsel %vm391, %v1500, 0
  %v1648 = vsel %vm391, %v1503, 0
  %v1650 = vsel %vm391, %v1505, 0
  %v1652 = vsel %vm391, %v1508, 0
  %v1654 = vsel %vm391, %v1510, 0
  %v1656 = vsel %vm391, %v1513, 0
  %v1658 = vsel %vm391, %v1515, 0
  %v1660 = vsel %vm391, %v1518, 0
  %v1662 = vsel %vm391, %v1520, 0
  %v1664 = vsel %vm391, %v1523, 0
  %v1666 = vsel %vm391, %v1525, 0
  %v1668 = vsel %vm391, %v1528, 0
  %v1670 = vsel %vm391, %v1530, 0
  %v1672 = vsel %vm391, %v1533, 0
  %v1674 = vsel %vm391, %v1535, 0
  %v1676 = vsel %vm391, %v1538, 0
  %v1678 = vsel %vm391, %v1540, 0
  %v1680 = vsel %vm391, %v1543, 0
  %v1682 = vsel %vm391, %v1545, 0
  %v1684 = vsel %vm391, %v1548, 0
  %v1686 = vsel %vm391, %v1550, 0
  %v1688 = vsel %vm391, %v1553, 0
  %v1690 = vsel %vm391, %v1555, 0
  %v1692 = vsel %vm391, %v1558, 0
  %v1694 = vsel %vm391, %v1560, 0
  %v1696 = vsel %vm391, %v1563, 0
  %v1698 = vsel %vm391, %v1565, 0
  %v1700 = vsel %vm391, %v1568, 0
  %v1702 = vsel %vm391, %v1570, 0
  %v1704 = vsel %vm391, %v1573, 0
  %v1706 = vsel %vm391, %v1575, 0
  %v1708 = vsel %vm391, %v1578, 0
  %v1710 = vsel %vm391, %v1580, 0
  %v1712 = vsel %vm391, %v1583, 0
  %v1714 = vsel %vm391, %v1585, 0
  %v1717 = vsel %vm520, %v1587, 0
  %1719 = vmatprep.subr.mxu0 0.0
  %1720 = vmatpush1.msra.mxu0 %v1717
  %1721 = vmatprep.subr.mxu0 0.0
  %1722 = vmatpush1.msra.mxu0 0.0
  %1723 = vmatprep.subr.mxu0 0.0
  %1724 = vmatpush1.msra.mxu0 0.0
  %1725 = vmatprep.subr.mxu0 0.0
  %1726 = vmatpush1.msra.mxu0 0.0
  %1727 = vmatprep.subr.mxu0 0.0
  %1728 = vmatpush1.msra.mxu0 0.0
  %1729 = vmatprep.subr.mxu0 0.0
  %1730 = vmatpush1.msra.mxu0 0.0
  %1731 = vmatprep.subr.mxu0 0.0
  %1732 = vmatpush1.msra.mxu0 0.0
  %1733 = vmatprep.subr.mxu0 0.0
  %1734 = vmatpush1.msra.mxu0 0.0
  %1735 = vmatprep.subr.mxu0 0.0
  %1736 = vmatpush1.msra.mxu0 0.0
  %1737 = vmatprep.subr.mxu0 0.0
  %1738 = vmatpush1.msra.mxu0 0.0
  %1739 = vmatprep.subr.mxu0 0.0
  %1740 = vmatpush1.msra.mxu0 0.0
  %1741 = vmatprep.subr.mxu0 0.0
  %1742 = vmatpush1.msra.mxu0 0.0
  %1743 = vmatprep.subr.mxu0 0.0
  %1744 = vmatpush1.msra.mxu0 0.0
  %1745 = vmatprep.subr.mxu0 0.0
  %1746 = vmatpush1.msra.mxu0 0.0
  %1747 = vmatprep.subr.mxu0 0.0
  %1748 = vmatpush1.msra.mxu0 0.0
  %1749 = vmatprep.subr.mxu0 0.0
  %1750 = vmatpush1.msra.mxu0 0.0
  %1751 = vmatprep.subr.mxu0 0.0
  %1752 = vmatpush1.msra.mxu0 0.0
  %1753 = vmatprep.subr.mxu0 0.0
  %1754 = vmatpush1.msra.mxu0 0.0
  %1755 = vmatprep.subr.mxu0 0.0
  %1756 = vmatpush1.msra.mxu0 0.0
  %1757 = vmatprep.subr.mxu0 0.0
  %1758 = vmatpush1.msra.mxu0 0.0
  %1759 = vmatprep.subr.mxu0 0.0
  %1760 = vmatpush1.msra.mxu0 0.0
  %1761 = vmatprep.subr.mxu0 0.0
  %1762 = vmatpush1.msra.mxu0 0.0
  %1763 = vmatprep.subr.mxu0 0.0
  %1764 = vmatpush1.msra.mxu0 0.0
  %1765 = vmatprep.subr.mxu0 0.0
  %1766 = vmatpush1.msra.mxu0 0.0
  %1767 = vmatprep.subr.mxu0 0.0
  %1768 = vmatpush1.msra.mxu0 0.0
  %1769 = vmatprep.subr.mxu0 0.0
  %1770 = vmatpush1.msra.mxu0 0.0
  %1771 = vmatprep.subr.mxu0 0.0
  %1772 = vmatpush1.msra.mxu0 0.0
  %1773 = vmatprep.subr.mxu0 0.0
  %1774 = vmatpush1.msra.mxu0 0.0
  %1775 = vmatprep.subr.mxu0 0.0
  %1776 = vmatpush1.msra.mxu0 0.0
  %1777 = vmatprep.subr.mxu0 0.0
  %1778 = vmatpush1.msra.mxu0 0.0
  %1779 = vmatprep.subr.mxu0 0.0
  %1780 = vmatpush1.msra.mxu0 0.0
  %1781 = vmatprep.subr.mxu0 0.0
  %1782 = vmatpush1.msra.mxu0 0.0
  %1783 = vmatprep.mubr.f32.mxu0 0.0
  %1784 = vmatmul.mubr.f32.gmra.mrb[0].mxu0 %v1588
  %v1785 = vpop.f32.mrb[0].mxu0
  %v1786 = vadd.f32 0.0, %v1785
  %v1787 = vpop.f32.mrb[0].mxu0
  %1788 = vmatprep.mubr.f32.mxu0 0.0
  %1789 = vmatmul.mubr.f32.gmra.mrb[0].mxu0 %v1590
  %v1790 = vpop.f32.mrb[0].mxu0
  %v1791 = vadd.f32 0.0, %v1790
  %v1792 = vpop.f32.mrb[0].mxu0
  %1793 = vmatprep.mubr.f32.mxu0 0.0
  %1794 = vmatmul.mubr.f32.gmra.mrb[0].mxu0 %v1592
  %v1795 = vpop.f32.mrb[0].mxu0
  %v1796 = vadd.f32 0.0, %v1795
  %v1797 = vpop.f32.mrb[0].mxu0
  %1798 = vmatprep.mubr.f32.mxu0 0.0
  %1799 = vmatmul.mubr.f32.gmra.mrb[0].mxu0 %v1594
  %v1800 = vpop.f32.mrb[0].mxu0
  %v1801 = vadd.f32 0.0, %v1800
  %v1802 = vpop.f32.mrb[0].mxu0
  %1803 = vmatprep.mubr.f32.mxu0 0.0
  %1804 = vmatmul.mubr.f32.gmra.mrb[0].mxu0 %v1596
  %v1805 = vpop.f32.mrb[0].mxu0
  %v1806 = vadd.f32 0.0, %v1805
  %v1807 = vpop.f32.mrb[0].mxu0
  %1808 = vmatprep.mubr.f32.mxu0 0.0
  %1809 = vmatmul.mubr.f32.gmra.mrb[0].mxu0 %v1598
  %v1810 = vpop.f32.mrb[0].mxu0
  %v1811 = vadd.f32 0.0, %v1810
  %v1812 = vpop.f32.mrb[0].mxu0
  %1813 = vmatprep.mubr.f32.mxu0 0.0
  %1814 = vmatmul.mubr.f32.gmra.mrb[0].mxu0 %v1600
  %v1815 = vpop.f32.mrb[0].mxu0
  %v1816 = vadd.f32 0.0, %v1815
  %v1817 = vpop.f32.mrb[0].mxu0
  %1818 = vmatprep.mubr.f32.mxu0 0.0
  %1819 = vmatmul.mubr.f32.gmra.mrb[0].mxu0 %v1602
  %v1820 = vpop.f32.mrb[0].mxu0
  %v1821 = vadd.f32 0.0, %v1820
  %v1822 = vpop.f32.mrb[0].mxu0
  %1823 = vmatprep.mubr.f32.mxu0 0.0
  %1824 = vmatmul.mubr.f32.gmra.mrb[0].mxu0 %v1604
  %v1825 = vpop.f32.mrb[0].mxu0
  %v1826 = vadd.f32 0.0, %v1825
  %v1827 = vpop.f32.mrb[0].mxu0
  %1828 = vmatprep.mubr.f32.mxu0 0.0
  %1829 = vmatmul.mubr.f32.gmra.mrb[0].mxu0 %v1606
  %v1830 = vpop.f32.mrb[0].mxu0
  %v1831 = vadd.f32 0.0, %v1830
  %v1832 = vpop.f32.mrb[0].mxu0
  %1833 = vmatprep.mubr.f32.mxu0 0.0
  %1834 = vmatmul.mubr.f32.gmra.mrb[0].mxu0 %v1608
  %v1835 = vpop.f32.mrb[0].mxu0
  %v1836 = vadd.f32 0.0, %v1835
  %v1837 = vpop.f32.mrb[0].mxu0
  %1838 = vmatprep.mubr.f32.mxu0 0.0
  %1839 = vmatmul.mubr.f32.gmra.mrb[0].mxu0 %v1610
  %v1840 = vpop.f32.mrb[0].mxu0
  %v1841 = vadd.f32 0.0, %v1840
  %v1842 = vpop.f32.mrb[0].mxu0
  %1843 = vmatprep.mubr.f32.mxu0 0.0
  %1844 = vmatmul.mubr.f32.gmra.mrb[0].mxu0 %v1612
  %v1845 = vpop.f32.mrb[0].mxu0
  %v1846 = vadd.f32 0.0, %v1845
  %v1847 = vpop.f32.mrb[0].mxu0
  %1848 = vmatprep.mubr.f32.mxu0 0.0
  %1849 = vmatmul.mubr.f32.gmra.mrb[0].mxu0 %v1614
  %v1850 = vpop.f32.mrb[0].mxu0
  %v1851 = vadd.f32 0.0, %v1850
  %v1852 = vpop.f32.mrb[0].mxu0
  %1853 = vmatprep.mubr.f32.mxu0 0.0
  %1854 = vmatmul.mubr.f32.gmra.mrb[0].mxu0 %v1616
  %v1855 = vpop.f32.mrb[0].mxu0
  %v1856 = vadd.f32 0.0, %v1855
  %v1857 = vpop.f32.mrb[0].mxu0
  %1858 = vmatprep.mubr.f32.mxu0 0.0
  %1859 = vmatmul.mubr.f32.gmra.mrb[0].mxu0 %v1618
  %v1860 = vpop.f32.mrb[0].mxu0
  %v1861 = vadd.f32 0.0, %v1860
  %v1862 = vpop.f32.mrb[0].mxu0
  %1863 = vmatprep.mubr.f32.mxu0 0.0
  %1864 = vmatmul.mubr.f32.gmra.mrb[0].mxu0 %v1620
  %v1865 = vpop.f32.mrb[0].mxu0
  %v1866 = vadd.f32 0.0, %v1865
  %v1867 = vpop.f32.mrb[0].mxu0
  %1868 = vmatprep.mubr.f32.mxu0 0.0
  %1869 = vmatmul.mubr.f32.gmra.mrb[0].mxu0 %v1622
  %v1870 = vpop.f32.mrb[0].mxu0
  %v1871 = vadd.f32 0.0, %v1870
  %v1872 = vpop.f32.mrb[0].mxu0
  %1873 = vmatprep.mubr.f32.mxu0 0.0
  %1874 = vmatmul.mubr.f32.gmra.mrb[0].mxu0 %v1624
  %v1875 = vpop.f32.mrb[0].mxu0
  %v1876 = vadd.f32 0.0, %v1875
  %v1877 = vpop.f32.mrb[0].mxu0
  %1878 = vmatprep.mubr.f32.mxu0 0.0
  %1879 = vmatmul.mubr.f32.gmra.mrb[0].mxu0 %v1626
  %v1880 = vpop.f32.mrb[0].mxu0
  %v1881 = vadd.f32 0.0, %v1880
  %v1882 = vpop.f32.mrb[0].mxu0
  %1883 = vmatprep.mubr.f32.mxu0 0.0
  %1884 = vmatmul.mubr.f32.gmra.mrb[0].mxu0 %v1628
  %v1885 = vpop.f32.mrb[0].mxu0
  %v1886 = vadd.f32 0.0, %v1885
  %v1887 = vpop.f32.mrb[0].mxu0
  %1888 = vmatprep.mubr.f32.mxu0 0.0
  %1889 = vmatmul.mubr.f32.gmra.mrb[0].mxu0 %v1630
  %v1890 = vpop.f32.mrb[0].mxu0
  %v1891 = vadd.f32 0.0, %v1890
  %v1892 = vpop.f32.mrb[0].mxu0
  %1893 = vmatprep.mubr.f32.mxu0 0.0
  %1894 = vmatmul.mubr.f32.gmra.mrb[0].mxu0 %v1632
  %v1895 = vpop.f32.mrb[0].mxu0
  %v1896 = vadd.f32 0.0, %v1895
  %v1897 = vpop.f32.mrb[0].mxu0
  %1898 = vmatprep.mubr.f32.mxu0 0.0
  %1899 = vmatmul.mubr.f32.gmra.mrb[0].mxu0 %v1634
  %v1900 = vpop.f32.mrb[0].mxu0
  %v1901 = vadd.f32 0.0, %v1900
  %v1902 = vpop.f32.mrb[0].mxu0
  %1903 = vmatprep.mubr.f32.mxu0 0.0
  %1904 = vmatmul.mubr.f32.gmra.mrb[0].mxu0 %v1636
  %v1905 = vpop.f32.mrb[0].mxu0
  %v1906 = vadd.f32 0.0, %v1905
  %v1907 = vpop.f32.mrb[0].mxu0
  %1908 = vmatprep.mubr.f32.mxu0 0.0
  %1909 = vmatmul.mubr.f32.gmra.mrb[0].mxu0 %v1638
  %v1910 = vpop.f32.mrb[0].mxu0
  %v1911 = vadd.f32 0.0, %v1910
  %v1912 = vpop.f32.mrb[0].mxu0
  %1913 = vmatprep.mubr.f32.mxu0 0.0
  %1914 = vmatmul.mubr.f32.gmra.mrb[0].mxu0 %v1640
  %v1915 = vpop.f32.mrb[0].mxu0
  %v1916 = vadd.f32 0.0, %v1915
  %v1917 = vpop.f32.mrb[0].mxu0
  %1918 = vmatprep.mubr.f32.mxu0 0.0
  %1919 = vmatmul.mubr.f32.gmra.mrb[0].mxu0 %v1642
  %v1920 = vpop.f32.mrb[0].mxu0
  %v1921 = vadd.f32 0.0, %v1920
  %v1922 = vpop.f32.mrb[0].mxu0
  %1923 = vmatprep.mubr.f32.mxu0 0.0
  %1924 = vmatmul.mubr.f32.gmra.mrb[0].mxu0 %v1644
  %v1925 = vpop.f32.mrb[0].mxu0
  %v1926 = vadd.f32 0.0, %v1925
  %v1927 = vpop.f32.mrb[0].mxu0
  %1928 = vmatprep.mubr.f32.mxu0 0.0
  %1929 = vmatmul.mubr.f32.gmra.mrb[0].mxu0 %v1646
  %v1930 = vpop.f32.mrb[0].mxu0
  %v1931 = vadd.f32 0.0, %v1930
  %v1932 = vpop.f32.mrb[0].mxu0
  %1933 = vmatprep.mubr.f32.mxu0 0.0
  %1934 = vmatmul.mubr.f32.gmra.mrb[0].mxu0 %v1648
  %v1935 = vpop.f32.mrb[0].mxu0
  %v1936 = vadd.f32 0.0, %v1935
  %v1937 = vpop.f32.mrb[0].mxu0
  %1938 = vmatprep.mubr.f32.mxu0 0.0
  %1939 = vmatmul.mubr.f32.gmra.mrb[0].mxu0 %v1650
  %v1940 = vpop.f32.mrb[0].mxu0
  %v1941 = vadd.f32 0.0, %v1940
  %v1942 = vpop.f32.mrb[0].mxu0
  %1943 = vmatprep.mubr.f32.mxu0 0.0
  %1944 = vmatmul.mubr.f32.gmra.mrb[0].mxu0 %v1652
  %v1945 = vpop.f32.mrb[0].mxu0
  %v1946 = vadd.f32 0.0, %v1945
  %v1947 = vpop.f32.mrb[0].mxu0
  %1948 = vmatprep.mubr.f32.mxu0 0.0
  %1949 = vmatmul.mubr.f32.gmra.mrb[0].mxu0 %v1654
  %v1950 = vpop.f32.mrb[0].mxu0
  %v1951 = vadd.f32 0.0, %v1950
  %v1952 = vpop.f32.mrb[0].mxu0
  %1953 = vmatprep.mubr.f32.mxu0 0.0
  %1954 = vmatmul.mubr.f32.gmra.mrb[0].mxu0 %v1656
  %v1955 = vpop.f32.mrb[0].mxu0
  %v1956 = vadd.f32 0.0, %v1955
  %v1957 = vpop.f32.mrb[0].mxu0
  %1958 = vmatprep.mubr.f32.mxu0 0.0
  %1959 = vmatmul.mubr.f32.gmra.mrb[0].mxu0 %v1658
  %v1960 = vpop.f32.mrb[0].mxu0
  %v1961 = vadd.f32 0.0, %v1960
  %v1962 = vpop.f32.mrb[0].mxu0
  %1963 = vmatprep.mubr.f32.mxu0 0.0
  %1964 = vmatmul.mubr.f32.gmra.mrb[0].mxu0 %v1660
  %v1965 = vpop.f32.mrb[0].mxu0
  %v1966 = vadd.f32 0.0, %v1965
  %v1967 = vpop.f32.mrb[0].mxu0
  %1968 = vmatprep.mubr.f32.mxu0 0.0
  %1969 = vmatmul.mubr.f32.gmra.mrb[0].mxu0 %v1662
  %v1970 = vpop.f32.mrb[0].mxu0
  %v1971 = vadd.f32 0.0, %v1970
  %v1972 = vpop.f32.mrb[0].mxu0
  %1973 = vmatprep.mubr.f32.mxu0 0.0
  %1974 = vmatmul.mubr.f32.gmra.mrb[0].mxu0 %v1664
  %v1975 = vpop.f32.mrb[0].mxu0
  %v1976 = vadd.f32 0.0, %v1975
  %v1977 = vpop.f32.mrb[0].mxu0
  %1978 = vmatprep.mubr.f32.mxu0 0.0
  %1979 = vmatmul.mubr.f32.gmra.mrb[0].mxu0 %v1666
  %v1980 = vpop.f32.mrb[0].mxu0
  %v1981 = vadd.f32 0.0, %v1980
  %v1982 = vpop.f32.mrb[0].mxu0
  %1983 = vmatprep.mubr.f32.mxu0 0.0
  %1984 = vmatmul.mubr.f32.gmra.mrb[0].mxu0 %v1668
  %v1985 = vpop.f32.mrb[0].mxu0
  %v1986 = vadd.f32 0.0, %v1985
  %v1987 = vpop.f32.mrb[0].mxu0
  %1988 = vmatprep.mubr.f32.mxu0 0.0
  %1989 = vmatmul.mubr.f32.gmra.mrb[0].mxu0 %v1670
  %v1990 = vpop.f32.mrb[0].mxu0
  %v1991 = vadd.f32 0.0, %v1990
  %v1992 = vpop.f32.mrb[0].mxu0
  %1993 = vmatprep.mubr.f32.mxu0 0.0
  %1994 = vmatmul.mubr.f32.gmra.mrb[0].mxu0 %v1672
  %v1995 = vpop.f32.mrb[0].mxu0
  %v1996 = vadd.f32 0.0, %v1995
  %v1997 = vpop.f32.mrb[0].mxu0
  %1998 = vmatprep.mubr.f32.mxu0 0.0
  %1999 = vmatmul.mubr.f32.gmra.mrb[0].mxu0 %v1674
  %v2000 = vpop.f32.mrb[0].mxu0
  %v2001 = vadd.f32 0.0, %v2000
  %v2002 = vpop.f32.mrb[0].mxu0
  %2003 = vmatprep.mubr.f32.mxu0 0.0
  %2004 = vmatmul.mubr.f32.gmra.mrb[0].mxu0 %v1676
  %v2005 = vpop.f32.mrb[0].mxu0
  %v2006 = vadd.f32 0.0, %v2005
  %v2007 = vpop.f32.mrb[0].mxu0
  %2008 = vmatprep.mubr.f32.mxu0 0.0
  %2009 = vmatmul.mubr.f32.gmra.mrb[0].mxu0 %v1678
  %v2010 = vpop.f32.mrb[0].mxu0
  %v2011 = vadd.f32 0.0, %v2010
  %v2012 = vpop.f32.mrb[0].mxu0
  %2013 = vmatprep.mubr.f32.mxu0 0.0
  %2014 = vmatmul.mubr.f32.gmra.mrb[0].mxu0 %v1680
  %v2015 = vpop.f32.mrb[0].mxu0
  %v2016 = vadd.f32 0.0, %v2015
  %v2017 = vpop.f32.mrb[0].mxu0
  %2018 = vmatprep.mubr.f32.mxu0 0.0
  %2019 = vmatmul.mubr.f32.gmra.mrb[0].mxu0 %v1682
  %v2020 = vpop.f32.mrb[0].mxu0
  %v2021 = vadd.f32 0.0, %v2020
  %v2022 = vpop.f32.mrb[0].mxu0
  %2023 = vmatprep.mubr.f32.mxu0 0.0
  %2024 = vmatmul.mubr.f32.gmra.mrb[0].mxu0 %v1684
  %v2025 = vpop.f32.mrb[0].mxu0
  %v2026 = vadd.f32 0.0, %v2025
  %v2027 = vpop.f32.mrb[0].mxu0
  %2028 = vmatprep.mubr.f32.mxu0 0.0
  %2029 = vmatmul.mubr.f32.gmra.mrb[0].mxu0 %v1686
  %v2030 = vpop.f32.mrb[0].mxu0
  %v2031 = vadd.f32 0.0, %v2030
  %v2032 = vpop.f32.mrb[0].mxu0
  %2033 = vmatprep.mubr.f32.mxu0 0.0
  %2034 = vmatmul.mubr.f32.gmra.mrb[0].mxu0 %v1688
  %v2035 = vpop.f32.mrb[0].mxu0
  %v2036 = vadd.f32 0.0, %v2035
  %v2037 = vpop.f32.mrb[0].mxu0
  %2038 = vmatprep.mubr.f32.mxu0 0.0
  %2039 = vmatmul.mubr.f32.gmra.mrb[0].mxu0 %v1690
  %v2040 = vpop.f32.mrb[0].mxu0
  %v2041 = vadd.f32 0.0, %v2040
  %v2042 = vpop.f32.mrb[0].mxu0
  %2043 = vmatprep.mubr.f32.mxu0 0.0
  %2044 = vmatmul.mubr.f32.gmra.mrb[0].mxu0 %v1692
  %v2045 = vpop.f32.mrb[0].mxu0
  %v2046 = vadd.f32 0.0, %v2045
  %v2047 = vpop.f32.mrb[0].mxu0
  %2048 = vmatprep.mubr.f32.mxu0 0.0
  %2049 = vmatmul.mubr.f32.gmra.mrb[0].mxu0 %v1694
  %v2050 = vpop.f32.mrb[0].mxu0
  %v2051 = vadd.f32 0.0, %v2050
  %v2052 = vpop.f32.mrb[0].mxu0
  %2053 = vmatprep.mubr.f32.mxu0 0.0
  %2054 = vmatmul.mubr.f32.gmra.mrb[0].mxu0 %v1696
  %v2055 = vpop.f32.mrb[0].mxu0
  %v2056 = vadd.f32 0.0, %v2055
  %v2057 = vpop.f32.mrb[0].mxu0
  %2058 = vmatprep.mubr.f32.mxu0 0.0
  %2059 = vmatmul.mubr.f32.gmra.mrb[0].mxu0 %v1698
  %v2060 = vpop.f32.mrb[0].mxu0
  %v2061 = vadd.f32 0.0, %v2060
  %v2062 = vpop.f32.mrb[0].mxu0
  %2063 = vmatprep.mubr.f32.mxu0 0.0
  %2064 = vmatmul.mubr.f32.gmra.mrb[0].mxu0 %v1700
  %v2065 = vpop.f32.mrb[0].mxu0
  %v2066 = vadd.f32 0.0, %v2065
  %v2067 = vpop.f32.mrb[0].mxu0
  %2068 = vmatprep.mubr.f32.mxu0 0.0
  %2069 = vmatmul.mubr.f32.gmra.mrb[0].mxu0 %v1702
  %v2070 = vpop.f32.mrb[0].mxu0
  %v2071 = vadd.f32 0.0, %v2070
  %v2072 = vpop.f32.mrb[0].mxu0
  %2073 = vmatprep.mubr.f32.mxu0 0.0
  %2074 = vmatmul.mubr.f32.gmra.mrb[0].mxu0 %v1704
  %v2075 = vpop.f32.mrb[0].mxu0
  %v2076 = vadd.f32 0.0, %v2075
  %v2077 = vpop.f32.mrb[0].mxu0
  %2078 = vmatprep.mubr.f32.mxu0 0.0
  %2079 = vmatmul.mubr.f32.gmra.mrb[0].mxu0 %v1706
  %v2080 = vpop.f32.mrb[0].mxu0
  %v2081 = vadd.f32 0.0, %v2080
  %v2082 = vpop.f32.mrb[0].mxu0
  %2083 = vmatprep.mubr.f32.mxu0 0.0
  %2084 = vmatmul.mubr.f32.gmra.mrb[0].mxu0 %v1708
  %v2085 = vpop.f32.mrb[0].mxu0
  %v2086 = vadd.f32 0.0, %v2085
  %v2087 = vpop.f32.mrb[0].mxu0
  %2088 = vmatprep.mubr.f32.mxu0 0.0
  %2089 = vmatmul.mubr.f32.gmra.mrb[0].mxu0 %v1710
  %v2090 = vpop.f32.mrb[0].mxu0
  %v2091 = vadd.f32 0.0, %v2090
  %v2092 = vpop.f32.mrb[0].mxu0
  %2093 = vmatprep.mubr.f32.mxu0 0.0
  %2094 = vmatmul.mubr.f32.gmra.mrb[0].mxu0 %v1712
  %v2095 = vpop.f32.mrb[0].mxu0
  %v2096 = vadd.f32 0.0, %v2095
  %v2097 = vpop.f32.mrb[0].mxu0
  %2098 = vmatprep.mubr.f32.mxu0 0.0
  %2099 = vmatmul.mubr.f32.gmra.mrb[0].mxu0 %v1714
  %v2100 = vpop.f32.mrb[0].mxu0
  %v2101 = vadd.f32 0.0, %v2100
  %v2102 = vpop.f32.mrb[0].mxu0
  %2103 = vdwg.mxu0
  %v2104 = vadd.f32 %v1107, %v1786
  %v2105 = vadd.f32 %v1112, %v1791
  %v2106 = vadd.f32 %v1117, %v1796
  %v2107 = vadd.f32 %v1122, %v1801
  %v2108 = vadd.f32 %v1127, %v1806
  %v2109 = vadd.f32 %v1132, %v1811
  %v2110 = vadd.f32 %v1137, %v1816
  %v2111 = vadd.f32 %v1142, %v1821
  %v2112 = vadd.f32 %v1147, %v1826
  %v2113 = vadd.f32 %v1152, %v1831
  %v2114 = vadd.f32 %v1157, %v1836
  %v2115 = vadd.f32 %v1162, %v1841
  %v2116 = vadd.f32 %v1167, %v1846
  %v2117 = vadd.f32 %v1172, %v1851
  %v2118 = vadd.f32 %v1177, %v1856
  %v2119 = vadd.f32 %v1182, %v1861
  %v2120 = vadd.f32 %v1187, %v1866
  %v2121 = vadd.f32 %v1192, %v1871
  %v2122 = vadd.f32 %v1197, %v1876
  %v2123 = vadd.f32 %v1202, %v1881
  %v2124 = vadd.f32 %v1207, %v1886
  %v2125 = vadd.f32 %v1212, %v1891
  %v2126 = vadd.f32 %v1217, %v1896
  %v2127 = vadd.f32 %v1222, %v1901
  %v2128 = vadd.f32 %v1227, %v1906
  %v2129 = vadd.f32 %v1232, %v1911
  %v2130 = vadd.f32 %v1237, %v1916
  %v2131 = vadd.f32 %v1242, %v1921
  %v2132 = vadd.f32 %v1247, %v1926
  %v2133 = vadd.f32 %v1252, %v1931
  %v2134 = vadd.f32 %v1257, %v1936
  %v2135 = vadd.f32 %v1262, %v1941
  %v2136 = vadd.f32 %v1267, %v1946
  %v2137 = vadd.f32 %v1272, %v1951
  %v2138 = vadd.f32 %v1277, %v1956
  %v2139 = vadd.f32 %v1282, %v1961
  %v2140 = vadd.f32 %v1287, %v1966
  %v2141 = vadd.f32 %v1292, %v1971
  %v2142 = vadd.f32 %v1297, %v1976
  %v2143 = vadd.f32 %v1302, %v1981
  %v2144 = vadd.f32 %v1307, %v1986
  %v2145 = vadd.f32 %v1312, %v1991
  %v2146 = vadd.f32 %v1317, %v1996
  %v2147 = vadd.f32 %v1322, %v2001
  %v2148 = vadd.f32 %v1327, %v2006
  %v2149 = vadd.f32 %v1332, %v2011
  %v2150 = vadd.f32 %v1337, %v2016
  %v2151 = vadd.f32 %v1342, %v2021
  %v2152 = vadd.f32 %v1347, %v2026
  %v2153 = vadd.f32 %v1352, %v2031
  %v2154 = vadd.f32 %v1357, %v2036
  %v2155 = vadd.f32 %v1362, %v2041
  %v2156 = vadd.f32 %v1367, %v2046
  %v2157 = vadd.f32 %v1372, %v2051
  %v2158 = vadd.f32 %v1377, %v2056
  %v2159 = vadd.f32 %v1382, %v2061
  %v2160 = vadd.f32 %v1387, %v2066
  %v2161 = vadd.f32 %v1392, %v2071
  %v2162 = vadd.f32 %v1397, %v2076
  %v2163 = vadd.f32 %v1402, %v2081
  %v2164 = vadd.f32 %v1407, %v2086
  %v2165 = vadd.f32 %v1412, %v2091
  %v2166 = vadd.f32 %v1417, %v2096
  %v2167 = vadd.f32 %v1422, %v2101
  %s2168 = scalar_lea.vmem %s1, 12
  %v2169 = vld [vmem:[%s2168] sm:$0xf]
  %v2171 = vsel %vm391, %v71, 0
  %v2174 = vsel %vm391, %v72, 0
  %v2177 = vsel %vm391, %v125, 0
  %v2180 = vsel %vm391, %v126, 0
  %v2183 = vsel %vm520, %v2169, 0
  %2185 = vmatprep.subr.mxu0 0.0
  %2186 = vmatpush1.msra.mxu0 %v2183
  %2187 = vmatprep.subr.mxu0 0.0
  %2188 = vmatpush1.msra.mxu0 0.0
  %2189 = vmatprep.subr.mxu0 0.0
  %2190 = vmatpush1.msra.mxu0 0.0
  %2191 = vmatprep.subr.mxu0 0.0
  %2192 = vmatpush1.msra.mxu0 0.0
  %2193 = vmatprep.subr.mxu0 0.0
  %2194 = vmatpush1.msra.mxu0 0.0
  %2195 = vmatprep.subr.mxu0 0.0
  %2196 = vmatpush1.msra.mxu0 0.0
  %2197 = vmatprep.subr.mxu0 0.0
  %2198 = vmatpush1.msra.mxu0 0.0
  %2199 = vmatprep.subr.mxu0 0.0
  %2200 = vmatpush1.msra.mxu0 0.0
  %2201 = vmatprep.subr.mxu0 0.0
  %2202 = vmatpush1.msra.mxu0 0.0
  %2203 = vmatprep.subr.mxu0 0.0
  %2204 = vmatpush1.msra.mxu0 0.0
  %2205 = vmatprep.subr.mxu0 0.0
  %2206 = vmatpush1.msra.mxu0 0.0
  %2207 = vmatprep.subr.mxu0 0.0
  %2208 = vmatpush1.msra.mxu0 0.0
  %2209 = vmatprep.subr.mxu0 0.0
  %2210 = vmatpush1.msra.mxu0 0.0
  %2211 = vmatprep.subr.mxu0 0.0
  %2212 = vmatpush1.msra.mxu0 0.0
  %2213 = vmatprep.subr.mxu0 0.0
  %2214 = vmatpush1.msra.mxu0 0.0
  %2215 = vmatprep.subr.mxu0 0.0
  %2216 = vmatpush1.msra.mxu0 0.0
  %2217 = vmatprep.subr.mxu0 0.0
  %2218 = vmatpush1.msra.mxu0 0.0
  %2219 = vmatprep.subr.mxu0 0.0
  %2220 = vmatpush1.msra.mxu0 0.0
  %2221 = vmatprep.subr.mxu0 0.0
  %2222 = vmatpush1.msra.mxu0 0.0
  %2223 = vmatprep.subr.mxu0 0.0
  %2224 = vmatpush1.msra.mxu0 0.0
  %2225 = vmatprep.subr.mxu0 0.0
  %2226 = vmatpush1.msra.mxu0 0.0
  %2227 = vmatprep.subr.mxu0 0.0
  %2228 = vmatpush1.msra.mxu0 0.0
  %2229 = vmatprep.subr.mxu0 0.0
  %2230 = vmatpush1.msra.mxu0 0.0
  %2231 = vmatprep.subr.mxu0 0.0
  %2232 = vmatpush1.msra.mxu0 0.0
  %2233 = vmatprep.subr.mxu0 0.0
  %2234 = vmatpush1.msra.mxu0 0.0
  %2235 = vmatprep.subr.mxu0 0.0
  %2236 = vmatpush1.msra.mxu0 0.0
  %2237 = vmatprep.subr.mxu0 0.0
  %2238 = vmatpush1.msra.mxu0 0.0
  %2239 = vmatprep.subr.mxu0 0.0
  %2240 = vmatpush1.msra.mxu0 0.0
  %2241 = vmatprep.subr.mxu0 0.0
  %2242 = vmatpush1.msra.mxu0 0.0
  %2243 = vmatprep.subr.mxu0 0.0
  %2244 = vmatpush1.msra.mxu0 0.0
  %2245 = vmatprep.subr.mxu0 0.0
  %2246 = vmatpush1.msra.mxu0 0.0
  %2247 = vmatprep.subr.mxu0 0.0
  %2248 = vmatpush1.msra.mxu0 0.0
  %2249 = vmatprep.mubr.f32.mxu0 0.0
  %2250 = vmatmul.mubr.f32.gmra.mrb[0].mxu0 %v913
  %v2251 = vpop.f32.mrb[0].mxu0
  %v2252 = vadd.f32 0.0, %v2251
  %v2253 = vpop.f32.mrb[0].mxu0
  %2254 = vmatprep.mubr.f32.mxu0 0.0
  %2255 = vmatmul.mubr.f32.gmra.mrb[0].mxu0 %v915
  %v2256 = vpop.f32.mrb[0].mxu0
  %v2257 = vadd.f32 0.0, %v2256
  %v2258 = vpop.f32.mrb[0].mxu0
  %2259 = vmatprep.mubr.f32.mxu0 0.0
  %2260 = vmatmul.mubr.f32.gmra.mrb[0].mxu0 %v917
  %v2261 = vpop.f32.mrb[0].mxu0
  %v2262 = vadd.f32 0.0, %v2261
  %v2263 = vpop.f32.mrb[0].mxu0
  %2264 = vmatprep.mubr.f32.mxu0 0.0
  %2265 = vmatmul.mubr.f32.gmra.mrb[0].mxu0 %v919
  %v2266 = vpop.f32.mrb[0].mxu0
  %v2267 = vadd.f32 0.0, %v2266
  %v2268 = vpop.f32.mrb[0].mxu0
  %2269 = vmatprep.mubr.f32.mxu0 0.0
  %2270 = vmatmul.mubr.f32.gmra.mrb[0].mxu0 %v921
  %v2271 = vpop.f32.mrb[0].mxu0
  %v2272 = vadd.f32 0.0, %v2271
  %v2273 = vpop.f32.mrb[0].mxu0
  %2274 = vmatprep.mubr.f32.mxu0 0.0
  %2275 = vmatmul.mubr.f32.gmra.mrb[0].mxu0 %v923
  %v2276 = vpop.f32.mrb[0].mxu0
  %v2277 = vadd.f32 0.0, %v2276
  %v2278 = vpop.f32.mrb[0].mxu0
  %2279 = vmatprep.mubr.f32.mxu0 0.0
  %2280 = vmatmul.mubr.f32.gmra.mrb[0].mxu0 %v925
  %v2281 = vpop.f32.mrb[0].mxu0
  %v2282 = vadd.f32 0.0, %v2281
  %v2283 = vpop.f32.mrb[0].mxu0
  %2284 = vmatprep.mubr.f32.mxu0 0.0
  %2285 = vmatmul.mubr.f32.gmra.mrb[0].mxu0 %v927
  %v2286 = vpop.f32.mrb[0].mxu0
  %v2287 = vadd.f32 0.0, %v2286
  %v2288 = vpop.f32.mrb[0].mxu0
  %2289 = vmatprep.mubr.f32.mxu0 0.0
  %2290 = vmatmul.mubr.f32.gmra.mrb[0].mxu0 %v929
  %v2291 = vpop.f32.mrb[0].mxu0
  %v2292 = vadd.f32 0.0, %v2291
  %v2293 = vpop.f32.mrb[0].mxu0
  %2294 = vmatprep.mubr.f32.mxu0 0.0
  %2295 = vmatmul.mubr.f32.gmra.mrb[0].mxu0 %v931
  %v2296 = vpop.f32.mrb[0].mxu0
  %v2297 = vadd.f32 0.0, %v2296
  %v2298 = vpop.f32.mrb[0].mxu0
  %2299 = vmatprep.mubr.f32.mxu0 0.0
  %2300 = vmatmul.mubr.f32.gmra.mrb[0].mxu0 %v933
  %v2301 = vpop.f32.mrb[0].mxu0
  %v2302 = vadd.f32 0.0, %v2301
  %v2303 = vpop.f32.mrb[0].mxu0
  %2304 = vmatprep.mubr.f32.mxu0 0.0
  %2305 = vmatmul.mubr.f32.gmra.mrb[0].mxu0 %v935
  %v2306 = vpop.f32.mrb[0].mxu0
  %v2307 = vadd.f32 0.0, %v2306
  %v2308 = vpop.f32.mrb[0].mxu0
  %2309 = vmatprep.mubr.f32.mxu0 0.0
  %2310 = vmatmul.mubr.f32.gmra.mrb[0].mxu0 %v937
  %v2311 = vpop.f32.mrb[0].mxu0
  %v2312 = vadd.f32 0.0, %v2311
  %v2313 = vpop.f32.mrb[0].mxu0
  %2314 = vmatprep.mubr.f32.mxu0 0.0
  %2315 = vmatmul.mubr.f32.gmra.mrb[0].mxu0 %v939
  %v2316 = vpop.f32.mrb[0].mxu0
  %v2317 = vadd.f32 0.0, %v2316
  %v2318 = vpop.f32.mrb[0].mxu0
  %2319 = vmatprep.mubr.f32.mxu0 0.0
  %2320 = vmatmul.mubr.f32.gmra.mrb[0].mxu0 %v941
  %v2321 = vpop.f32.mrb[0].mxu0
  %v2322 = vadd.f32 0.0, %v2321
  %v2323 = vpop.f32.mrb[0].mxu0
  %2324 = vmatprep.mubr.f32.mxu0 0.0
  %2325 = vmatmul.mubr.f32.gmra.mrb[0].mxu0 %v943
  %v2326 = vpop.f32.mrb[0].mxu0
  %v2327 = vadd.f32 0.0, %v2326
  %v2328 = vpop.f32.mrb[0].mxu0
  %2329 = vmatprep.mubr.f32.mxu0 0.0
  %2330 = vmatmul.mubr.f32.gmra.mrb[0].mxu0 %v945
  %v2331 = vpop.f32.mrb[0].mxu0
  %v2332 = vadd.f32 0.0, %v2331
  %v2333 = vpop.f32.mrb[0].mxu0
  %2334 = vmatprep.mubr.f32.mxu0 0.0
  %2335 = vmatmul.mubr.f32.gmra.mrb[0].mxu0 %v947
  %v2336 = vpop.f32.mrb[0].mxu0
  %v2337 = vadd.f32 0.0, %v2336
  %v2338 = vpop.f32.mrb[0].mxu0
  %2339 = vmatprep.mubr.f32.mxu0 0.0
  %2340 = vmatmul.mubr.f32.gmra.mrb[0].mxu0 %v949
  %v2341 = vpop.f32.mrb[0].mxu0
  %v2342 = vadd.f32 0.0, %v2341
  %v2343 = vpop.f32.mrb[0].mxu0
  %2344 = vmatprep.mubr.f32.mxu0 0.0
  %2345 = vmatmul.mubr.f32.gmra.mrb[0].mxu0 %v951
  %v2346 = vpop.f32.mrb[0].mxu0
  %v2347 = vadd.f32 0.0, %v2346
  %v2348 = vpop.f32.mrb[0].mxu0
  %2349 = vmatprep.mubr.f32.mxu0 0.0
  %2350 = vmatmul.mubr.f32.gmra.mrb[0].mxu0 %v953
  %v2351 = vpop.f32.mrb[0].mxu0
  %v2352 = vadd.f32 0.0, %v2351
  %v2353 = vpop.f32.mrb[0].mxu0
  %2354 = vmatprep.mubr.f32.mxu0 0.0
  %2355 = vmatmul.mubr.f32.gmra.mrb[0].mxu0 %v955
  %v2356 = vpop.f32.mrb[0].mxu0
  %v2357 = vadd.f32 0.0, %v2356
  %v2358 = vpop.f32.mrb[0].mxu0
  %2359 = vmatprep.mubr.f32.mxu0 0.0
  %2360 = vmatmul.mubr.f32.gmra.mrb[0].mxu0 %v957
  %v2361 = vpop.f32.mrb[0].mxu0
  %v2362 = vadd.f32 0.0, %v2361
  %v2363 = vpop.f32.mrb[0].mxu0
  %2364 = vmatprep.mubr.f32.mxu0 0.0
  %2365 = vmatmul.mubr.f32.gmra.mrb[0].mxu0 %v959
  %v2366 = vpop.f32.mrb[0].mxu0
  %v2367 = vadd.f32 0.0, %v2366
  %v2368 = vpop.f32.mrb[0].mxu0
  %2369 = vmatprep.mubr.f32.mxu0 0.0
  %2370 = vmatmul.mubr.f32.gmra.mrb[0].mxu0 %v961
  %v2371 = vpop.f32.mrb[0].mxu0
  %v2372 = vadd.f32 0.0, %v2371
  %v2373 = vpop.f32.mrb[0].mxu0
  %2374 = vmatprep.mubr.f32.mxu0 0.0
  %2375 = vmatmul.mubr.f32.gmra.mrb[0].mxu0 %v963
  %v2376 = vpop.f32.mrb[0].mxu0
  %v2377 = vadd.f32 0.0, %v2376
  %v2378 = vpop.f32.mrb[0].mxu0
  %2379 = vmatprep.mubr.f32.mxu0 0.0
  %2380 = vmatmul.mubr.f32.gmra.mrb[0].mxu0 %v965
  %v2381 = vpop.f32.mrb[0].mxu0
  %v2382 = vadd.f32 0.0, %v2381
  %v2383 = vpop.f32.mrb[0].mxu0
  %2384 = vmatprep.mubr.f32.mxu0 0.0
  %2385 = vmatmul.mubr.f32.gmra.mrb[0].mxu0 %v967
  %v2386 = vpop.f32.mrb[0].mxu0
  %v2387 = vadd.f32 0.0, %v2386
  %v2388 = vpop.f32.mrb[0].mxu0
  %2389 = vmatprep.mubr.f32.mxu0 0.0
  %2390 = vmatmul.mubr.f32.gmra.mrb[0].mxu0 %v969
  %v2391 = vpop.f32.mrb[0].mxu0
  %v2392 = vadd.f32 0.0, %v2391
  %v2393 = vpop.f32.mrb[0].mxu0
  %2394 = vmatprep.mubr.f32.mxu0 0.0
  %2395 = vmatmul.mubr.f32.gmra.mrb[0].mxu0 %v971
  %v2396 = vpop.f32.mrb[0].mxu0
  %v2397 = vadd.f32 0.0, %v2396
  %v2398 = vpop.f32.mrb[0].mxu0
  %2399 = vmatprep.mubr.f32.mxu0 0.0
  %2400 = vmatmul.mubr.f32.gmra.mrb[0].mxu0 %v2171
  %v2401 = vpop.f32.mrb[0].mxu0
  %v2402 = vadd.f32 0.0, %v2401
  %v2403 = vpop.f32.mrb[0].mxu0
  %2404 = vmatprep.mubr.f32.mxu0 0.0
  %2405 = vmatmul.mubr.f32.gmra.mrb[0].mxu0 %v2174
  %v2406 = vpop.f32.mrb[0].mxu0
  %v2407 = vadd.f32 0.0, %v2406
  %v2408 = vpop.f32.mrb[0].mxu0
  %2409 = vmatprep.mubr.f32.mxu0 0.0
  %2410 = vmatmul.mubr.f32.gmra.mrb[0].mxu0 %v977
  %v2411 = vpop.f32.mrb[0].mxu0
  %v2412 = vadd.f32 0.0, %v2411
  %v2413 = vpop.f32.mrb[0].mxu0
  %2414 = vmatprep.mubr.f32.mxu0 0.0
  %2415 = vmatmul.mubr.f32.gmra.mrb[0].mxu0 %v979
  %v2416 = vpop.f32.mrb[0].mxu0
  %v2417 = vadd.f32 0.0, %v2416
  %v2418 = vpop.f32.mrb[0].mxu0
  %2419 = vmatprep.mubr.f32.mxu0 0.0
  %2420 = vmatmul.mubr.f32.gmra.mrb[0].mxu0 %v981
  %v2421 = vpop.f32.mrb[0].mxu0
  %v2422 = vadd.f32 0.0, %v2421
  %v2423 = vpop.f32.mrb[0].mxu0
  %2424 = vmatprep.mubr.f32.mxu0 0.0
  %2425 = vmatmul.mubr.f32.gmra.mrb[0].mxu0 %v983
  %v2426 = vpop.f32.mrb[0].mxu0
  %v2427 = vadd.f32 0.0, %v2426
  %v2428 = vpop.f32.mrb[0].mxu0
  %2429 = vmatprep.mubr.f32.mxu0 0.0
  %2430 = vmatmul.mubr.f32.gmra.mrb[0].mxu0 %v985
  %v2431 = vpop.f32.mrb[0].mxu0
  %v2432 = vadd.f32 0.0, %v2431
  %v2433 = vpop.f32.mrb[0].mxu0
  %2434 = vmatprep.mubr.f32.mxu0 0.0
  %2435 = vmatmul.mubr.f32.gmra.mrb[0].mxu0 %v987
  %v2436 = vpop.f32.mrb[0].mxu0
  %v2437 = vadd.f32 0.0, %v2436
  %v2438 = vpop.f32.mrb[0].mxu0
  %2439 = vmatprep.mubr.f32.mxu0 0.0
  %2440 = vmatmul.mubr.f32.gmra.mrb[0].mxu0 %v989
  %v2441 = vpop.f32.mrb[0].mxu0
  %v2442 = vadd.f32 0.0, %v2441
  %v2443 = vpop.f32.mrb[0].mxu0
  %2444 = vmatprep.mubr.f32.mxu0 0.0
  %2445 = vmatmul.mubr.f32.gmra.mrb[0].mxu0 %v991
  %v2446 = vpop.f32.mrb[0].mxu0
  %v2447 = vadd.f32 0.0, %v2446
  %v2448 = vpop.f32.mrb[0].mxu0
  %2449 = vmatprep.mubr.f32.mxu0 0.0
  %2450 = vmatmul.mubr.f32.gmra.mrb[0].mxu0 %v993
  %v2451 = vpop.f32.mrb[0].mxu0
  %v2452 = vadd.f32 0.0, %v2451
  %v2453 = vpop.f32.mrb[0].mxu0
  %2454 = vmatprep.mubr.f32.mxu0 0.0
  %2455 = vmatmul.mubr.f32.gmra.mrb[0].mxu0 %v995
  %v2456 = vpop.f32.mrb[0].mxu0
  %v2457 = vadd.f32 0.0, %v2456
  %v2458 = vpop.f32.mrb[0].mxu0
  %2459 = vmatprep.mubr.f32.mxu0 0.0
  %2460 = vmatmul.mubr.f32.gmra.mrb[0].mxu0 %v997
  %v2461 = vpop.f32.mrb[0].mxu0
  %v2462 = vadd.f32 0.0, %v2461
  %v2463 = vpop.f32.mrb[0].mxu0
  %2464 = vmatprep.mubr.f32.mxu0 0.0
  %2465 = vmatmul.mubr.f32.gmra.mrb[0].mxu0 %v999
  %v2466 = vpop.f32.mrb[0].mxu0
  %v2467 = vadd.f32 0.0, %v2466
  %v2468 = vpop.f32.mrb[0].mxu0
  %2469 = vmatprep.mubr.f32.mxu0 0.0
  %2470 = vmatmul.mubr.f32.gmra.mrb[0].mxu0 %v1001
  %v2471 = vpop.f32.mrb[0].mxu0
  %v2472 = vadd.f32 0.0, %v2471
  %v2473 = vpop.f32.mrb[0].mxu0
  %2474 = vmatprep.mubr.f32.mxu0 0.0
  %2475 = vmatmul.mubr.f32.gmra.mrb[0].mxu0 %v1003
  %v2476 = vpop.f32.mrb[0].mxu0
  %v2477 = vadd.f32 0.0, %v2476
  %v2478 = vpop.f32.mrb[0].mxu0
  %2479 = vmatprep.mubr.f32.mxu0 0.0
  %2480 = vmatmul.mubr.f32.gmra.mrb[0].mxu0 %v1005
  %v2481 = vpop.f32.mrb[0].mxu0
  %v2482 = vadd.f32 0.0, %v2481
  %v2483 = vpop.f32.mrb[0].mxu0
  %2484 = vmatprep.mubr.f32.mxu0 0.0
  %2485 = vmatmul.mubr.f32.gmra.mrb[0].mxu0 %v1007
  %v2486 = vpop.f32.mrb[0].mxu0
  %v2487 = vadd.f32 0.0, %v2486
  %v2488 = vpop.f32.mrb[0].mxu0
  %2489 = vmatprep.mubr.f32.mxu0 0.0
  %2490 = vmatmul.mubr.f32.gmra.mrb[0].mxu0 %v1009
  %v2491 = vpop.f32.mrb[0].mxu0
  %v2492 = vadd.f32 0.0, %v2491
  %v2493 = vpop.f32.mrb[0].mxu0
  %2494 = vmatprep.mubr.f32.mxu0 0.0
  %2495 = vmatmul.mubr.f32.gmra.mrb[0].mxu0 %v1011
  %v2496 = vpop.f32.mrb[0].mxu0
  %v2497 = vadd.f32 0.0, %v2496
  %v2498 = vpop.f32.mrb[0].mxu0
  %2499 = vmatprep.mubr.f32.mxu0 0.0
  %2500 = vmatmul.mubr.f32.gmra.mrb[0].mxu0 %v1013
  %v2501 = vpop.f32.mrb[0].mxu0
  %v2502 = vadd.f32 0.0, %v2501
  %v2503 = vpop.f32.mrb[0].mxu0
  %2504 = vmatprep.mubr.f32.mxu0 0.0
  %2505 = vmatmul.mubr.f32.gmra.mrb[0].mxu0 %v1015
  %v2506 = vpop.f32.mrb[0].mxu0
  %v2507 = vadd.f32 0.0, %v2506
  %v2508 = vpop.f32.mrb[0].mxu0
  %2509 = vmatprep.mubr.f32.mxu0 0.0
  %2510 = vmatmul.mubr.f32.gmra.mrb[0].mxu0 %v1017
  %v2511 = vpop.f32.mrb[0].mxu0
  %v2512 = vadd.f32 0.0, %v2511
  %v2513 = vpop.f32.mrb[0].mxu0
  %2514 = vmatprep.mubr.f32.mxu0 0.0
  %2515 = vmatmul.mubr.f32.gmra.mrb[0].mxu0 %v1019
  %v2516 = vpop.f32.mrb[0].mxu0
  %v2517 = vadd.f32 0.0, %v2516
  %v2518 = vpop.f32.mrb[0].mxu0
  %2519 = vmatprep.mubr.f32.mxu0 0.0
  %2520 = vmatmul.mubr.f32.gmra.mrb[0].mxu0 %v1021
  %v2521 = vpop.f32.mrb[0].mxu0
  %v2522 = vadd.f32 0.0, %v2521
  %v2523 = vpop.f32.mrb[0].mxu0
  %2524 = vmatprep.mubr.f32.mxu0 0.0
  %2525 = vmatmul.mubr.f32.gmra.mrb[0].mxu0 %v1023
  %v2526 = vpop.f32.mrb[0].mxu0
  %v2527 = vadd.f32 0.0, %v2526
  %v2528 = vpop.f32.mrb[0].mxu0
  %2529 = vmatprep.mubr.f32.mxu0 0.0
  %2530 = vmatmul.mubr.f32.gmra.mrb[0].mxu0 %v1025
  %v2531 = vpop.f32.mrb[0].mxu0
  %v2532 = vadd.f32 0.0, %v2531
  %v2533 = vpop.f32.mrb[0].mxu0
  %2534 = vmatprep.mubr.f32.mxu0 0.0
  %2535 = vmatmul.mubr.f32.gmra.mrb[0].mxu0 %v1027
  %v2536 = vpop.f32.mrb[0].mxu0
  %v2537 = vadd.f32 0.0, %v2536
  %v2538 = vpop.f32.mrb[0].mxu0
  %2539 = vmatprep.mubr.f32.mxu0 0.0
  %2540 = vmatmul.mubr.f32.gmra.mrb[0].mxu0 %v1029
  %v2541 = vpop.f32.mrb[0].mxu0
  %v2542 = vadd.f32 0.0, %v2541
  %v2543 = vpop.f32.mrb[0].mxu0
  %2544 = vmatprep.mubr.f32.mxu0 0.0
  %2545 = vmatmul.mubr.f32.gmra.mrb[0].mxu0 %v1031
  %v2546 = vpop.f32.mrb[0].mxu0
  %v2547 = vadd.f32 0.0, %v2546
  %v2548 = vpop.f32.mrb[0].mxu0
  %2549 = vmatprep.mubr.f32.mxu0 0.0
  %2550 = vmatmul.mubr.f32.gmra.mrb[0].mxu0 %v1033
  %v2551 = vpop.f32.mrb[0].mxu0
  %v2552 = vadd.f32 0.0, %v2551
  %v2553 = vpop.f32.mrb[0].mxu0
  %2554 = vmatprep.mubr.f32.mxu0 0.0
  %2555 = vmatmul.mubr.f32.gmra.mrb[0].mxu0 %v1035
  %v2556 = vpop.f32.mrb[0].mxu0
  %v2557 = vadd.f32 0.0, %v2556
  %v2558 = vpop.f32.mrb[0].mxu0
  %2559 = vmatprep.mubr.f32.mxu0 0.0
  %2560 = vmatmul.mubr.f32.gmra.mrb[0].mxu0 %v2177
  %v2561 = vpop.f32.mrb[0].mxu0
  %v2562 = vadd.f32 0.0, %v2561
  %v2563 = vpop.f32.mrb[0].mxu0
  %2564 = vmatprep.mubr.f32.mxu0 0.0
  %2565 = vmatmul.mubr.f32.gmra.mrb[0].mxu0 %v2180
  %v2566 = vpop.f32.mrb[0].mxu0
  %v2567 = vadd.f32 0.0, %v2566
  %v2568 = vpop.f32.mrb[0].mxu0
  %2569 = vdwg.mxu0
  %v2570 = vadd.f32 %v2104, %v2252
  %v2571 = vadd.f32 %v2105, %v2257
  %v2572 = vadd.f32 %v2106, %v2262
  %v2573 = vadd.f32 %v2107, %v2267
  %v2574 = vadd.f32 %v2108, %v2272
  %v2575 = vadd.f32 %v2109, %v2277
  %v2576 = vadd.f32 %v2110, %v2282
  %v2577 = vadd.f32 %v2111, %v2287
  %v2578 = vadd.f32 %v2112, %v2292
  %v2579 = vadd.f32 %v2113, %v2297
  %v2580 = vadd.f32 %v2114, %v2302
  %v2581 = vadd.f32 %v2115, %v2307
  %v2582 = vadd.f32 %v2116, %v2312
  %v2583 = vadd.f32 %v2117, %v2317
  %v2584 = vadd.f32 %v2118, %v2322
  %v2585 = vadd.f32 %v2119, %v2327
  %v2586 = vadd.f32 %v2120, %v2332
  %v2587 = vadd.f32 %v2121, %v2337
  %v2588 = vadd.f32 %v2122, %v2342
  %v2589 = vadd.f32 %v2123, %v2347
  %v2590 = vadd.f32 %v2124, %v2352
  %v2591 = vadd.f32 %v2125, %v2357
  %v2592 = vadd.f32 %v2126, %v2362
  %v2593 = vadd.f32 %v2127, %v2367
  %v2594 = vadd.f32 %v2128, %v2372
  %v2595 = vadd.f32 %v2129, %v2377
  %v2596 = vadd.f32 %v2130, %v2382
  %v2597 = vadd.f32 %v2131, %v2387
  %v2598 = vadd.f32 %v2132, %v2392
  %v2599 = vadd.f32 %v2133, %v2397
  %v2600 = vadd.f32 %v2134, %v2402
  %v2601 = vadd.f32 %v2135, %v2407
  %v2602 = vadd.f32 %v2136, %v2412
  %v2603 = vadd.f32 %v2137, %v2417
  %v2604 = vadd.f32 %v2138, %v2422
  %v2605 = vadd.f32 %v2139, %v2427
  %v2606 = vadd.f32 %v2140, %v2432
  %v2607 = vadd.f32 %v2141, %v2437
  %v2608 = vadd.f32 %v2142, %v2442
  %v2609 = vadd.f32 %v2143, %v2447
  %v2610 = vadd.f32 %v2144, %v2452
  %v2611 = vadd.f32 %v2145, %v2457
  %v2612 = vadd.f32 %v2146, %v2462
  %v2613 = vadd.f32 %v2147, %v2467
  %v2614 = vadd.f32 %v2148, %v2472
  %v2615 = vadd.f32 %v2149, %v2477
  %v2616 = vadd.f32 %v2150, %v2482
  %v2617 = vadd.f32 %v2151, %v2487
  %v2618 = vadd.f32 %v2152, %v2492
  %v2619 = vadd.f32 %v2153, %v2497
  %v2620 = vadd.f32 %v2154, %v2502
  %v2621 = vadd.f32 %v2155, %v2507
  %v2622 = vadd.f32 %v2156, %v2512
  %v2623 = vadd.f32 %v2157, %v2517
  %v2624 = vadd.f32 %v2158, %v2522
  %v2625 = vadd.f32 %v2159, %v2527
  %v2626 = vadd.f32 %v2160, %v2532
  %v2627 = vadd.f32 %v2161, %v2537
  %v2628 = vadd.f32 %v2162, %v2542
  %v2629 = vadd.f32 %v2163, %v2547
  %v2630 = vadd.f32 %v2164, %v2552
  %v2631 = vadd.f32 %v2165, %v2557
  %v2632 = vadd.f32 %v2166, %v2562
  %v2633 = vadd.f32 %v2167, %v2567
  %v2636 = vrot.slane %v71, 1
  %v2637 = vrot.slane %v72, 1
  %v2638 = vsel %vm228, %v2636, %v2637
  %v2639 = vrot.slane %v73, 1
  %v2640 = vsel %vm228, %v2637, %v2639
  %v2641 = vrot.slane %v125, 1
  %v2642 = vrot.slane %v126, 1
  %v2643 = vsel %vm228, %v2641, %v2642
  %v2644 = vrot.slane %v127, 1
  %v2645 = vsel %vm228, %v2642, %v2644
  %s2646 = scalar_lea.vmem %s1, 16
  %v2647 = vld [vmem:[%s2646] sm:$0xf]
  %v2648 = vsel %vm391, %v2638, 0
  %v2650 = vsel %vm391, %v2640, 0
  %v2652 = vsel %vm391, %v2643, 0
  %v2654 = vsel %vm391, %v2645, 0
  %v2657 = vsel %vm520, %v2647, 0
  %2659 = vmatprep.subr.mxu0 0.0
  %2660 = vmatpush1.msra.mxu0 %v2657
  %2661 = vmatprep.subr.mxu0 0.0
  %2662 = vmatpush1.msra.mxu0 0.0
  %2663 = vmatprep.subr.mxu0 0.0
  %2664 = vmatpush1.msra.mxu0 0.0
  %2665 = vmatprep.subr.mxu0 0.0
  %2666 = vmatpush1.msra.mxu0 0.0
  %2667 = vmatprep.subr.mxu0 0.0
  %2668 = vmatpush1.msra.mxu0 0.0
  %2669 = vmatprep.subr.mxu0 0.0
  %2670 = vmatpush1.msra.mxu0 0.0
  %2671 = vmatprep.subr.mxu0 0.0
  %2672 = vmatpush1.msra.mxu0 0.0
  %2673 = vmatprep.subr.mxu0 0.0
  %2674 = vmatpush1.msra.mxu0 0.0
  %2675 = vmatprep.subr.mxu0 0.0
  %2676 = vmatpush1.msra.mxu0 0.0
  %2677 = vmatprep.subr.mxu0 0.0
  %2678 = vmatpush1.msra.mxu0 0.0
  %2679 = vmatprep.subr.mxu0 0.0
  %2680 = vmatpush1.msra.mxu0 0.0
  %2681 = vmatprep.subr.mxu0 0.0
  %2682 = vmatpush1.msra.mxu0 0.0
  %2683 = vmatprep.subr.mxu0 0.0
  %2684 = vmatpush1.msra.mxu0 0.0
  %2685 = vmatprep.subr.mxu0 0.0
  %2686 = vmatpush1.msra.mxu0 0.0
  %2687 = vmatprep.subr.mxu0 0.0
  %2688 = vmatpush1.msra.mxu0 0.0
  %2689 = vmatprep.subr.mxu0 0.0
  %2690 = vmatpush1.msra.mxu0 0.0
  %2691 = vmatprep.subr.mxu0 0.0
  %2692 = vmatpush1.msra.mxu0 0.0
  %2693 = vmatprep.subr.mxu0 0.0
  %2694 = vmatpush1.msra.mxu0 0.0
  %2695 = vmatprep.subr.mxu0 0.0
  %2696 = vmatpush1.msra.mxu0 0.0
  %2697 = vmatprep.subr.mxu0 0.0
  %2698 = vmatpush1.msra.mxu0 0.0
  %2699 = vmatprep.subr.mxu0 0.0
  %2700 = vmatpush1.msra.mxu0 0.0
  %2701 = vmatprep.subr.mxu0 0.0
  %2702 = vmatpush1.msra.mxu0 0.0
  %2703 = vmatprep.subr.mxu0 0.0
  %2704 = vmatpush1.msra.mxu0 0.0
  %2705 = vmatprep.subr.mxu0 0.0
  %2706 = vmatpush1.msra.mxu0 0.0
  %2707 = vmatprep.subr.mxu0 0.0
  %2708 = vmatpush1.msra.mxu0 0.0
  %2709 = vmatprep.subr.mxu0 0.0
  %2710 = vmatpush1.msra.mxu0 0.0
  %2711 = vmatprep.subr.mxu0 0.0
  %2712 = vmatpush1.msra.mxu0 0.0
  %2713 = vmatprep.subr.mxu0 0.0
  %2714 = vmatpush1.msra.mxu0 0.0
  %2715 = vmatprep.subr.mxu0 0.0
  %2716 = vmatpush1.msra.mxu0 0.0
  %2717 = vmatprep.subr.mxu0 0.0
  %2718 = vmatpush1.msra.mxu0 0.0
  %2719 = vmatprep.subr.mxu0 0.0
  %2720 = vmatpush1.msra.mxu0 0.0
  %2721 = vmatprep.subr.mxu0 0.0
  %2722 = vmatpush1.msra.mxu0 0.0
  %2723 = vmatprep.mubr.f32.mxu0 0.0
  %2724 = vmatmul.mubr.f32.gmra.mrb[0].mxu0 %v396
  %v2725 = vpop.f32.mrb[0].mxu0
  %v2726 = vadd.f32 0.0, %v2725
  %v2727 = vpop.f32.mrb[0].mxu0
  %2728 = vmatprep.mubr.f32.mxu0 0.0
  %2729 = vmatmul.mubr.f32.gmra.mrb[0].mxu0 %v398
  %v2730 = vpop.f32.mrb[0].mxu0
  %v2731 = vadd.f32 0.0, %v2730
  %v2732 = vpop.f32.mrb[0].mxu0
  %2733 = vmatprep.mubr.f32.mxu0 0.0
  %2734 = vmatmul.mubr.f32.gmra.mrb[0].mxu0 %v400
  %v2735 = vpop.f32.mrb[0].mxu0
  %v2736 = vadd.f32 0.0, %v2735
  %v2737 = vpop.f32.mrb[0].mxu0
  %2738 = vmatprep.mubr.f32.mxu0 0.0
  %2739 = vmatmul.mubr.f32.gmra.mrb[0].mxu0 %v402
  %v2740 = vpop.f32.mrb[0].mxu0
  %v2741 = vadd.f32 0.0, %v2740
  %v2742 = vpop.f32.mrb[0].mxu0
  %2743 = vmatprep.mubr.f32.mxu0 0.0
  %2744 = vmatmul.mubr.f32.gmra.mrb[0].mxu0 %v404
  %v2745 = vpop.f32.mrb[0].mxu0
  %v2746 = vadd.f32 0.0, %v2745
  %v2747 = vpop.f32.mrb[0].mxu0
  %2748 = vmatprep.mubr.f32.mxu0 0.0
  %2749 = vmatmul.mubr.f32.gmra.mrb[0].mxu0 %v406
  %v2750 = vpop.f32.mrb[0].mxu0
  %v2751 = vadd.f32 0.0, %v2750
  %v2752 = vpop.f32.mrb[0].mxu0
  %2753 = vmatprep.mubr.f32.mxu0 0.0
  %2754 = vmatmul.mubr.f32.gmra.mrb[0].mxu0 %v408
  %v2755 = vpop.f32.mrb[0].mxu0
  %v2756 = vadd.f32 0.0, %v2755
  %v2757 = vpop.f32.mrb[0].mxu0
  %2758 = vmatprep.mubr.f32.mxu0 0.0
  %2759 = vmatmul.mubr.f32.gmra.mrb[0].mxu0 %v410
  %v2760 = vpop.f32.mrb[0].mxu0
  %v2761 = vadd.f32 0.0, %v2760
  %v2762 = vpop.f32.mrb[0].mxu0
  %2763 = vmatprep.mubr.f32.mxu0 0.0
  %2764 = vmatmul.mubr.f32.gmra.mrb[0].mxu0 %v412
  %v2765 = vpop.f32.mrb[0].mxu0
  %v2766 = vadd.f32 0.0, %v2765
  %v2767 = vpop.f32.mrb[0].mxu0
  %2768 = vmatprep.mubr.f32.mxu0 0.0
  %2769 = vmatmul.mubr.f32.gmra.mrb[0].mxu0 %v414
  %v2770 = vpop.f32.mrb[0].mxu0
  %v2771 = vadd.f32 0.0, %v2770
  %v2772 = vpop.f32.mrb[0].mxu0
  %2773 = vmatprep.mubr.f32.mxu0 0.0
  %2774 = vmatmul.mubr.f32.gmra.mrb[0].mxu0 %v416
  %v2775 = vpop.f32.mrb[0].mxu0
  %v2776 = vadd.f32 0.0, %v2775
  %v2777 = vpop.f32.mrb[0].mxu0
  %2778 = vmatprep.mubr.f32.mxu0 0.0
  %2779 = vmatmul.mubr.f32.gmra.mrb[0].mxu0 %v418
  %v2780 = vpop.f32.mrb[0].mxu0
  %v2781 = vadd.f32 0.0, %v2780
  %v2782 = vpop.f32.mrb[0].mxu0
  %2783 = vmatprep.mubr.f32.mxu0 0.0
  %2784 = vmatmul.mubr.f32.gmra.mrb[0].mxu0 %v420
  %v2785 = vpop.f32.mrb[0].mxu0
  %v2786 = vadd.f32 0.0, %v2785
  %v2787 = vpop.f32.mrb[0].mxu0
  %2788 = vmatprep.mubr.f32.mxu0 0.0
  %2789 = vmatmul.mubr.f32.gmra.mrb[0].mxu0 %v422
  %v2790 = vpop.f32.mrb[0].mxu0
  %v2791 = vadd.f32 0.0, %v2790
  %v2792 = vpop.f32.mrb[0].mxu0
  %2793 = vmatprep.mubr.f32.mxu0 0.0
  %2794 = vmatmul.mubr.f32.gmra.mrb[0].mxu0 %v424
  %v2795 = vpop.f32.mrb[0].mxu0
  %v2796 = vadd.f32 0.0, %v2795
  %v2797 = vpop.f32.mrb[0].mxu0
  %2798 = vmatprep.mubr.f32.mxu0 0.0
  %2799 = vmatmul.mubr.f32.gmra.mrb[0].mxu0 %v426
  %v2800 = vpop.f32.mrb[0].mxu0
  %v2801 = vadd.f32 0.0, %v2800
  %v2802 = vpop.f32.mrb[0].mxu0
  %2803 = vmatprep.mubr.f32.mxu0 0.0
  %2804 = vmatmul.mubr.f32.gmra.mrb[0].mxu0 %v428
  %v2805 = vpop.f32.mrb[0].mxu0
  %v2806 = vadd.f32 0.0, %v2805
  %v2807 = vpop.f32.mrb[0].mxu0
  %2808 = vmatprep.mubr.f32.mxu0 0.0
  %2809 = vmatmul.mubr.f32.gmra.mrb[0].mxu0 %v430
  %v2810 = vpop.f32.mrb[0].mxu0
  %v2811 = vadd.f32 0.0, %v2810
  %v2812 = vpop.f32.mrb[0].mxu0
  %2813 = vmatprep.mubr.f32.mxu0 0.0
  %2814 = vmatmul.mubr.f32.gmra.mrb[0].mxu0 %v432
  %v2815 = vpop.f32.mrb[0].mxu0
  %v2816 = vadd.f32 0.0, %v2815
  %v2817 = vpop.f32.mrb[0].mxu0
  %2818 = vmatprep.mubr.f32.mxu0 0.0
  %2819 = vmatmul.mubr.f32.gmra.mrb[0].mxu0 %v434
  %v2820 = vpop.f32.mrb[0].mxu0
  %v2821 = vadd.f32 0.0, %v2820
  %v2822 = vpop.f32.mrb[0].mxu0
  %2823 = vmatprep.mubr.f32.mxu0 0.0
  %2824 = vmatmul.mubr.f32.gmra.mrb[0].mxu0 %v436
  %v2825 = vpop.f32.mrb[0].mxu0
  %v2826 = vadd.f32 0.0, %v2825
  %v2827 = vpop.f32.mrb[0].mxu0
  %2828 = vmatprep.mubr.f32.mxu0 0.0
  %2829 = vmatmul.mubr.f32.gmra.mrb[0].mxu0 %v438
  %v2830 = vpop.f32.mrb[0].mxu0
  %v2831 = vadd.f32 0.0, %v2830
  %v2832 = vpop.f32.mrb[0].mxu0
  %2833 = vmatprep.mubr.f32.mxu0 0.0
  %2834 = vmatmul.mubr.f32.gmra.mrb[0].mxu0 %v440
  %v2835 = vpop.f32.mrb[0].mxu0
  %v2836 = vadd.f32 0.0, %v2835
  %v2837 = vpop.f32.mrb[0].mxu0
  %2838 = vmatprep.mubr.f32.mxu0 0.0
  %2839 = vmatmul.mubr.f32.gmra.mrb[0].mxu0 %v442
  %v2840 = vpop.f32.mrb[0].mxu0
  %v2841 = vadd.f32 0.0, %v2840
  %v2842 = vpop.f32.mrb[0].mxu0
  %2843 = vmatprep.mubr.f32.mxu0 0.0
  %2844 = vmatmul.mubr.f32.gmra.mrb[0].mxu0 %v444
  %v2845 = vpop.f32.mrb[0].mxu0
  %v2846 = vadd.f32 0.0, %v2845
  %v2847 = vpop.f32.mrb[0].mxu0
  %2848 = vmatprep.mubr.f32.mxu0 0.0
  %2849 = vmatmul.mubr.f32.gmra.mrb[0].mxu0 %v446
  %v2850 = vpop.f32.mrb[0].mxu0
  %v2851 = vadd.f32 0.0, %v2850
  %v2852 = vpop.f32.mrb[0].mxu0
  %2853 = vmatprep.mubr.f32.mxu0 0.0
  %2854 = vmatmul.mubr.f32.gmra.mrb[0].mxu0 %v448
  %v2855 = vpop.f32.mrb[0].mxu0
  %v2856 = vadd.f32 0.0, %v2855
  %v2857 = vpop.f32.mrb[0].mxu0
  %2858 = vmatprep.mubr.f32.mxu0 0.0
  %2859 = vmatmul.mubr.f32.gmra.mrb[0].mxu0 %v450
  %v2860 = vpop.f32.mrb[0].mxu0
  %v2861 = vadd.f32 0.0, %v2860
  %v2862 = vpop.f32.mrb[0].mxu0
  %2863 = vmatprep.mubr.f32.mxu0 0.0
  %2864 = vmatmul.mubr.f32.gmra.mrb[0].mxu0 %v452
  %v2865 = vpop.f32.mrb[0].mxu0
  %v2866 = vadd.f32 0.0, %v2865
  %v2867 = vpop.f32.mrb[0].mxu0
  %2868 = vmatprep.mubr.f32.mxu0 0.0
  %2869 = vmatmul.mubr.f32.gmra.mrb[0].mxu0 %v454
  %v2870 = vpop.f32.mrb[0].mxu0
  %v2871 = vadd.f32 0.0, %v2870
  %v2872 = vpop.f32.mrb[0].mxu0
  %2873 = vmatprep.mubr.f32.mxu0 0.0
  %2874 = vmatmul.mubr.f32.gmra.mrb[0].mxu0 %v2648
  %v2875 = vpop.f32.mrb[0].mxu0
  %v2876 = vadd.f32 0.0, %v2875
  %v2877 = vpop.f32.mrb[0].mxu0
  %2878 = vmatprep.mubr.f32.mxu0 0.0
  %2879 = vmatmul.mubr.f32.gmra.mrb[0].mxu0 %v2650
  %v2880 = vpop.f32.mrb[0].mxu0
  %v2881 = vadd.f32 0.0, %v2880
  %v2882 = vpop.f32.mrb[0].mxu0
  %2883 = vmatprep.mubr.f32.mxu0 0.0
  %2884 = vmatmul.mubr.f32.gmra.mrb[0].mxu0 %v460
  %v2885 = vpop.f32.mrb[0].mxu0
  %v2886 = vadd.f32 0.0, %v2885
  %v2887 = vpop.f32.mrb[0].mxu0
  %2888 = vmatprep.mubr.f32.mxu0 0.0
  %2889 = vmatmul.mubr.f32.gmra.mrb[0].mxu0 %v462
  %v2890 = vpop.f32.mrb[0].mxu0
  %v2891 = vadd.f32 0.0, %v2890
  %v2892 = vpop.f32.mrb[0].mxu0
  %2893 = vmatprep.mubr.f32.mxu0 0.0
  %2894 = vmatmul.mubr.f32.gmra.mrb[0].mxu0 %v464
  %v2895 = vpop.f32.mrb[0].mxu0
  %v2896 = vadd.f32 0.0, %v2895
  %v2897 = vpop.f32.mrb[0].mxu0
  %2898 = vmatprep.mubr.f32.mxu0 0.0
  %2899 = vmatmul.mubr.f32.gmra.mrb[0].mxu0 %v466
  %v2900 = vpop.f32.mrb[0].mxu0
  %v2901 = vadd.f32 0.0, %v2900
  %v2902 = vpop.f32.mrb[0].mxu0
  %2903 = vmatprep.mubr.f32.mxu0 0.0
  %2904 = vmatmul.mubr.f32.gmra.mrb[0].mxu0 %v468
  %v2905 = vpop.f32.mrb[0].mxu0
  %v2906 = vadd.f32 0.0, %v2905
  %v2907 = vpop.f32.mrb[0].mxu0
  %2908 = vmatprep.mubr.f32.mxu0 0.0
  %2909 = vmatmul.mubr.f32.gmra.mrb[0].mxu0 %v470
  %v2910 = vpop.f32.mrb[0].mxu0
  %v2911 = vadd.f32 0.0, %v2910
  %v2912 = vpop.f32.mrb[0].mxu0
  %2913 = vmatprep.mubr.f32.mxu0 0.0
  %2914 = vmatmul.mubr.f32.gmra.mrb[0].mxu0 %v472
  %v2915 = vpop.f32.mrb[0].mxu0
  %v2916 = vadd.f32 0.0, %v2915
  %v2917 = vpop.f32.mrb[0].mxu0
  %2918 = vmatprep.mubr.f32.mxu0 0.0
  %2919 = vmatmul.mubr.f32.gmra.mrb[0].mxu0 %v474
  %v2920 = vpop.f32.mrb[0].mxu0
  %v2921 = vadd.f32 0.0, %v2920
  %v2922 = vpop.f32.mrb[0].mxu0
  %2923 = vmatprep.mubr.f32.mxu0 0.0
  %2924 = vmatmul.mubr.f32.gmra.mrb[0].mxu0 %v476
  %v2925 = vpop.f32.mrb[0].mxu0
  %v2926 = vadd.f32 0.0, %v2925
  %v2927 = vpop.f32.mrb[0].mxu0
  %2928 = vmatprep.mubr.f32.mxu0 0.0
  %2929 = vmatmul.mubr.f32.gmra.mrb[0].mxu0 %v478
  %v2930 = vpop.f32.mrb[0].mxu0
  %v2931 = vadd.f32 0.0, %v2930
  %v2932 = vpop.f32.mrb[0].mxu0
  %2933 = vmatprep.mubr.f32.mxu0 0.0
  %2934 = vmatmul.mubr.f32.gmra.mrb[0].mxu0 %v480
  %v2935 = vpop.f32.mrb[0].mxu0
  %v2936 = vadd.f32 0.0, %v2935
  %v2937 = vpop.f32.mrb[0].mxu0
  %2938 = vmatprep.mubr.f32.mxu0 0.0
  %2939 = vmatmul.mubr.f32.gmra.mrb[0].mxu0 %v482
  %v2940 = vpop.f32.mrb[0].mxu0
  %v2941 = vadd.f32 0.0, %v2940
  %v2942 = vpop.f32.mrb[0].mxu0
  %2943 = vmatprep.mubr.f32.mxu0 0.0
  %2944 = vmatmul.mubr.f32.gmra.mrb[0].mxu0 %v484
  %v2945 = vpop.f32.mrb[0].mxu0
  %v2946 = vadd.f32 0.0, %v2945
  %v2947 = vpop.f32.mrb[0].mxu0
  %2948 = vmatprep.mubr.f32.mxu0 0.0
  %2949 = vmatmul.mubr.f32.gmra.mrb[0].mxu0 %v486
  %v2950 = vpop.f32.mrb[0].mxu0
  %v2951 = vadd.f32 0.0, %v2950
  %v2952 = vpop.f32.mrb[0].mxu0
  %2953 = vmatprep.mubr.f32.mxu0 0.0
  %2954 = vmatmul.mubr.f32.gmra.mrb[0].mxu0 %v488
  %v2955 = vpop.f32.mrb[0].mxu0
  %v2956 = vadd.f32 0.0, %v2955
  %v2957 = vpop.f32.mrb[0].mxu0
  %2958 = vmatprep.mubr.f32.mxu0 0.0
  %2959 = vmatmul.mubr.f32.gmra.mrb[0].mxu0 %v490
  %v2960 = vpop.f32.mrb[0].mxu0
  %v2961 = vadd.f32 0.0, %v2960
  %v2962 = vpop.f32.mrb[0].mxu0
  %2963 = vmatprep.mubr.f32.mxu0 0.0
  %2964 = vmatmul.mubr.f32.gmra.mrb[0].mxu0 %v492
  %v2965 = vpop.f32.mrb[0].mxu0
  %v2966 = vadd.f32 0.0, %v2965
  %v2967 = vpop.f32.mrb[0].mxu0
  %2968 = vmatprep.mubr.f32.mxu0 0.0
  %2969 = vmatmul.mubr.f32.gmra.mrb[0].mxu0 %v494
  %v2970 = vpop.f32.mrb[0].mxu0
  %v2971 = vadd.f32 0.0, %v2970
  %v2972 = vpop.f32.mrb[0].mxu0
  %2973 = vmatprep.mubr.f32.mxu0 0.0
  %2974 = vmatmul.mubr.f32.gmra.mrb[0].mxu0 %v496
  %v2975 = vpop.f32.mrb[0].mxu0
  %v2976 = vadd.f32 0.0, %v2975
  %v2977 = vpop.f32.mrb[0].mxu0
  %2978 = vmatprep.mubr.f32.mxu0 0.0
  %2979 = vmatmul.mubr.f32.gmra.mrb[0].mxu0 %v498
  %v2980 = vpop.f32.mrb[0].mxu0
  %v2981 = vadd.f32 0.0, %v2980
  %v2982 = vpop.f32.mrb[0].mxu0
  %2983 = vmatprep.mubr.f32.mxu0 0.0
  %2984 = vmatmul.mubr.f32.gmra.mrb[0].mxu0 %v500
  %v2985 = vpop.f32.mrb[0].mxu0
  %v2986 = vadd.f32 0.0, %v2985
  %v2987 = vpop.f32.mrb[0].mxu0
  %2988 = vmatprep.mubr.f32.mxu0 0.0
  %2989 = vmatmul.mubr.f32.gmra.mrb[0].mxu0 %v502
  %v2990 = vpop.f32.mrb[0].mxu0
  %v2991 = vadd.f32 0.0, %v2990
  %v2992 = vpop.f32.mrb[0].mxu0
  %2993 = vmatprep.mubr.f32.mxu0 0.0
  %2994 = vmatmul.mubr.f32.gmra.mrb[0].mxu0 %v504
  %v2995 = vpop.f32.mrb[0].mxu0
  %v2996 = vadd.f32 0.0, %v2995
  %v2997 = vpop.f32.mrb[0].mxu0
  %2998 = vmatprep.mubr.f32.mxu0 0.0
  %2999 = vmatmul.mubr.f32.gmra.mrb[0].mxu0 %v506
  %v3000 = vpop.f32.mrb[0].mxu0
  %v3001 = vadd.f32 0.0, %v3000
  %v3002 = vpop.f32.mrb[0].mxu0
  %3003 = vmatprep.mubr.f32.mxu0 0.0
  %3004 = vmatmul.mubr.f32.gmra.mrb[0].mxu0 %v508
  %v3005 = vpop.f32.mrb[0].mxu0
  %v3006 = vadd.f32 0.0, %v3005
  %v3007 = vpop.f32.mrb[0].mxu0
  %3008 = vmatprep.mubr.f32.mxu0 0.0
  %3009 = vmatmul.mubr.f32.gmra.mrb[0].mxu0 %v510
  %v3010 = vpop.f32.mrb[0].mxu0
  %v3011 = vadd.f32 0.0, %v3010
  %v3012 = vpop.f32.mrb[0].mxu0
  %3013 = vmatprep.mubr.f32.mxu0 0.0
  %3014 = vmatmul.mubr.f32.gmra.mrb[0].mxu0 %v512
  %v3015 = vpop.f32.mrb[0].mxu0
  %v3016 = vadd.f32 0.0, %v3015
  %v3017 = vpop.f32.mrb[0].mxu0
  %3018 = vmatprep.mubr.f32.mxu0 0.0
  %3019 = vmatmul.mubr.f32.gmra.mrb[0].mxu0 %v514
  %v3020 = vpop.f32.mrb[0].mxu0
  %v3021 = vadd.f32 0.0, %v3020
  %v3022 = vpop.f32.mrb[0].mxu0
  %3023 = vmatprep.mubr.f32.mxu0 0.0
  %3024 = vmatmul.mubr.f32.gmra.mrb[0].mxu0 %v516
  %v3025 = vpop.f32.mrb[0].mxu0
  %v3026 = vadd.f32 0.0, %v3025
  %v3027 = vpop.f32.mrb[0].mxu0
  %3028 = vmatprep.mubr.f32.mxu0 0.0
  %3029 = vmatmul.mubr.f32.gmra.mrb[0].mxu0 %v518
  %v3030 = vpop.f32.mrb[0].mxu0
  %v3031 = vadd.f32 0.0, %v3030
  %v3032 = vpop.f32.mrb[0].mxu0
  %3033 = vmatprep.mubr.f32.mxu0 0.0
  %3034 = vmatmul.mubr.f32.gmra.mrb[0].mxu0 %v2652
  %v3035 = vpop.f32.mrb[0].mxu0
  %v3036 = vadd.f32 0.0, %v3035
  %v3037 = vpop.f32.mrb[0].mxu0
  %3038 = vmatprep.mubr.f32.mxu0 0.0
  %3039 = vmatmul.mubr.f32.gmra.mrb[0].mxu0 %v2654
  %v3040 = vpop.f32.mrb[0].mxu0
  %v3041 = vadd.f32 0.0, %v3040
  %v3042 = vpop.f32.mrb[0].mxu0
  %3043 = vdwg.mxu0
  %v3044 = vadd.f32 %v2570, %v2726
  %v3045 = vadd.f32 %v2571, %v2731
  %v3046 = vadd.f32 %v2572, %v2736
  %v3047 = vadd.f32 %v2573, %v2741
  %v3048 = vadd.f32 %v2574, %v2746
  %v3049 = vadd.f32 %v2575, %v2751
  %v3050 = vadd.f32 %v2576, %v2756
  %v3051 = vadd.f32 %v2577, %v2761
  %v3052 = vadd.f32 %v2578, %v2766
  %v3053 = vadd.f32 %v2579, %v2771
  %v3054 = vadd.f32 %v2580, %v2776
  %v3055 = vadd.f32 %v2581, %v2781
  %v3056 = vadd.f32 %v2582, %v2786
  %v3057 = vadd.f32 %v2583, %v2791
  %v3058 = vadd.f32 %v2584, %v2796
  %v3059 = vadd.f32 %v2585, %v2801
  %v3060 = vadd.f32 %v2586, %v2806
  %v3061 = vadd.f32 %v2587, %v2811
  %v3062 = vadd.f32 %v2588, %v2816
  %v3063 = vadd.f32 %v2589, %v2821
  %v3064 = vadd.f32 %v2590, %v2826
  %v3065 = vadd.f32 %v2591, %v2831
  %v3066 = vadd.f32 %v2592, %v2836
  %v3067 = vadd.f32 %v2593, %v2841
  %v3068 = vadd.f32 %v2594, %v2846
  %v3069 = vadd.f32 %v2595, %v2851
  %v3070 = vadd.f32 %v2596, %v2856
  %v3071 = vadd.f32 %v2597, %v2861
  %v3072 = vadd.f32 %v2598, %v2866
  %v3073 = vadd.f32 %v2599, %v2871
  %v3074 = vadd.f32 %v2600, %v2876
  %v3075 = vadd.f32 %v2601, %v2881
  %v3076 = vadd.f32 %v2602, %v2886
  %v3077 = vadd.f32 %v2603, %v2891
  %v3078 = vadd.f32 %v2604, %v2896
  %v3079 = vadd.f32 %v2605, %v2901
  %v3080 = vadd.f32 %v2606, %v2906
  %v3081 = vadd.f32 %v2607, %v2911
  %v3082 = vadd.f32 %v2608, %v2916
  %v3083 = vadd.f32 %v2609, %v2921
  %v3084 = vadd.f32 %v2610, %v2926
  %v3085 = vadd.f32 %v2611, %v2931
  %v3086 = vadd.f32 %v2612, %v2936
  %v3087 = vadd.f32 %v2613, %v2941
  %v3088 = vadd.f32 %v2614, %v2946
  %v3089 = vadd.f32 %v2615, %v2951
  %v3090 = vadd.f32 %v2616, %v2956
  %v3091 = vadd.f32 %v2617, %v2961
  %v3092 = vadd.f32 %v2618, %v2966
  %v3093 = vadd.f32 %v2619, %v2971
  %v3094 = vadd.f32 %v2620, %v2976
  %v3095 = vadd.f32 %v2621, %v2981
  %v3096 = vadd.f32 %v2622, %v2986
  %v3097 = vadd.f32 %v2623, %v2991
  %v3098 = vadd.f32 %v2624, %v2996
  %v3099 = vadd.f32 %v2625, %v3001
  %v3100 = vadd.f32 %v2626, %v3006
  %v3101 = vadd.f32 %v2627, %v3011
  %v3102 = vadd.f32 %v2628, %v3016
  %v3103 = vadd.f32 %v2629, %v3021
  %v3104 = vadd.f32 %v2630, %v3026
  %v3105 = vadd.f32 %v2631, %v3031
  %v3106 = vadd.f32 %v2632, %v3036
  %v3107 = vadd.f32 %v2633, %v3041
  %v3108 = vrot.slane %v71, 2
  %v3109 = vrot.slane %v72, 2
  %v3110 = vsel %vm1425, %v3108, %v3109
  %v3111 = vrot.slane %v73, 2
  %v3112 = vsel %vm1425, %v3109, %v3111
  %v3113 = vrot.slane %v125, 2
  %v3114 = vrot.slane %v126, 2
  %v3115 = vsel %vm1425, %v3113, %v3114
  %v3116 = vrot.slane %v127, 2
  %v3117 = vsel %vm1425, %v3114, %v3116
  %s3118 = scalar_lea.vmem %s1, 20
  %v3119 = vld [vmem:[%s3118] sm:$0xf]
  %v3120 = vsel %vm391, %v3110, 0
  %v3122 = vsel %vm391, %v3112, 0
  %v3124 = vsel %vm391, %v3115, 0
  %v3126 = vsel %vm391, %v3117, 0
  %v3129 = vsel %vm520, %v3119, 0
  %3131 = vmatprep.subr.mxu0 0.0
  %3132 = vmatpush1.msra.mxu0 %v3129
  %3133 = vmatprep.subr.mxu0 0.0
  %3134 = vmatpush1.msra.mxu0 0.0
  %3135 = vmatprep.subr.mxu0 0.0
  %3136 = vmatpush1.msra.mxu0 0.0
  %3137 = vmatprep.subr.mxu0 0.0
  %3138 = vmatpush1.msra.mxu0 0.0
  %3139 = vmatprep.subr.mxu0 0.0
  %3140 = vmatpush1.msra.mxu0 0.0
  %3141 = vmatprep.subr.mxu0 0.0
  %3142 = vmatpush1.msra.mxu0 0.0
  %3143 = vmatprep.subr.mxu0 0.0
  %3144 = vmatpush1.msra.mxu0 0.0
  %3145 = vmatprep.subr.mxu0 0.0
  %3146 = vmatpush1.msra.mxu0 0.0
  %3147 = vmatprep.subr.mxu0 0.0
  %3148 = vmatpush1.msra.mxu0 0.0
  %3149 = vmatprep.subr.mxu0 0.0
  %3150 = vmatpush1.msra.mxu0 0.0
  %3151 = vmatprep.subr.mxu0 0.0
  %3152 = vmatpush1.msra.mxu0 0.0
  %3153 = vmatprep.subr.mxu0 0.0
  %3154 = vmatpush1.msra.mxu0 0.0
  %3155 = vmatprep.subr.mxu0 0.0
  %3156 = vmatpush1.msra.mxu0 0.0
  %3157 = vmatprep.subr.mxu0 0.0
  %3158 = vmatpush1.msra.mxu0 0.0
  %3159 = vmatprep.subr.mxu0 0.0
  %3160 = vmatpush1.msra.mxu0 0.0
  %3161 = vmatprep.subr.mxu0 0.0
  %3162 = vmatpush1.msra.mxu0 0.0
  %3163 = vmatprep.subr.mxu0 0.0
  %3164 = vmatpush1.msra.mxu0 0.0
  %3165 = vmatprep.subr.mxu0 0.0
  %3166 = vmatpush1.msra.mxu0 0.0
  %3167 = vmatprep.subr.mxu0 0.0
  %3168 = vmatpush1.msra.mxu0 0.0
  %3169 = vmatprep.subr.mxu0 0.0
  %3170 = vmatpush1.msra.mxu0 0.0
  %3171 = vmatprep.subr.mxu0 0.0
  %3172 = vmatpush1.msra.mxu0 0.0
  %3173 = vmatprep.subr.mxu0 0.0
  %3174 = vmatpush1.msra.mxu0 0.0
  %3175 = vmatprep.subr.mxu0 0.0
  %3176 = vmatpush1.msra.mxu0 0.0
  %3177 = vmatprep.subr.mxu0 0.0
  %3178 = vmatpush1.msra.mxu0 0.0
  %3179 = vmatprep.subr.mxu0 0.0
  %3180 = vmatpush1.msra.mxu0 0.0
  %3181 = vmatprep.subr.mxu0 0.0
  %3182 = vmatpush1.msra.mxu0 0.0
  %3183 = vmatprep.subr.mxu0 0.0
  %3184 = vmatpush1.msra.mxu0 0.0
  %3185 = vmatprep.subr.mxu0 0.0
  %3186 = vmatpush1.msra.mxu0 0.0
  %3187 = vmatprep.subr.mxu0 0.0
  %3188 = vmatpush1.msra.mxu0 0.0
  %3189 = vmatprep.subr.mxu0 0.0
  %3190 = vmatpush1.msra.mxu0 0.0
  %3191 = vmatprep.subr.mxu0 0.0
  %3192 = vmatpush1.msra.mxu0 0.0
  %3193 = vmatprep.subr.mxu0 0.0
  %3194 = vmatpush1.msra.mxu0 0.0
  %3195 = vmatprep.mubr.f32.mxu0 0.0
  %3196 = vmatmul.mubr.f32.gmra.mrb[0].mxu0 %v1592
  %v3197 = vpop.f32.mrb[0].mxu0
  %v3198 = vadd.f32 0.0, %v3197
  %v3199 = vpop.f32.mrb[0].mxu0
  %3200 = vmatprep.mubr.f32.mxu0 0.0
  %3201 = vmatmul.mubr.f32.gmra.mrb[0].mxu0 %v1594
  %v3202 = vpop.f32.mrb[0].mxu0
  %v3203 = vadd.f32 0.0, %v3202
  %v3204 = vpop.f32.mrb[0].mxu0
  %3205 = vmatprep.mubr.f32.mxu0 0.0
  %3206 = vmatmul.mubr.f32.gmra.mrb[0].mxu0 %v1596
  %v3207 = vpop.f32.mrb[0].mxu0
  %v3208 = vadd.f32 0.0, %v3207
  %v3209 = vpop.f32.mrb[0].mxu0
  %3210 = vmatprep.mubr.f32.mxu0 0.0
  %3211 = vmatmul.mubr.f32.gmra.mrb[0].mxu0 %v1598
  %v3212 = vpop.f32.mrb[0].mxu0
  %v3213 = vadd.f32 0.0, %v3212
  %v3214 = vpop.f32.mrb[0].mxu0
  %3215 = vmatprep.mubr.f32.mxu0 0.0
  %3216 = vmatmul.mubr.f32.gmra.mrb[0].mxu0 %v1600
  %v3217 = vpop.f32.mrb[0].mxu0
  %v3218 = vadd.f32 0.0, %v3217
  %v3219 = vpop.f32.mrb[0].mxu0
  %3220 = vmatprep.mubr.f32.mxu0 0.0
  %3221 = vmatmul.mubr.f32.gmra.mrb[0].mxu0 %v1602
  %v3222 = vpop.f32.mrb[0].mxu0
  %v3223 = vadd.f32 0.0, %v3222
  %v3224 = vpop.f32.mrb[0].mxu0
  %3225 = vmatprep.mubr.f32.mxu0 0.0
  %3226 = vmatmul.mubr.f32.gmra.mrb[0].mxu0 %v1604
  %v3227 = vpop.f32.mrb[0].mxu0
  %v3228 = vadd.f32 0.0, %v3227
  %v3229 = vpop.f32.mrb[0].mxu0
  %3230 = vmatprep.mubr.f32.mxu0 0.0
  %3231 = vmatmul.mubr.f32.gmra.mrb[0].mxu0 %v1606
  %v3232 = vpop.f32.mrb[0].mxu0
  %v3233 = vadd.f32 0.0, %v3232
  %v3234 = vpop.f32.mrb[0].mxu0
  %3235 = vmatprep.mubr.f32.mxu0 0.0
  %3236 = vmatmul.mubr.f32.gmra.mrb[0].mxu0 %v1608
  %v3237 = vpop.f32.mrb[0].mxu0
  %v3238 = vadd.f32 0.0, %v3237
  %v3239 = vpop.f32.mrb[0].mxu0
  %3240 = vmatprep.mubr.f32.mxu0 0.0
  %3241 = vmatmul.mubr.f32.gmra.mrb[0].mxu0 %v1610
  %v3242 = vpop.f32.mrb[0].mxu0
  %v3243 = vadd.f32 0.0, %v3242
  %v3244 = vpop.f32.mrb[0].mxu0
  %3245 = vmatprep.mubr.f32.mxu0 0.0
  %3246 = vmatmul.mubr.f32.gmra.mrb[0].mxu0 %v1612
  %v3247 = vpop.f32.mrb[0].mxu0
  %v3248 = vadd.f32 0.0, %v3247
  %v3249 = vpop.f32.mrb[0].mxu0
  %3250 = vmatprep.mubr.f32.mxu0 0.0
  %3251 = vmatmul.mubr.f32.gmra.mrb[0].mxu0 %v1614
  %v3252 = vpop.f32.mrb[0].mxu0
  %v3253 = vadd.f32 0.0, %v3252
  %v3254 = vpop.f32.mrb[0].mxu0
  %3255 = vmatprep.mubr.f32.mxu0 0.0
  %3256 = vmatmul.mubr.f32.gmra.mrb[0].mxu0 %v1616
  %v3257 = vpop.f32.mrb[0].mxu0
  %v3258 = vadd.f32 0.0, %v3257
  %v3259 = vpop.f32.mrb[0].mxu0
  %3260 = vmatprep.mubr.f32.mxu0 0.0
  %3261 = vmatmul.mubr.f32.gmra.mrb[0].mxu0 %v1618
  %v3262 = vpop.f32.mrb[0].mxu0
  %v3263 = vadd.f32 0.0, %v3262
  %v3264 = vpop.f32.mrb[0].mxu0
  %3265 = vmatprep.mubr.f32.mxu0 0.0
  %3266 = vmatmul.mubr.f32.gmra.mrb[0].mxu0 %v1620
  %v3267 = vpop.f32.mrb[0].mxu0
  %v3268 = vadd.f32 0.0, %v3267
  %v3269 = vpop.f32.mrb[0].mxu0
  %3270 = vmatprep.mubr.f32.mxu0 0.0
  %3271 = vmatmul.mubr.f32.gmra.mrb[0].mxu0 %v1622
  %v3272 = vpop.f32.mrb[0].mxu0
  %v3273 = vadd.f32 0.0, %v3272
  %v3274 = vpop.f32.mrb[0].mxu0
  %3275 = vmatprep.mubr.f32.mxu0 0.0
  %3276 = vmatmul.mubr.f32.gmra.mrb[0].mxu0 %v1624
  %v3277 = vpop.f32.mrb[0].mxu0
  %v3278 = vadd.f32 0.0, %v3277
  %v3279 = vpop.f32.mrb[0].mxu0
  %3280 = vmatprep.mubr.f32.mxu0 0.0
  %3281 = vmatmul.mubr.f32.gmra.mrb[0].mxu0 %v1626
  %v3282 = vpop.f32.mrb[0].mxu0
  %v3283 = vadd.f32 0.0, %v3282
  %v3284 = vpop.f32.mrb[0].mxu0
  %3285 = vmatprep.mubr.f32.mxu0 0.0
  %3286 = vmatmul.mubr.f32.gmra.mrb[0].mxu0 %v1628
  %v3287 = vpop.f32.mrb[0].mxu0
  %v3288 = vadd.f32 0.0, %v3287
  %v3289 = vpop.f32.mrb[0].mxu0
  %3290 = vmatprep.mubr.f32.mxu0 0.0
  %3291 = vmatmul.mubr.f32.gmra.mrb[0].mxu0 %v1630
  %v3292 = vpop.f32.mrb[0].mxu0
  %v3293 = vadd.f32 0.0, %v3292
  %v3294 = vpop.f32.mrb[0].mxu0
  %3295 = vmatprep.mubr.f32.mxu0 0.0
  %3296 = vmatmul.mubr.f32.gmra.mrb[0].mxu0 %v1632
  %v3297 = vpop.f32.mrb[0].mxu0
  %v3298 = vadd.f32 0.0, %v3297
  %v3299 = vpop.f32.mrb[0].mxu0
  %3300 = vmatprep.mubr.f32.mxu0 0.0
  %3301 = vmatmul.mubr.f32.gmra.mrb[0].mxu0 %v1634
  %v3302 = vpop.f32.mrb[0].mxu0
  %v3303 = vadd.f32 0.0, %v3302
  %v3304 = vpop.f32.mrb[0].mxu0
  %3305 = vmatprep.mubr.f32.mxu0 0.0
  %3306 = vmatmul.mubr.f32.gmra.mrb[0].mxu0 %v1636
  %v3307 = vpop.f32.mrb[0].mxu0
  %v3308 = vadd.f32 0.0, %v3307
  %v3309 = vpop.f32.mrb[0].mxu0
  %3310 = vmatprep.mubr.f32.mxu0 0.0
  %3311 = vmatmul.mubr.f32.gmra.mrb[0].mxu0 %v1638
  %v3312 = vpop.f32.mrb[0].mxu0
  %v3313 = vadd.f32 0.0, %v3312
  %v3314 = vpop.f32.mrb[0].mxu0
  %3315 = vmatprep.mubr.f32.mxu0 0.0
  %3316 = vmatmul.mubr.f32.gmra.mrb[0].mxu0 %v1640
  %v3317 = vpop.f32.mrb[0].mxu0
  %v3318 = vadd.f32 0.0, %v3317
  %v3319 = vpop.f32.mrb[0].mxu0
  %3320 = vmatprep.mubr.f32.mxu0 0.0
  %3321 = vmatmul.mubr.f32.gmra.mrb[0].mxu0 %v1642
  %v3322 = vpop.f32.mrb[0].mxu0
  %v3323 = vadd.f32 0.0, %v3322
  %v3324 = vpop.f32.mrb[0].mxu0
  %3325 = vmatprep.mubr.f32.mxu0 0.0
  %3326 = vmatmul.mubr.f32.gmra.mrb[0].mxu0 %v1644
  %v3327 = vpop.f32.mrb[0].mxu0
  %v3328 = vadd.f32 0.0, %v3327
  %v3329 = vpop.f32.mrb[0].mxu0
  %3330 = vmatprep.mubr.f32.mxu0 0.0
  %3331 = vmatmul.mubr.f32.gmra.mrb[0].mxu0 %v1646
  %v3332 = vpop.f32.mrb[0].mxu0
  %v3333 = vadd.f32 0.0, %v3332
  %v3334 = vpop.f32.mrb[0].mxu0
  %3335 = vmatprep.mubr.f32.mxu0 0.0
  %3336 = vmatmul.mubr.f32.gmra.mrb[0].mxu0 %v1648
  %v3337 = vpop.f32.mrb[0].mxu0
  %v3338 = vadd.f32 0.0, %v3337
  %v3339 = vpop.f32.mrb[0].mxu0
  %3340 = vmatprep.mubr.f32.mxu0 0.0
  %3341 = vmatmul.mubr.f32.gmra.mrb[0].mxu0 %v1650
  %v3342 = vpop.f32.mrb[0].mxu0
  %v3343 = vadd.f32 0.0, %v3342
  %v3344 = vpop.f32.mrb[0].mxu0
  %3345 = vmatprep.mubr.f32.mxu0 0.0
  %3346 = vmatmul.mubr.f32.gmra.mrb[0].mxu0 %v3120
  %v3347 = vpop.f32.mrb[0].mxu0
  %v3348 = vadd.f32 0.0, %v3347
  %v3349 = vpop.f32.mrb[0].mxu0
  %3350 = vmatprep.mubr.f32.mxu0 0.0
  %3351 = vmatmul.mubr.f32.gmra.mrb[0].mxu0 %v3122
  %v3352 = vpop.f32.mrb[0].mxu0
  %v3353 = vadd.f32 0.0, %v3352
  %v3354 = vpop.f32.mrb[0].mxu0
  %3355 = vmatprep.mubr.f32.mxu0 0.0
  %3356 = vmatmul.mubr.f32.gmra.mrb[0].mxu0 %v1656
  %v3357 = vpop.f32.mrb[0].mxu0
  %v3358 = vadd.f32 0.0, %v3357
  %v3359 = vpop.f32.mrb[0].mxu0
  %3360 = vmatprep.mubr.f32.mxu0 0.0
  %3361 = vmatmul.mubr.f32.gmra.mrb[0].mxu0 %v1658
  %v3362 = vpop.f32.mrb[0].mxu0
  %v3363 = vadd.f32 0.0, %v3362
  %v3364 = vpop.f32.mrb[0].mxu0
  %3365 = vmatprep.mubr.f32.mxu0 0.0
  %3366 = vmatmul.mubr.f32.gmra.mrb[0].mxu0 %v1660
  %v3367 = vpop.f32.mrb[0].mxu0
  %v3368 = vadd.f32 0.0, %v3367
  %v3369 = vpop.f32.mrb[0].mxu0
  %3370 = vmatprep.mubr.f32.mxu0 0.0
  %3371 = vmatmul.mubr.f32.gmra.mrb[0].mxu0 %v1662
  %v3372 = vpop.f32.mrb[0].mxu0
  %v3373 = vadd.f32 0.0, %v3372
  %v3374 = vpop.f32.mrb[0].mxu0
  %3375 = vmatprep.mubr.f32.mxu0 0.0
  %3376 = vmatmul.mubr.f32.gmra.mrb[0].mxu0 %v1664
  %v3377 = vpop.f32.mrb[0].mxu0
  %v3378 = vadd.f32 0.0, %v3377
  %v3379 = vpop.f32.mrb[0].mxu0
  %3380 = vmatprep.mubr.f32.mxu0 0.0
  %3381 = vmatmul.mubr.f32.gmra.mrb[0].mxu0 %v1666
  %v3382 = vpop.f32.mrb[0].mxu0
  %v3383 = vadd.f32 0.0, %v3382
  %v3384 = vpop.f32.mrb[0].mxu0
  %3385 = vmatprep.mubr.f32.mxu0 0.0
  %3386 = vmatmul.mubr.f32.gmra.mrb[0].mxu0 %v1668
  %v3387 = vpop.f32.mrb[0].mxu0
  %v3388 = vadd.f32 0.0, %v3387
  %v3389 = vpop.f32.mrb[0].mxu0
  %3390 = vmatprep.mubr.f32.mxu0 0.0
  %3391 = vmatmul.mubr.f32.gmra.mrb[0].mxu0 %v1670
  %v3392 = vpop.f32.mrb[0].mxu0
  %v3393 = vadd.f32 0.0, %v3392
  %v3394 = vpop.f32.mrb[0].mxu0
  %3395 = vmatprep.mubr.f32.mxu0 0.0
  %3396 = vmatmul.mubr.f32.gmra.mrb[0].mxu0 %v1672
  %v3397 = vpop.f32.mrb[0].mxu0
  %v3398 = vadd.f32 0.0, %v3397
  %v3399 = vpop.f32.mrb[0].mxu0
  %3400 = vmatprep.mubr.f32.mxu0 0.0
  %3401 = vmatmul.mubr.f32.gmra.mrb[0].mxu0 %v1674
  %v3402 = vpop.f32.mrb[0].mxu0
  %v3403 = vadd.f32 0.0, %v3402
  %v3404 = vpop.f32.mrb[0].mxu0
  %3405 = vmatprep.mubr.f32.mxu0 0.0
  %3406 = vmatmul.mubr.f32.gmra.mrb[0].mxu0 %v1676
  %v3407 = vpop.f32.mrb[0].mxu0
  %v3408 = vadd.f32 0.0, %v3407
  %v3409 = vpop.f32.mrb[0].mxu0
  %3410 = vmatprep.mubr.f32.mxu0 0.0
  %3411 = vmatmul.mubr.f32.gmra.mrb[0].mxu0 %v1678
  %v3412 = vpop.f32.mrb[0].mxu0
  %v3413 = vadd.f32 0.0, %v3412
  %v3414 = vpop.f32.mrb[0].mxu0
  %3415 = vmatprep.mubr.f32.mxu0 0.0
  %3416 = vmatmul.mubr.f32.gmra.mrb[0].mxu0 %v1680
  %v3417 = vpop.f32.mrb[0].mxu0
  %v3418 = vadd.f32 0.0, %v3417
  %v3419 = vpop.f32.mrb[0].mxu0
  %3420 = vmatprep.mubr.f32.mxu0 0.0
  %3421 = vmatmul.mubr.f32.gmra.mrb[0].mxu0 %v1682
  %v3422 = vpop.f32.mrb[0].mxu0
  %v3423 = vadd.f32 0.0, %v3422
  %v3424 = vpop.f32.mrb[0].mxu0
  %3425 = vmatprep.mubr.f32.mxu0 0.0
  %3426 = vmatmul.mubr.f32.gmra.mrb[0].mxu0 %v1684
  %v3427 = vpop.f32.mrb[0].mxu0
  %v3428 = vadd.f32 0.0, %v3427
  %v3429 = vpop.f32.mrb[0].mxu0
  %3430 = vmatprep.mubr.f32.mxu0 0.0
  %3431 = vmatmul.mubr.f32.gmra.mrb[0].mxu0 %v1686
  %v3432 = vpop.f32.mrb[0].mxu0
  %v3433 = vadd.f32 0.0, %v3432
  %v3434 = vpop.f32.mrb[0].mxu0
  %3435 = vmatprep.mubr.f32.mxu0 0.0
  %3436 = vmatmul.mubr.f32.gmra.mrb[0].mxu0 %v1688
  %v3437 = vpop.f32.mrb[0].mxu0
  %v3438 = vadd.f32 0.0, %v3437
  %v3439 = vpop.f32.mrb[0].mxu0
  %3440 = vmatprep.mubr.f32.mxu0 0.0
  %3441 = vmatmul.mubr.f32.gmra.mrb[0].mxu0 %v1690
  %v3442 = vpop.f32.mrb[0].mxu0
  %v3443 = vadd.f32 0.0, %v3442
  %v3444 = vpop.f32.mrb[0].mxu0
  %3445 = vmatprep.mubr.f32.mxu0 0.0
  %3446 = vmatmul.mubr.f32.gmra.mrb[0].mxu0 %v1692
  %v3447 = vpop.f32.mrb[0].mxu0
  %v3448 = vadd.f32 0.0, %v3447
  %v3449 = vpop.f32.mrb[0].mxu0
  %3450 = vmatprep.mubr.f32.mxu0 0.0
  %3451 = vmatmul.mubr.f32.gmra.mrb[0].mxu0 %v1694
  %v3452 = vpop.f32.mrb[0].mxu0
  %v3453 = vadd.f32 0.0, %v3452
  %v3454 = vpop.f32.mrb[0].mxu0
  %3455 = vmatprep.mubr.f32.mxu0 0.0
  %3456 = vmatmul.mubr.f32.gmra.mrb[0].mxu0 %v1696
  %v3457 = vpop.f32.mrb[0].mxu0
  %v3458 = vadd.f32 0.0, %v3457
  %v3459 = vpop.f32.mrb[0].mxu0
  %3460 = vmatprep.mubr.f32.mxu0 0.0
  %3461 = vmatmul.mubr.f32.gmra.mrb[0].mxu0 %v1698
  %v3462 = vpop.f32.mrb[0].mxu0
  %v3463 = vadd.f32 0.0, %v3462
  %v3464 = vpop.f32.mrb[0].mxu0
  %3465 = vmatprep.mubr.f32.mxu0 0.0
  %3466 = vmatmul.mubr.f32.gmra.mrb[0].mxu0 %v1700
  %v3467 = vpop.f32.mrb[0].mxu0
  %v3468 = vadd.f32 0.0, %v3467
  %v3469 = vpop.f32.mrb[0].mxu0
  %3470 = vmatprep.mubr.f32.mxu0 0.0
  %3471 = vmatmul.mubr.f32.gmra.mrb[0].mxu0 %v1702
  %v3472 = vpop.f32.mrb[0].mxu0
  %v3473 = vadd.f32 0.0, %v3472
  %v3474 = vpop.f32.mrb[0].mxu0
  %3475 = vmatprep.mubr.f32.mxu0 0.0
  %3476 = vmatmul.mubr.f32.gmra.mrb[0].mxu0 %v1704
  %v3477 = vpop.f32.mrb[0].mxu0
  %v3478 = vadd.f32 0.0, %v3477
  %v3479 = vpop.f32.mrb[0].mxu0
  %3480 = vmatprep.mubr.f32.mxu0 0.0
  %3481 = vmatmul.mubr.f32.gmra.mrb[0].mxu0 %v1706
  %v3482 = vpop.f32.mrb[0].mxu0
  %v3483 = vadd.f32 0.0, %v3482
  %v3484 = vpop.f32.mrb[0].mxu0
  %3485 = vmatprep.mubr.f32.mxu0 0.0
  %3486 = vmatmul.mubr.f32.gmra.mrb[0].mxu0 %v1708
  %v3487 = vpop.f32.mrb[0].mxu0
  %v3488 = vadd.f32 0.0, %v3487
  %v3489 = vpop.f32.mrb[0].mxu0
  %3490 = vmatprep.mubr.f32.mxu0 0.0
  %3491 = vmatmul.mubr.f32.gmra.mrb[0].mxu0 %v1710
  %v3492 = vpop.f32.mrb[0].mxu0
  %v3493 = vadd.f32 0.0, %v3492
  %v3494 = vpop.f32.mrb[0].mxu0
  %3495 = vmatprep.mubr.f32.mxu0 0.0
  %3496 = vmatmul.mubr.f32.gmra.mrb[0].mxu0 %v1712
  %v3497 = vpop.f32.mrb[0].mxu0
  %v3498 = vadd.f32 0.0, %v3497
  %v3499 = vpop.f32.mrb[0].mxu0
  %3500 = vmatprep.mubr.f32.mxu0 0.0
  %3501 = vmatmul.mubr.f32.gmra.mrb[0].mxu0 %v1714
  %v3502 = vpop.f32.mrb[0].mxu0
  %v3503 = vadd.f32 0.0, %v3502
  %v3504 = vpop.f32.mrb[0].mxu0
  %3505 = vmatprep.mubr.f32.mxu0 0.0
  %3506 = vmatmul.mubr.f32.gmra.mrb[0].mxu0 %v3124
  %v3507 = vpop.f32.mrb[0].mxu0
  %v3508 = vadd.f32 0.0, %v3507
  %v3509 = vpop.f32.mrb[0].mxu0
  %3510 = vmatprep.mubr.f32.mxu0 0.0
  %3511 = vmatmul.mubr.f32.gmra.mrb[0].mxu0 %v3126
  %v3512 = vpop.f32.mrb[0].mxu0
  %v3513 = vadd.f32 0.0, %v3512
  %v3514 = vpop.f32.mrb[0].mxu0
  %3515 = vdwg.mxu0
  %v3516 = vadd.f32 %v3044, %v3198
  %v3517 = vadd.f32 %v3045, %v3203
  %v3518 = vadd.f32 %v3046, %v3208
  %v3519 = vadd.f32 %v3047, %v3213
  %v3520 = vadd.f32 %v3048, %v3218
  %v3521 = vadd.f32 %v3049, %v3223
  %v3522 = vadd.f32 %v3050, %v3228
  %v3523 = vadd.f32 %v3051, %v3233
  %v3524 = vadd.f32 %v3052, %v3238
  %v3525 = vadd.f32 %v3053, %v3243
  %v3526 = vadd.f32 %v3054, %v3248
  %v3527 = vadd.f32 %v3055, %v3253
  %v3528 = vadd.f32 %v3056, %v3258
  %v3529 = vadd.f32 %v3057, %v3263
  %v3530 = vadd.f32 %v3058, %v3268
  %v3531 = vadd.f32 %v3059, %v3273
  %v3532 = vadd.f32 %v3060, %v3278
  %v3533 = vadd.f32 %v3061, %v3283
  %v3534 = vadd.f32 %v3062, %v3288
  %v3535 = vadd.f32 %v3063, %v3293
  %v3536 = vadd.f32 %v3064, %v3298
  %v3537 = vadd.f32 %v3065, %v3303
  %v3538 = vadd.f32 %v3066, %v3308
  %v3539 = vadd.f32 %v3067, %v3313
  %v3540 = vadd.f32 %v3068, %v3318
  %v3541 = vadd.f32 %v3069, %v3323
  %v3542 = vadd.f32 %v3070, %v3328
  %v3543 = vadd.f32 %v3071, %v3333
  %v3544 = vadd.f32 %v3072, %v3338
  %v3545 = vadd.f32 %v3073, %v3343
  %v3546 = vadd.f32 %v3074, %v3348
  %v3547 = vadd.f32 %v3075, %v3353
  %v3548 = vadd.f32 %v3076, %v3358
  %v3549 = vadd.f32 %v3077, %v3363
  %v3550 = vadd.f32 %v3078, %v3368
  %v3551 = vadd.f32 %v3079, %v3373
  %v3552 = vadd.f32 %v3080, %v3378
  %v3553 = vadd.f32 %v3081, %v3383
  %v3554 = vadd.f32 %v3082, %v3388
  %v3555 = vadd.f32 %v3083, %v3393
  %v3556 = vadd.f32 %v3084, %v3398
  %v3557 = vadd.f32 %v3085, %v3403
  %v3558 = vadd.f32 %v3086, %v3408
  %v3559 = vadd.f32 %v3087, %v3413
  %v3560 = vadd.f32 %v3088, %v3418
  %v3561 = vadd.f32 %v3089, %v3423
  %v3562 = vadd.f32 %v3090, %v3428
  %v3563 = vadd.f32 %v3091, %v3433
  %v3564 = vadd.f32 %v3092, %v3438
  %v3565 = vadd.f32 %v3093, %v3443
  %v3566 = vadd.f32 %v3094, %v3448
  %v3567 = vadd.f32 %v3095, %v3453
  %v3568 = vadd.f32 %v3096, %v3458
  %v3569 = vadd.f32 %v3097, %v3463
  %v3570 = vadd.f32 %v3098, %v3468
  %v3571 = vadd.f32 %v3099, %v3473
  %v3572 = vadd.f32 %v3100, %v3478
  %v3573 = vadd.f32 %v3101, %v3483
  %v3574 = vadd.f32 %v3102, %v3488
  %v3575 = vadd.f32 %v3103, %v3493
  %v3576 = vadd.f32 %v3104, %v3498
  %v3577 = vadd.f32 %v3105, %v3503
  %v3578 = vadd.f32 %v3106, %v3508
  %v3579 = vadd.f32 %v3107, %v3513
  %s3580 = scalar_lea.vmem %s1, 24
  %v3581 = vld [vmem:[%s3580] sm:$0xf]
  %v3583 = vsel %vm391, %v74, 0
  %v3586 = vsel %vm391, %v75, 0
  %v3589 = vsel %vm391, %v128, 0
  %v3592 = vsel %vm391, %v129, 0
  %v3595 = vsel %vm520, %v3581, 0
  %3597 = vmatprep.subr.mxu0 0.0
  %3598 = vmatpush1.msra.mxu0 %v3595
  %3599 = vmatprep.subr.mxu0 0.0
  %3600 = vmatpush1.msra.mxu0 0.0
  %3601 = vmatprep.subr.mxu0 0.0
  %3602 = vmatpush1.msra.mxu0 0.0
  %3603 = vmatprep.subr.mxu0 0.0
  %3604 = vmatpush1.msra.mxu0 0.0
  %3605 = vmatprep.subr.mxu0 0.0
  %3606 = vmatpush1.msra.mxu0 0.0
  %3607 = vmatprep.subr.mxu0 0.0
  %3608 = vmatpush1.msra.mxu0 0.0
  %3609 = vmatprep.subr.mxu0 0.0
  %3610 = vmatpush1.msra.mxu0 0.0
  %3611 = vmatprep.subr.mxu0 0.0
  %3612 = vmatpush1.msra.mxu0 0.0
  %3613 = vmatprep.subr.mxu0 0.0
  %3614 = vmatpush1.msra.mxu0 0.0
  %3615 = vmatprep.subr.mxu0 0.0
  %3616 = vmatpush1.msra.mxu0 0.0
  %3617 = vmatprep.subr.mxu0 0.0
  %3618 = vmatpush1.msra.mxu0 0.0
  %3619 = vmatprep.subr.mxu0 0.0
  %3620 = vmatpush1.msra.mxu0 0.0
  %3621 = vmatprep.subr.mxu0 0.0
  %3622 = vmatpush1.msra.mxu0 0.0
  %3623 = vmatprep.subr.mxu0 0.0
  %3624 = vmatpush1.msra.mxu0 0.0
  %3625 = vmatprep.subr.mxu0 0.0
  %3626 = vmatpush1.msra.mxu0 0.0
  %3627 = vmatprep.subr.mxu0 0.0
  %3628 = vmatpush1.msra.mxu0 0.0
  %3629 = vmatprep.subr.mxu0 0.0
  %3630 = vmatpush1.msra.mxu0 0.0
  %3631 = vmatprep.subr.mxu0 0.0
  %3632 = vmatpush1.msra.mxu0 0.0
  %3633 = vmatprep.subr.mxu0 0.0
  %3634 = vmatpush1.msra.mxu0 0.0
  %3635 = vmatprep.subr.mxu0 0.0
  %3636 = vmatpush1.msra.mxu0 0.0
  %3637 = vmatprep.subr.mxu0 0.0
  %3638 = vmatpush1.msra.mxu0 0.0
  %3639 = vmatprep.subr.mxu0 0.0
  %3640 = vmatpush1.msra.mxu0 0.0
  %3641 = vmatprep.subr.mxu0 0.0
  %3642 = vmatpush1.msra.mxu0 0.0
  %3643 = vmatprep.subr.mxu0 0.0
  %3644 = vmatpush1.msra.mxu0 0.0
  %3645 = vmatprep.subr.mxu0 0.0
  %3646 = vmatpush1.msra.mxu0 0.0
  %3647 = vmatprep.subr.mxu0 0.0
  %3648 = vmatpush1.msra.mxu0 0.0
  %3649 = vmatprep.subr.mxu0 0.0
  %3650 = vmatpush1.msra.mxu0 0.0
  %3651 = vmatprep.subr.mxu0 0.0
  %3652 = vmatpush1.msra.mxu0 0.0
  %3653 = vmatprep.subr.mxu0 0.0
  %3654 = vmatpush1.msra.mxu0 0.0
  %3655 = vmatprep.subr.mxu0 0.0
  %3656 = vmatpush1.msra.mxu0 0.0
  %3657 = vmatprep.subr.mxu0 0.0
  %3658 = vmatpush1.msra.mxu0 0.0
  %3659 = vmatprep.subr.mxu0 0.0
  %3660 = vmatpush1.msra.mxu0 0.0
  %3661 = vmatprep.mubr.f32.mxu0 0.0
  %3662 = vmatmul.mubr.f32.gmra.mrb[0].mxu0 %v917
  %v3663 = vpop.f32.mrb[0].mxu0
  %v3664 = vadd.f32 0.0, %v3663
  %v3665 = vpop.f32.mrb[0].mxu0
  %3666 = vmatprep.mubr.f32.mxu0 0.0
  %3667 = vmatmul.mubr.f32.gmra.mrb[0].mxu0 %v919
  %v3668 = vpop.f32.mrb[0].mxu0
  %v3669 = vadd.f32 0.0, %v3668
  %v3670 = vpop.f32.mrb[0].mxu0
  %3671 = vmatprep.mubr.f32.mxu0 0.0
  %3672 = vmatmul.mubr.f32.gmra.mrb[0].mxu0 %v921
  %v3673 = vpop.f32.mrb[0].mxu0
  %v3674 = vadd.f32 0.0, %v3673
  %v3675 = vpop.f32.mrb[0].mxu0
  %3676 = vmatprep.mubr.f32.mxu0 0.0
  %3677 = vmatmul.mubr.f32.gmra.mrb[0].mxu0 %v923
  %v3678 = vpop.f32.mrb[0].mxu0
  %v3679 = vadd.f32 0.0, %v3678
  %v3680 = vpop.f32.mrb[0].mxu0
  %3681 = vmatprep.mubr.f32.mxu0 0.0
  %3682 = vmatmul.mubr.f32.gmra.mrb[0].mxu0 %v925
  %v3683 = vpop.f32.mrb[0].mxu0
  %v3684 = vadd.f32 0.0, %v3683
  %v3685 = vpop.f32.mrb[0].mxu0
  %3686 = vmatprep.mubr.f32.mxu0 0.0
  %3687 = vmatmul.mubr.f32.gmra.mrb[0].mxu0 %v927
  %v3688 = vpop.f32.mrb[0].mxu0
  %v3689 = vadd.f32 0.0, %v3688
  %v3690 = vpop.f32.mrb[0].mxu0
  %3691 = vmatprep.mubr.f32.mxu0 0.0
  %3692 = vmatmul.mubr.f32.gmra.mrb[0].mxu0 %v929
  %v3693 = vpop.f32.mrb[0].mxu0
  %v3694 = vadd.f32 0.0, %v3693
  %v3695 = vpop.f32.mrb[0].mxu0
  %3696 = vmatprep.mubr.f32.mxu0 0.0
  %3697 = vmatmul.mubr.f32.gmra.mrb[0].mxu0 %v931
  %v3698 = vpop.f32.mrb[0].mxu0
  %v3699 = vadd.f32 0.0, %v3698
  %v3700 = vpop.f32.mrb[0].mxu0
  %3701 = vmatprep.mubr.f32.mxu0 0.0
  %3702 = vmatmul.mubr.f32.gmra.mrb[0].mxu0 %v933
  %v3703 = vpop.f32.mrb[0].mxu0
  %v3704 = vadd.f32 0.0, %v3703
  %v3705 = vpop.f32.mrb[0].mxu0
  %3706 = vmatprep.mubr.f32.mxu0 0.0
  %3707 = vmatmul.mubr.f32.gmra.mrb[0].mxu0 %v935
  %v3708 = vpop.f32.mrb[0].mxu0
  %v3709 = vadd.f32 0.0, %v3708
  %v3710 = vpop.f32.mrb[0].mxu0
  %3711 = vmatprep.mubr.f32.mxu0 0.0
  %3712 = vmatmul.mubr.f32.gmra.mrb[0].mxu0 %v937
  %v3713 = vpop.f32.mrb[0].mxu0
  %v3714 = vadd.f32 0.0, %v3713
  %v3715 = vpop.f32.mrb[0].mxu0
  %3716 = vmatprep.mubr.f32.mxu0 0.0
  %3717 = vmatmul.mubr.f32.gmra.mrb[0].mxu0 %v939
  %v3718 = vpop.f32.mrb[0].mxu0
  %v3719 = vadd.f32 0.0, %v3718
  %v3720 = vpop.f32.mrb[0].mxu0
  %3721 = vmatprep.mubr.f32.mxu0 0.0
  %3722 = vmatmul.mubr.f32.gmra.mrb[0].mxu0 %v941
  %v3723 = vpop.f32.mrb[0].mxu0
  %v3724 = vadd.f32 0.0, %v3723
  %v3725 = vpop.f32.mrb[0].mxu0
  %3726 = vmatprep.mubr.f32.mxu0 0.0
  %3727 = vmatmul.mubr.f32.gmra.mrb[0].mxu0 %v943
  %v3728 = vpop.f32.mrb[0].mxu0
  %v3729 = vadd.f32 0.0, %v3728
  %v3730 = vpop.f32.mrb[0].mxu0
  %3731 = vmatprep.mubr.f32.mxu0 0.0
  %3732 = vmatmul.mubr.f32.gmra.mrb[0].mxu0 %v945
  %v3733 = vpop.f32.mrb[0].mxu0
  %v3734 = vadd.f32 0.0, %v3733
  %v3735 = vpop.f32.mrb[0].mxu0
  %3736 = vmatprep.mubr.f32.mxu0 0.0
  %3737 = vmatmul.mubr.f32.gmra.mrb[0].mxu0 %v947
  %v3738 = vpop.f32.mrb[0].mxu0
  %v3739 = vadd.f32 0.0, %v3738
  %v3740 = vpop.f32.mrb[0].mxu0
  %3741 = vmatprep.mubr.f32.mxu0 0.0
  %3742 = vmatmul.mubr.f32.gmra.mrb[0].mxu0 %v949
  %v3743 = vpop.f32.mrb[0].mxu0
  %v3744 = vadd.f32 0.0, %v3743
  %v3745 = vpop.f32.mrb[0].mxu0
  %3746 = vmatprep.mubr.f32.mxu0 0.0
  %3747 = vmatmul.mubr.f32.gmra.mrb[0].mxu0 %v951
  %v3748 = vpop.f32.mrb[0].mxu0
  %v3749 = vadd.f32 0.0, %v3748
  %v3750 = vpop.f32.mrb[0].mxu0
  %3751 = vmatprep.mubr.f32.mxu0 0.0
  %3752 = vmatmul.mubr.f32.gmra.mrb[0].mxu0 %v953
  %v3753 = vpop.f32.mrb[0].mxu0
  %v3754 = vadd.f32 0.0, %v3753
  %v3755 = vpop.f32.mrb[0].mxu0
  %3756 = vmatprep.mubr.f32.mxu0 0.0
  %3757 = vmatmul.mubr.f32.gmra.mrb[0].mxu0 %v955
  %v3758 = vpop.f32.mrb[0].mxu0
  %v3759 = vadd.f32 0.0, %v3758
  %v3760 = vpop.f32.mrb[0].mxu0
  %3761 = vmatprep.mubr.f32.mxu0 0.0
  %3762 = vmatmul.mubr.f32.gmra.mrb[0].mxu0 %v957
  %v3763 = vpop.f32.mrb[0].mxu0
  %v3764 = vadd.f32 0.0, %v3763
  %v3765 = vpop.f32.mrb[0].mxu0
  %3766 = vmatprep.mubr.f32.mxu0 0.0
  %3767 = vmatmul.mubr.f32.gmra.mrb[0].mxu0 %v959
  %v3768 = vpop.f32.mrb[0].mxu0
  %v3769 = vadd.f32 0.0, %v3768
  %v3770 = vpop.f32.mrb[0].mxu0
  %3771 = vmatprep.mubr.f32.mxu0 0.0
  %3772 = vmatmul.mubr.f32.gmra.mrb[0].mxu0 %v961
  %v3773 = vpop.f32.mrb[0].mxu0
  %v3774 = vadd.f32 0.0, %v3773
  %v3775 = vpop.f32.mrb[0].mxu0
  %3776 = vmatprep.mubr.f32.mxu0 0.0
  %3777 = vmatmul.mubr.f32.gmra.mrb[0].mxu0 %v963
  %v3778 = vpop.f32.mrb[0].mxu0
  %v3779 = vadd.f32 0.0, %v3778
  %v3780 = vpop.f32.mrb[0].mxu0
  %3781 = vmatprep.mubr.f32.mxu0 0.0
  %3782 = vmatmul.mubr.f32.gmra.mrb[0].mxu0 %v965
  %v3783 = vpop.f32.mrb[0].mxu0
  %v3784 = vadd.f32 0.0, %v3783
  %v3785 = vpop.f32.mrb[0].mxu0
  %3786 = vmatprep.mubr.f32.mxu0 0.0
  %3787 = vmatmul.mubr.f32.gmra.mrb[0].mxu0 %v967
  %v3788 = vpop.f32.mrb[0].mxu0
  %v3789 = vadd.f32 0.0, %v3788
  %v3790 = vpop.f32.mrb[0].mxu0
  %3791 = vmatprep.mubr.f32.mxu0 0.0
  %3792 = vmatmul.mubr.f32.gmra.mrb[0].mxu0 %v969
  %v3793 = vpop.f32.mrb[0].mxu0
  %v3794 = vadd.f32 0.0, %v3793
  %v3795 = vpop.f32.mrb[0].mxu0
  %3796 = vmatprep.mubr.f32.mxu0 0.0
  %3797 = vmatmul.mubr.f32.gmra.mrb[0].mxu0 %v971
  %v3798 = vpop.f32.mrb[0].mxu0
  %v3799 = vadd.f32 0.0, %v3798
  %v3800 = vpop.f32.mrb[0].mxu0
  %3801 = vmatprep.mubr.f32.mxu0 0.0
  %3802 = vmatmul.mubr.f32.gmra.mrb[0].mxu0 %v2171
  %v3803 = vpop.f32.mrb[0].mxu0
  %v3804 = vadd.f32 0.0, %v3803
  %v3805 = vpop.f32.mrb[0].mxu0
  %3806 = vmatprep.mubr.f32.mxu0 0.0
  %3807 = vmatmul.mubr.f32.gmra.mrb[0].mxu0 %v2174
  %v3808 = vpop.f32.mrb[0].mxu0
  %v3809 = vadd.f32 0.0, %v3808
  %v3810 = vpop.f32.mrb[0].mxu0
  %3811 = vmatprep.mubr.f32.mxu0 0.0
  %3812 = vmatmul.mubr.f32.gmra.mrb[0].mxu0 %v3583
  %v3813 = vpop.f32.mrb[0].mxu0
  %v3814 = vadd.f32 0.0, %v3813
  %v3815 = vpop.f32.mrb[0].mxu0
  %3816 = vmatprep.mubr.f32.mxu0 0.0
  %3817 = vmatmul.mubr.f32.gmra.mrb[0].mxu0 %v3586
  %v3818 = vpop.f32.mrb[0].mxu0
  %v3819 = vadd.f32 0.0, %v3818
  %v3820 = vpop.f32.mrb[0].mxu0
  %3821 = vmatprep.mubr.f32.mxu0 0.0
  %3822 = vmatmul.mubr.f32.gmra.mrb[0].mxu0 %v981
  %v3823 = vpop.f32.mrb[0].mxu0
  %v3824 = vadd.f32 0.0, %v3823
  %v3825 = vpop.f32.mrb[0].mxu0
  %3826 = vmatprep.mubr.f32.mxu0 0.0
  %3827 = vmatmul.mubr.f32.gmra.mrb[0].mxu0 %v983
  %v3828 = vpop.f32.mrb[0].mxu0
  %v3829 = vadd.f32 0.0, %v3828
  %v3830 = vpop.f32.mrb[0].mxu0
  %3831 = vmatprep.mubr.f32.mxu0 0.0
  %3832 = vmatmul.mubr.f32.gmra.mrb[0].mxu0 %v985
  %v3833 = vpop.f32.mrb[0].mxu0
  %v3834 = vadd.f32 0.0, %v3833
  %v3835 = vpop.f32.mrb[0].mxu0
  %3836 = vmatprep.mubr.f32.mxu0 0.0
  %3837 = vmatmul.mubr.f32.gmra.mrb[0].mxu0 %v987
  %v3838 = vpop.f32.mrb[0].mxu0
  %v3839 = vadd.f32 0.0, %v3838
  %v3840 = vpop.f32.mrb[0].mxu0
  %3841 = vmatprep.mubr.f32.mxu0 0.0
  %3842 = vmatmul.mubr.f32.gmra.mrb[0].mxu0 %v989
  %v3843 = vpop.f32.mrb[0].mxu0
  %v3844 = vadd.f32 0.0, %v3843
  %v3845 = vpop.f32.mrb[0].mxu0
  %3846 = vmatprep.mubr.f32.mxu0 0.0
  %3847 = vmatmul.mubr.f32.gmra.mrb[0].mxu0 %v991
  %v3848 = vpop.f32.mrb[0].mxu0
  %v3849 = vadd.f32 0.0, %v3848
  %v3850 = vpop.f32.mrb[0].mxu0
  %3851 = vmatprep.mubr.f32.mxu0 0.0
  %3852 = vmatmul.mubr.f32.gmra.mrb[0].mxu0 %v993
  %v3853 = vpop.f32.mrb[0].mxu0
  %v3854 = vadd.f32 0.0, %v3853
  %v3855 = vpop.f32.mrb[0].mxu0
  %3856 = vmatprep.mubr.f32.mxu0 0.0
  %3857 = vmatmul.mubr.f32.gmra.mrb[0].mxu0 %v995
  %v3858 = vpop.f32.mrb[0].mxu0
  %v3859 = vadd.f32 0.0, %v3858
  %v3860 = vpop.f32.mrb[0].mxu0
  %3861 = vmatprep.mubr.f32.mxu0 0.0
  %3862 = vmatmul.mubr.f32.gmra.mrb[0].mxu0 %v997
  %v3863 = vpop.f32.mrb[0].mxu0
  %v3864 = vadd.f32 0.0, %v3863
  %v3865 = vpop.f32.mrb[0].mxu0
  %3866 = vmatprep.mubr.f32.mxu0 0.0
  %3867 = vmatmul.mubr.f32.gmra.mrb[0].mxu0 %v999
  %v3868 = vpop.f32.mrb[0].mxu0
  %v3869 = vadd.f32 0.0, %v3868
  %v3870 = vpop.f32.mrb[0].mxu0
  %3871 = vmatprep.mubr.f32.mxu0 0.0
  %3872 = vmatmul.mubr.f32.gmra.mrb[0].mxu0 %v1001
  %v3873 = vpop.f32.mrb[0].mxu0
  %v3874 = vadd.f32 0.0, %v3873
  %v3875 = vpop.f32.mrb[0].mxu0
  %3876 = vmatprep.mubr.f32.mxu0 0.0
  %3877 = vmatmul.mubr.f32.gmra.mrb[0].mxu0 %v1003
  %v3878 = vpop.f32.mrb[0].mxu0
  %v3879 = vadd.f32 0.0, %v3878
  %v3880 = vpop.f32.mrb[0].mxu0
  %3881 = vmatprep.mubr.f32.mxu0 0.0
  %3882 = vmatmul.mubr.f32.gmra.mrb[0].mxu0 %v1005
  %v3883 = vpop.f32.mrb[0].mxu0
  %v3884 = vadd.f32 0.0, %v3883
  %v3885 = vpop.f32.mrb[0].mxu0
  %3886 = vmatprep.mubr.f32.mxu0 0.0
  %3887 = vmatmul.mubr.f32.gmra.mrb[0].mxu0 %v1007
  %v3888 = vpop.f32.mrb[0].mxu0
  %v3889 = vadd.f32 0.0, %v3888
  %v3890 = vpop.f32.mrb[0].mxu0
  %3891 = vmatprep.mubr.f32.mxu0 0.0
  %3892 = vmatmul.mubr.f32.gmra.mrb[0].mxu0 %v1009
  %v3893 = vpop.f32.mrb[0].mxu0
  %v3894 = vadd.f32 0.0, %v3893
  %v3895 = vpop.f32.mrb[0].mxu0
  %3896 = vmatprep.mubr.f32.mxu0 0.0
  %3897 = vmatmul.mubr.f32.gmra.mrb[0].mxu0 %v1011
  %v3898 = vpop.f32.mrb[0].mxu0
  %v3899 = vadd.f32 0.0, %v3898
  %v3900 = vpop.f32.mrb[0].mxu0
  %3901 = vmatprep.mubr.f32.mxu0 0.0
  %3902 = vmatmul.mubr.f32.gmra.mrb[0].mxu0 %v1013
  %v3903 = vpop.f32.mrb[0].mxu0
  %v3904 = vadd.f32 0.0, %v3903
  %v3905 = vpop.f32.mrb[0].mxu0
  %3906 = vmatprep.mubr.f32.mxu0 0.0
  %3907 = vmatmul.mubr.f32.gmra.mrb[0].mxu0 %v1015
  %v3908 = vpop.f32.mrb[0].mxu0
  %v3909 = vadd.f32 0.0, %v3908
  %v3910 = vpop.f32.mrb[0].mxu0
  %3911 = vmatprep.mubr.f32.mxu0 0.0
  %3912 = vmatmul.mubr.f32.gmra.mrb[0].mxu0 %v1017
  %v3913 = vpop.f32.mrb[0].mxu0
  %v3914 = vadd.f32 0.0, %v3913
  %v3915 = vpop.f32.mrb[0].mxu0
  %3916 = vmatprep.mubr.f32.mxu0 0.0
  %3917 = vmatmul.mubr.f32.gmra.mrb[0].mxu0 %v1019
  %v3918 = vpop.f32.mrb[0].mxu0
  %v3919 = vadd.f32 0.0, %v3918
  %v3920 = vpop.f32.mrb[0].mxu0
  %3921 = vmatprep.mubr.f32.mxu0 0.0
  %3922 = vmatmul.mubr.f32.gmra.mrb[0].mxu0 %v1021
  %v3923 = vpop.f32.mrb[0].mxu0
  %v3924 = vadd.f32 0.0, %v3923
  %v3925 = vpop.f32.mrb[0].mxu0
  %3926 = vmatprep.mubr.f32.mxu0 0.0
  %3927 = vmatmul.mubr.f32.gmra.mrb[0].mxu0 %v1023
  %v3928 = vpop.f32.mrb[0].mxu0
  %v3929 = vadd.f32 0.0, %v3928
  %v3930 = vpop.f32.mrb[0].mxu0
  %3931 = vmatprep.mubr.f32.mxu0 0.0
  %3932 = vmatmul.mubr.f32.gmra.mrb[0].mxu0 %v1025
  %v3933 = vpop.f32.mrb[0].mxu0
  %v3934 = vadd.f32 0.0, %v3933
  %v3935 = vpop.f32.mrb[0].mxu0
  %3936 = vmatprep.mubr.f32.mxu0 0.0
  %3937 = vmatmul.mubr.f32.gmra.mrb[0].mxu0 %v1027
  %v3938 = vpop.f32.mrb[0].mxu0
  %v3939 = vadd.f32 0.0, %v3938
  %v3940 = vpop.f32.mrb[0].mxu0
  %3941 = vmatprep.mubr.f32.mxu0 0.0
  %3942 = vmatmul.mubr.f32.gmra.mrb[0].mxu0 %v1029
  %v3943 = vpop.f32.mrb[0].mxu0
  %v3944 = vadd.f32 0.0, %v3943
  %v3945 = vpop.f32.mrb[0].mxu0
  %3946 = vmatprep.mubr.f32.mxu0 0.0
  %3947 = vmatmul.mubr.f32.gmra.mrb[0].mxu0 %v1031
  %v3948 = vpop.f32.mrb[0].mxu0
  %v3949 = vadd.f32 0.0, %v3948
  %v3950 = vpop.f32.mrb[0].mxu0
  %3951 = vmatprep.mubr.f32.mxu0 0.0
  %3952 = vmatmul.mubr.f32.gmra.mrb[0].mxu0 %v1033
  %v3953 = vpop.f32.mrb[0].mxu0
  %v3954 = vadd.f32 0.0, %v3953
  %v3955 = vpop.f32.mrb[0].mxu0
  %3956 = vmatprep.mubr.f32.mxu0 0.0
  %3957 = vmatmul.mubr.f32.gmra.mrb[0].mxu0 %v1035
  %v3958 = vpop.f32.mrb[0].mxu0
  %v3959 = vadd.f32 0.0, %v3958
  %v3960 = vpop.f32.mrb[0].mxu0
  %3961 = vmatprep.mubr.f32.mxu0 0.0
  %3962 = vmatmul.mubr.f32.gmra.mrb[0].mxu0 %v2177
  %v3963 = vpop.f32.mrb[0].mxu0
  %v3964 = vadd.f32 0.0, %v3963
  %v3965 = vpop.f32.mrb[0].mxu0
  %3966 = vmatprep.mubr.f32.mxu0 0.0
  %3967 = vmatmul.mubr.f32.gmra.mrb[0].mxu0 %v2180
  %v3968 = vpop.f32.mrb[0].mxu0
  %v3969 = vadd.f32 0.0, %v3968
  %v3970 = vpop.f32.mrb[0].mxu0
  %3971 = vmatprep.mubr.f32.mxu0 0.0
  %3972 = vmatmul.mubr.f32.gmra.mrb[0].mxu0 %v3589
  %v3973 = vpop.f32.mrb[0].mxu0
  %v3974 = vadd.f32 0.0, %v3973
  %v3975 = vpop.f32.mrb[0].mxu0
  %3976 = vmatprep.mubr.f32.mxu0 0.0
  %3977 = vmatmul.mubr.f32.gmra.mrb[0].mxu0 %v3592
  %v3978 = vpop.f32.mrb[0].mxu0
  %v3979 = vadd.f32 0.0, %v3978
  %v3980 = vpop.f32.mrb[0].mxu0
  %3981 = vdwg.mxu0
  %v3982 = vadd.f32 %v3516, %v3664
  %v3983 = vadd.f32 %v3517, %v3669
  %v3984 = vadd.f32 %v3518, %v3674
  %v3985 = vadd.f32 %v3519, %v3679
  %v3986 = vadd.f32 %v3520, %v3684
  %v3987 = vadd.f32 %v3521, %v3689
  %v3988 = vadd.f32 %v3522, %v3694
  %v3989 = vadd.f32 %v3523, %v3699
  %v3990 = vadd.f32 %v3524, %v3704
  %v3991 = vadd.f32 %v3525, %v3709
  %v3992 = vadd.f32 %v3526, %v3714
  %v3993 = vadd.f32 %v3527, %v3719
  %v3994 = vadd.f32 %v3528, %v3724
  %v3995 = vadd.f32 %v3529, %v3729
  %v3996 = vadd.f32 %v3530, %v3734
  %v3997 = vadd.f32 %v3531, %v3739
  %v3998 = vadd.f32 %v3532, %v3744
  %v3999 = vadd.f32 %v3533, %v3749
  %v4000 = vadd.f32 %v3534, %v3754
  %v4001 = vadd.f32 %v3535, %v3759
  %v4002 = vadd.f32 %v3536, %v3764
  %v4003 = vadd.f32 %v3537, %v3769
  %v4004 = vadd.f32 %v3538, %v3774
  %v4005 = vadd.f32 %v3539, %v3779
  %v4006 = vadd.f32 %v3540, %v3784
  %v4007 = vadd.f32 %v3541, %v3789
  %v4008 = vadd.f32 %v3542, %v3794
  %v4009 = vadd.f32 %v3543, %v3799
  %v4010 = vadd.f32 %v3544, %v3804
  %v4011 = vadd.f32 %v3545, %v3809
  %v4012 = vadd.f32 %v3546, %v3814
  %v4013 = vadd.f32 %v3547, %v3819
  %v4014 = vadd.f32 %v3548, %v3824
  %v4015 = vadd.f32 %v3549, %v3829
  %v4016 = vadd.f32 %v3550, %v3834
  %v4017 = vadd.f32 %v3551, %v3839
  %v4018 = vadd.f32 %v3552, %v3844
  %v4019 = vadd.f32 %v3553, %v3849
  %v4020 = vadd.f32 %v3554, %v3854
  %v4021 = vadd.f32 %v3555, %v3859
  %v4022 = vadd.f32 %v3556, %v3864
  %v4023 = vadd.f32 %v3557, %v3869
  %v4024 = vadd.f32 %v3558, %v3874
  %v4025 = vadd.f32 %v3559, %v3879
  %v4026 = vadd.f32 %v3560, %v3884
  %v4027 = vadd.f32 %v3561, %v3889
  %v4028 = vadd.f32 %v3562, %v3894
  %v4029 = vadd.f32 %v3563, %v3899
  %v4030 = vadd.f32 %v3564, %v3904
  %v4031 = vadd.f32 %v3565, %v3909
  %v4032 = vadd.f32 %v3566, %v3914
  %v4033 = vadd.f32 %v3567, %v3919
  %v4034 = vadd.f32 %v3568, %v3924
  %v4035 = vadd.f32 %v3569, %v3929
  %v4036 = vadd.f32 %v3570, %v3934
  %v4037 = vadd.f32 %v3571, %v3939
  %v4038 = vadd.f32 %v3572, %v3944
  %v4039 = vadd.f32 %v3573, %v3949
  %v4040 = vadd.f32 %v3574, %v3954
  %v4041 = vadd.f32 %v3575, %v3959
  %v4042 = vadd.f32 %v3576, %v3964
  %v4043 = vadd.f32 %v3577, %v3969
  %v4044 = vadd.f32 %v3578, %v3974
  %v4045 = vadd.f32 %v3579, %v3979
  %v4048 = vrot.slane %v74, 1
  %v4049 = vrot.slane %v75, 1
  %v4050 = vsel %vm228, %v4048, %v4049
  %v4051 = vrot.slane %v76, 1
  %v4052 = vsel %vm228, %v4049, %v4051
  %v4053 = vrot.slane %v128, 1
  %v4054 = vrot.slane %v129, 1
  %v4055 = vsel %vm228, %v4053, %v4054
  %v4056 = vrot.slane %v130, 1
  %v4057 = vsel %vm228, %v4054, %v4056
  %s4058 = scalar_lea.vmem %s1, 28
  %v4059 = vld [vmem:[%s4058] sm:$0xf]
  %v4060 = vsel %vm391, %v4050, 0
  %v4062 = vsel %vm391, %v4052, 0
  %v4064 = vsel %vm391, %v4055, 0
  %v4066 = vsel %vm391, %v4057, 0
  %v4069 = vsel %vm520, %v4059, 0
  %4071 = vmatprep.subr.mxu0 0.0
  %4072 = vmatpush1.msra.mxu0 %v4069
  %4073 = vmatprep.subr.mxu0 0.0
  %4074 = vmatpush1.msra.mxu0 0.0
  %4075 = vmatprep.subr.mxu0 0.0
  %4076 = vmatpush1.msra.mxu0 0.0
  %4077 = vmatprep.subr.mxu0 0.0
  %4078 = vmatpush1.msra.mxu0 0.0
  %4079 = vmatprep.subr.mxu0 0.0
  %4080 = vmatpush1.msra.mxu0 0.0
  %4081 = vmatprep.subr.mxu0 0.0
  %4082 = vmatpush1.msra.mxu0 0.0
  %4083 = vmatprep.subr.mxu0 0.0
  %4084 = vmatpush1.msra.mxu0 0.0
  %4085 = vmatprep.subr.mxu0 0.0
  %4086 = vmatpush1.msra.mxu0 0.0
  %4087 = vmatprep.subr.mxu0 0.0
  %4088 = vmatpush1.msra.mxu0 0.0
  %4089 = vmatprep.subr.mxu0 0.0
  %4090 = vmatpush1.msra.mxu0 0.0
  %4091 = vmatprep.subr.mxu0 0.0
  %4092 = vmatpush1.msra.mxu0 0.0
  %4093 = vmatprep.subr.mxu0 0.0
  %4094 = vmatpush1.msra.mxu0 0.0
  %4095 = vmatprep.subr.mxu0 0.0
  %4096 = vmatpush1.msra.mxu0 0.0
  %4097 = vmatprep.subr.mxu0 0.0
  %4098 = vmatpush1.msra.mxu0 0.0
  %4099 = vmatprep.subr.mxu0 0.0
  %4100 = vmatpush1.msra.mxu0 0.0
  %4101 = vmatprep.subr.mxu0 0.0
  %4102 = vmatpush1.msra.mxu0 0.0
  %4103 = vmatprep.subr.mxu0 0.0
  %4104 = vmatpush1.msra.mxu0 0.0
  %4105 = vmatprep.subr.mxu0 0.0
  %4106 = vmatpush1.msra.mxu0 0.0
  %4107 = vmatprep.subr.mxu0 0.0
  %4108 = vmatpush1.msra.mxu0 0.0
  %4109 = vmatprep.subr.mxu0 0.0
  %4110 = vmatpush1.msra.mxu0 0.0
  %4111 = vmatprep.subr.mxu0 0.0
  %4112 = vmatpush1.msra.mxu0 0.0
  %4113 = vmatprep.subr.mxu0 0.0
  %4114 = vmatpush1.msra.mxu0 0.0
  %4115 = vmatprep.subr.mxu0 0.0
  %4116 = vmatpush1.msra.mxu0 0.0
  %4117 = vmatprep.subr.mxu0 0.0
  %4118 = vmatpush1.msra.mxu0 0.0
  %4119 = vmatprep.subr.mxu0 0.0
  %4120 = vmatpush1.msra.mxu0 0.0
  %4121 = vmatprep.subr.mxu0 0.0
  %4122 = vmatpush1.msra.mxu0 0.0
  %4123 = vmatprep.subr.mxu0 0.0
  %4124 = vmatpush1.msra.mxu0 0.0
  %4125 = vmatprep.subr.mxu0 0.0
  %4126 = vmatpush1.msra.mxu0 0.0
  %4127 = vmatprep.subr.mxu0 0.0
  %4128 = vmatpush1.msra.mxu0 0.0
  %4129 = vmatprep.subr.mxu0 0.0
  %4130 = vmatpush1.msra.mxu0 0.0
  %4131 = vmatprep.subr.mxu0 0.0
  %4132 = vmatpush1.msra.mxu0 0.0
  %4133 = vmatprep.subr.mxu0 0.0
  %4134 = vmatpush1.msra.mxu0 0.0
  %4135 = vmatprep.mubr.f32.mxu0 0.0
  %4136 = vmatmul.mubr.f32.gmra.mrb[0].mxu0 %v400
  %v4137 = vpop.f32.mrb[0].mxu0
  %v4138 = vadd.f32 0.0, %v4137
  %v4139 = vpop.f32.mrb[0].mxu0
  %4140 = vmatprep.mubr.f32.mxu0 0.0
  %4141 = vmatmul.mubr.f32.gmra.mrb[0].mxu0 %v402
  %v4142 = vpop.f32.mrb[0].mxu0
  %v4143 = vadd.f32 0.0, %v4142
  %v4144 = vpop.f32.mrb[0].mxu0
  %4145 = vmatprep.mubr.f32.mxu0 0.0
  %4146 = vmatmul.mubr.f32.gmra.mrb[0].mxu0 %v404
  %v4147 = vpop.f32.mrb[0].mxu0
  %v4148 = vadd.f32 0.0, %v4147
  %v4149 = vpop.f32.mrb[0].mxu0
  %4150 = vmatprep.mubr.f32.mxu0 0.0
  %4151 = vmatmul.mubr.f32.gmra.mrb[0].mxu0 %v406
  %v4152 = vpop.f32.mrb[0].mxu0
  %v4153 = vadd.f32 0.0, %v4152
  %v4154 = vpop.f32.mrb[0].mxu0
  %4155 = vmatprep.mubr.f32.mxu0 0.0
  %4156 = vmatmul.mubr.f32.gmra.mrb[0].mxu0 %v408
  %v4157 = vpop.f32.mrb[0].mxu0
  %v4158 = vadd.f32 0.0, %v4157
  %v4159 = vpop.f32.mrb[0].mxu0
  %4160 = vmatprep.mubr.f32.mxu0 0.0
  %4161 = vmatmul.mubr.f32.gmra.mrb[0].mxu0 %v410
  %v4162 = vpop.f32.mrb[0].mxu0
  %v4163 = vadd.f32 0.0, %v4162
  %v4164 = vpop.f32.mrb[0].mxu0
  %4165 = vmatprep.mubr.f32.mxu0 0.0
  %4166 = vmatmul.mubr.f32.gmra.mrb[0].mxu0 %v412
  %v4167 = vpop.f32.mrb[0].mxu0
  %v4168 = vadd.f32 0.0, %v4167
  %v4169 = vpop.f32.mrb[0].mxu0
  %4170 = vmatprep.mubr.f32.mxu0 0.0
  %4171 = vmatmul.mubr.f32.gmra.mrb[0].mxu0 %v414
  %v4172 = vpop.f32.mrb[0].mxu0
  %v4173 = vadd.f32 0.0, %v4172
  %v4174 = vpop.f32.mrb[0].mxu0
  %4175 = vmatprep.mubr.f32.mxu0 0.0
  %4176 = vmatmul.mubr.f32.gmra.mrb[0].mxu0 %v416
  %v4177 = vpop.f32.mrb[0].mxu0
  %v4178 = vadd.f32 0.0, %v4177
  %v4179 = vpop.f32.mrb[0].mxu0
  %4180 = vmatprep.mubr.f32.mxu0 0.0
  %4181 = vmatmul.mubr.f32.gmra.mrb[0].mxu0 %v418
  %v4182 = vpop.f32.mrb[0].mxu0
  %v4183 = vadd.f32 0.0, %v4182
  %v4184 = vpop.f32.mrb[0].mxu0
  %4185 = vmatprep.mubr.f32.mxu0 0.0
  %4186 = vmatmul.mubr.f32.gmra.mrb[0].mxu0 %v420
  %v4187 = vpop.f32.mrb[0].mxu0
  %v4188 = vadd.f32 0.0, %v4187
  %v4189 = vpop.f32.mrb[0].mxu0
  %4190 = vmatprep.mubr.f32.mxu0 0.0
  %4191 = vmatmul.mubr.f32.gmra.mrb[0].mxu0 %v422
  %v4192 = vpop.f32.mrb[0].mxu0
  %v4193 = vadd.f32 0.0, %v4192
  %v4194 = vpop.f32.mrb[0].mxu0
  %4195 = vmatprep.mubr.f32.mxu0 0.0
  %4196 = vmatmul.mubr.f32.gmra.mrb[0].mxu0 %v424
  %v4197 = vpop.f32.mrb[0].mxu0
  %v4198 = vadd.f32 0.0, %v4197
  %v4199 = vpop.f32.mrb[0].mxu0
  %4200 = vmatprep.mubr.f32.mxu0 0.0
  %4201 = vmatmul.mubr.f32.gmra.mrb[0].mxu0 %v426
  %v4202 = vpop.f32.mrb[0].mxu0
  %v4203 = vadd.f32 0.0, %v4202
  %v4204 = vpop.f32.mrb[0].mxu0
  %4205 = vmatprep.mubr.f32.mxu0 0.0
  %4206 = vmatmul.mubr.f32.gmra.mrb[0].mxu0 %v428
  %v4207 = vpop.f32.mrb[0].mxu0
  %v4208 = vadd.f32 0.0, %v4207
  %v4209 = vpop.f32.mrb[0].mxu0
  %4210 = vmatprep.mubr.f32.mxu0 0.0
  %4211 = vmatmul.mubr.f32.gmra.mrb[0].mxu0 %v430
  %v4212 = vpop.f32.mrb[0].mxu0
  %v4213 = vadd.f32 0.0, %v4212
  %v4214 = vpop.f32.mrb[0].mxu0
  %4215 = vmatprep.mubr.f32.mxu0 0.0
  %4216 = vmatmul.mubr.f32.gmra.mrb[0].mxu0 %v432
  %v4217 = vpop.f32.mrb[0].mxu0
  %v4218 = vadd.f32 0.0, %v4217
  %v4219 = vpop.f32.mrb[0].mxu0
  %4220 = vmatprep.mubr.f32.mxu0 0.0
  %4221 = vmatmul.mubr.f32.gmra.mrb[0].mxu0 %v434
  %v4222 = vpop.f32.mrb[0].mxu0
  %v4223 = vadd.f32 0.0, %v4222
  %v4224 = vpop.f32.mrb[0].mxu0
  %4225 = vmatprep.mubr.f32.mxu0 0.0
  %4226 = vmatmul.mubr.f32.gmra.mrb[0].mxu0 %v436
  %v4227 = vpop.f32.mrb[0].mxu0
  %v4228 = vadd.f32 0.0, %v4227
  %v4229 = vpop.f32.mrb[0].mxu0
  %4230 = vmatprep.mubr.f32.mxu0 0.0
  %4231 = vmatmul.mubr.f32.gmra.mrb[0].mxu0 %v438
  %v4232 = vpop.f32.mrb[0].mxu0
  %v4233 = vadd.f32 0.0, %v4232
  %v4234 = vpop.f32.mrb[0].mxu0
  %4235 = vmatprep.mubr.f32.mxu0 0.0
  %4236 = vmatmul.mubr.f32.gmra.mrb[0].mxu0 %v440
  %v4237 = vpop.f32.mrb[0].mxu0
  %v4238 = vadd.f32 0.0, %v4237
  %v4239 = vpop.f32.mrb[0].mxu0
  %4240 = vmatprep.mubr.f32.mxu0 0.0
  %4241 = vmatmul.mubr.f32.gmra.mrb[0].mxu0 %v442
  %v4242 = vpop.f32.mrb[0].mxu0
  %v4243 = vadd.f32 0.0, %v4242
  %v4244 = vpop.f32.mrb[0].mxu0
  %4245 = vmatprep.mubr.f32.mxu0 0.0
  %4246 = vmatmul.mubr.f32.gmra.mrb[0].mxu0 %v444
  %v4247 = vpop.f32.mrb[0].mxu0
  %v4248 = vadd.f32 0.0, %v4247
  %v4249 = vpop.f32.mrb[0].mxu0
  %4250 = vmatprep.mubr.f32.mxu0 0.0
  %4251 = vmatmul.mubr.f32.gmra.mrb[0].mxu0 %v446
  %v4252 = vpop.f32.mrb[0].mxu0
  %v4253 = vadd.f32 0.0, %v4252
  %v4254 = vpop.f32.mrb[0].mxu0
  %4255 = vmatprep.mubr.f32.mxu0 0.0
  %4256 = vmatmul.mubr.f32.gmra.mrb[0].mxu0 %v448
  %v4257 = vpop.f32.mrb[0].mxu0
  %v4258 = vadd.f32 0.0, %v4257
  %v4259 = vpop.f32.mrb[0].mxu0
  %4260 = vmatprep.mubr.f32.mxu0 0.0
  %4261 = vmatmul.mubr.f32.gmra.mrb[0].mxu0 %v450
  %v4262 = vpop.f32.mrb[0].mxu0
  %v4263 = vadd.f32 0.0, %v4262
  %v4264 = vpop.f32.mrb[0].mxu0
  %4265 = vmatprep.mubr.f32.mxu0 0.0
  %4266 = vmatmul.mubr.f32.gmra.mrb[0].mxu0 %v452
  %v4267 = vpop.f32.mrb[0].mxu0
  %v4268 = vadd.f32 0.0, %v4267
  %v4269 = vpop.f32.mrb[0].mxu0
  %4270 = vmatprep.mubr.f32.mxu0 0.0
  %4271 = vmatmul.mubr.f32.gmra.mrb[0].mxu0 %v454
  %v4272 = vpop.f32.mrb[0].mxu0
  %v4273 = vadd.f32 0.0, %v4272
  %v4274 = vpop.f32.mrb[0].mxu0
  %4275 = vmatprep.mubr.f32.mxu0 0.0
  %4276 = vmatmul.mubr.f32.gmra.mrb[0].mxu0 %v2648
  %v4277 = vpop.f32.mrb[0].mxu0
  %v4278 = vadd.f32 0.0, %v4277
  %v4279 = vpop.f32.mrb[0].mxu0
  %4280 = vmatprep.mubr.f32.mxu0 0.0
  %4281 = vmatmul.mubr.f32.gmra.mrb[0].mxu0 %v2650
  %v4282 = vpop.f32.mrb[0].mxu0
  %v4283 = vadd.f32 0.0, %v4282
  %v4284 = vpop.f32.mrb[0].mxu0
  %4285 = vmatprep.mubr.f32.mxu0 0.0
  %4286 = vmatmul.mubr.f32.gmra.mrb[0].mxu0 %v4060
  %v4287 = vpop.f32.mrb[0].mxu0
  %v4288 = vadd.f32 0.0, %v4287
  %v4289 = vpop.f32.mrb[0].mxu0
  %4290 = vmatprep.mubr.f32.mxu0 0.0
  %4291 = vmatmul.mubr.f32.gmra.mrb[0].mxu0 %v4062
  %v4292 = vpop.f32.mrb[0].mxu0
  %v4293 = vadd.f32 0.0, %v4292
  %v4294 = vpop.f32.mrb[0].mxu0
  %4295 = vmatprep.mubr.f32.mxu0 0.0
  %4296 = vmatmul.mubr.f32.gmra.mrb[0].mxu0 %v464
  %v4297 = vpop.f32.mrb[0].mxu0
  %v4298 = vadd.f32 0.0, %v4297
  %v4299 = vpop.f32.mrb[0].mxu0
  %4300 = vmatprep.mubr.f32.mxu0 0.0
  %4301 = vmatmul.mubr.f32.gmra.mrb[0].mxu0 %v466
  %v4302 = vpop.f32.mrb[0].mxu0
  %v4303 = vadd.f32 0.0, %v4302
  %v4304 = vpop.f32.mrb[0].mxu0
  %4305 = vmatprep.mubr.f32.mxu0 0.0
  %4306 = vmatmul.mubr.f32.gmra.mrb[0].mxu0 %v468
  %v4307 = vpop.f32.mrb[0].mxu0
  %v4308 = vadd.f32 0.0, %v4307
  %v4309 = vpop.f32.mrb[0].mxu0
  %4310 = vmatprep.mubr.f32.mxu0 0.0
  %4311 = vmatmul.mubr.f32.gmra.mrb[0].mxu0 %v470
  %v4312 = vpop.f32.mrb[0].mxu0
  %v4313 = vadd.f32 0.0, %v4312
  %v4314 = vpop.f32.mrb[0].mxu0
  %4315 = vmatprep.mubr.f32.mxu0 0.0
  %4316 = vmatmul.mubr.f32.gmra.mrb[0].mxu0 %v472
  %v4317 = vpop.f32.mrb[0].mxu0
  %v4318 = vadd.f32 0.0, %v4317
  %v4319 = vpop.f32.mrb[0].mxu0
  %4320 = vmatprep.mubr.f32.mxu0 0.0
  %4321 = vmatmul.mubr.f32.gmra.mrb[0].mxu0 %v474
  %v4322 = vpop.f32.mrb[0].mxu0
  %v4323 = vadd.f32 0.0, %v4322
  %v4324 = vpop.f32.mrb[0].mxu0
  %4325 = vmatprep.mubr.f32.mxu0 0.0
  %4326 = vmatmul.mubr.f32.gmra.mrb[0].mxu0 %v476
  %v4327 = vpop.f32.mrb[0].mxu0
  %v4328 = vadd.f32 0.0, %v4327
  %v4329 = vpop.f32.mrb[0].mxu0
  %4330 = vmatprep.mubr.f32.mxu0 0.0
  %4331 = vmatmul.mubr.f32.gmra.mrb[0].mxu0 %v478
  %v4332 = vpop.f32.mrb[0].mxu0
  %v4333 = vadd.f32 0.0, %v4332
  %v4334 = vpop.f32.mrb[0].mxu0
  %4335 = vmatprep.mubr.f32.mxu0 0.0
  %4336 = vmatmul.mubr.f32.gmra.mrb[0].mxu0 %v480
  %v4337 = vpop.f32.mrb[0].mxu0
  %v4338 = vadd.f32 0.0, %v4337
  %v4339 = vpop.f32.mrb[0].mxu0
  %4340 = vmatprep.mubr.f32.mxu0 0.0
  %4341 = vmatmul.mubr.f32.gmra.mrb[0].mxu0 %v482
  %v4342 = vpop.f32.mrb[0].mxu0
  %v4343 = vadd.f32 0.0, %v4342
  %v4344 = vpop.f32.mrb[0].mxu0
  %4345 = vmatprep.mubr.f32.mxu0 0.0
  %4346 = vmatmul.mubr.f32.gmra.mrb[0].mxu0 %v484
  %v4347 = vpop.f32.mrb[0].mxu0
  %v4348 = vadd.f32 0.0, %v4347
  %v4349 = vpop.f32.mrb[0].mxu0
  %4350 = vmatprep.mubr.f32.mxu0 0.0
  %4351 = vmatmul.mubr.f32.gmra.mrb[0].mxu0 %v486
  %v4352 = vpop.f32.mrb[0].mxu0
  %v4353 = vadd.f32 0.0, %v4352
  %v4354 = vpop.f32.mrb[0].mxu0
  %4355 = vmatprep.mubr.f32.mxu0 0.0
  %4356 = vmatmul.mubr.f32.gmra.mrb[0].mxu0 %v488
  %v4357 = vpop.f32.mrb[0].mxu0
  %v4358 = vadd.f32 0.0, %v4357
  %v4359 = vpop.f32.mrb[0].mxu0
  %4360 = vmatprep.mubr.f32.mxu0 0.0
  %4361 = vmatmul.mubr.f32.gmra.mrb[0].mxu0 %v490
  %v4362 = vpop.f32.mrb[0].mxu0
  %v4363 = vadd.f32 0.0, %v4362
  %v4364 = vpop.f32.mrb[0].mxu0
  %4365 = vmatprep.mubr.f32.mxu0 0.0
  %4366 = vmatmul.mubr.f32.gmra.mrb[0].mxu0 %v492
  %v4367 = vpop.f32.mrb[0].mxu0
  %v4368 = vadd.f32 0.0, %v4367
  %v4369 = vpop.f32.mrb[0].mxu0
  %4370 = vmatprep.mubr.f32.mxu0 0.0
  %4371 = vmatmul.mubr.f32.gmra.mrb[0].mxu0 %v494
  %v4372 = vpop.f32.mrb[0].mxu0
  %v4373 = vadd.f32 0.0, %v4372
  %v4374 = vpop.f32.mrb[0].mxu0
  %4375 = vmatprep.mubr.f32.mxu0 0.0
  %4376 = vmatmul.mubr.f32.gmra.mrb[0].mxu0 %v496
  %v4377 = vpop.f32.mrb[0].mxu0
  %v4378 = vadd.f32 0.0, %v4377
  %v4379 = vpop.f32.mrb[0].mxu0
  %4380 = vmatprep.mubr.f32.mxu0 0.0
  %4381 = vmatmul.mubr.f32.gmra.mrb[0].mxu0 %v498
  %v4382 = vpop.f32.mrb[0].mxu0
  %v4383 = vadd.f32 0.0, %v4382
  %v4384 = vpop.f32.mrb[0].mxu0
  %4385 = vmatprep.mubr.f32.mxu0 0.0
  %4386 = vmatmul.mubr.f32.gmra.mrb[0].mxu0 %v500
  %v4387 = vpop.f32.mrb[0].mxu0
  %v4388 = vadd.f32 0.0, %v4387
  %v4389 = vpop.f32.mrb[0].mxu0
  %4390 = vmatprep.mubr.f32.mxu0 0.0
  %4391 = vmatmul.mubr.f32.gmra.mrb[0].mxu0 %v502
  %v4392 = vpop.f32.mrb[0].mxu0
  %v4393 = vadd.f32 0.0, %v4392
  %v4394 = vpop.f32.mrb[0].mxu0
  %4395 = vmatprep.mubr.f32.mxu0 0.0
  %4396 = vmatmul.mubr.f32.gmra.mrb[0].mxu0 %v504
  %v4397 = vpop.f32.mrb[0].mxu0
  %v4398 = vadd.f32 0.0, %v4397
  %v4399 = vpop.f32.mrb[0].mxu0
  %4400 = vmatprep.mubr.f32.mxu0 0.0
  %4401 = vmatmul.mubr.f32.gmra.mrb[0].mxu0 %v506
  %v4402 = vpop.f32.mrb[0].mxu0
  %v4403 = vadd.f32 0.0, %v4402
  %v4404 = vpop.f32.mrb[0].mxu0
  %4405 = vmatprep.mubr.f32.mxu0 0.0
  %4406 = vmatmul.mubr.f32.gmra.mrb[0].mxu0 %v508
  %v4407 = vpop.f32.mrb[0].mxu0
  %v4408 = vadd.f32 0.0, %v4407
  %v4409 = vpop.f32.mrb[0].mxu0
  %4410 = vmatprep.mubr.f32.mxu0 0.0
  %4411 = vmatmul.mubr.f32.gmra.mrb[0].mxu0 %v510
  %v4412 = vpop.f32.mrb[0].mxu0
  %v4413 = vadd.f32 0.0, %v4412
  %v4414 = vpop.f32.mrb[0].mxu0
  %4415 = vmatprep.mubr.f32.mxu0 0.0
  %4416 = vmatmul.mubr.f32.gmra.mrb[0].mxu0 %v512
  %v4417 = vpop.f32.mrb[0].mxu0
  %v4418 = vadd.f32 0.0, %v4417
  %v4419 = vpop.f32.mrb[0].mxu0
  %4420 = vmatprep.mubr.f32.mxu0 0.0
  %4421 = vmatmul.mubr.f32.gmra.mrb[0].mxu0 %v514
  %v4422 = vpop.f32.mrb[0].mxu0
  %v4423 = vadd.f32 0.0, %v4422
  %v4424 = vpop.f32.mrb[0].mxu0
  %4425 = vmatprep.mubr.f32.mxu0 0.0
  %4426 = vmatmul.mubr.f32.gmra.mrb[0].mxu0 %v516
  %v4427 = vpop.f32.mrb[0].mxu0
  %v4428 = vadd.f32 0.0, %v4427
  %v4429 = vpop.f32.mrb[0].mxu0
  %4430 = vmatprep.mubr.f32.mxu0 0.0
  %4431 = vmatmul.mubr.f32.gmra.mrb[0].mxu0 %v518
  %v4432 = vpop.f32.mrb[0].mxu0
  %v4433 = vadd.f32 0.0, %v4432
  %v4434 = vpop.f32.mrb[0].mxu0
  %4435 = vmatprep.mubr.f32.mxu0 0.0
  %4436 = vmatmul.mubr.f32.gmra.mrb[0].mxu0 %v2652
  %v4437 = vpop.f32.mrb[0].mxu0
  %v4438 = vadd.f32 0.0, %v4437
  %v4439 = vpop.f32.mrb[0].mxu0
  %4440 = vmatprep.mubr.f32.mxu0 0.0
  %4441 = vmatmul.mubr.f32.gmra.mrb[0].mxu0 %v2654
  %v4442 = vpop.f32.mrb[0].mxu0
  %v4443 = vadd.f32 0.0, %v4442
  %v4444 = vpop.f32.mrb[0].mxu0
  %4445 = vmatprep.mubr.f32.mxu0 0.0
  %4446 = vmatmul.mubr.f32.gmra.mrb[0].mxu0 %v4064
  %v4447 = vpop.f32.mrb[0].mxu0
  %v4448 = vadd.f32 0.0, %v4447
  %v4449 = vpop.f32.mrb[0].mxu0
  %4450 = vmatprep.mubr.f32.mxu0 0.0
  %4451 = vmatmul.mubr.f32.gmra.mrb[0].mxu0 %v4066
  %v4452 = vpop.f32.mrb[0].mxu0
  %v4453 = vadd.f32 0.0, %v4452
  %v4454 = vpop.f32.mrb[0].mxu0
  %4455 = vdwg.mxu0
  %v4456 = vadd.f32 %v3982, %v4138
  %v4457 = vadd.f32 %v3983, %v4143
  %v4458 = vadd.f32 %v3984, %v4148
  %v4459 = vadd.f32 %v3985, %v4153
  %v4460 = vadd.f32 %v3986, %v4158
  %v4461 = vadd.f32 %v3987, %v4163
  %v4462 = vadd.f32 %v3988, %v4168
  %v4463 = vadd.f32 %v3989, %v4173
  %v4464 = vadd.f32 %v3990, %v4178
  %v4465 = vadd.f32 %v3991, %v4183
  %v4466 = vadd.f32 %v3992, %v4188
  %v4467 = vadd.f32 %v3993, %v4193
  %v4468 = vadd.f32 %v3994, %v4198
  %v4469 = vadd.f32 %v3995, %v4203
  %v4470 = vadd.f32 %v3996, %v4208
  %v4471 = vadd.f32 %v3997, %v4213
  %v4472 = vadd.f32 %v3998, %v4218
  %v4473 = vadd.f32 %v3999, %v4223
  %v4474 = vadd.f32 %v4000, %v4228
  %v4475 = vadd.f32 %v4001, %v4233
  %v4476 = vadd.f32 %v4002, %v4238
  %v4477 = vadd.f32 %v4003, %v4243
  %v4478 = vadd.f32 %v4004, %v4248
  %v4479 = vadd.f32 %v4005, %v4253
  %v4480 = vadd.f32 %v4006, %v4258
  %v4481 = vadd.f32 %v4007, %v4263
  %v4482 = vadd.f32 %v4008, %v4268
  %v4483 = vadd.f32 %v4009, %v4273
  %v4484 = vadd.f32 %v4010, %v4278
  %v4485 = vadd.f32 %v4011, %v4283
  %v4486 = vadd.f32 %v4012, %v4288
  %v4487 = vadd.f32 %v4013, %v4293
  %v4488 = vadd.f32 %v4014, %v4298
  %v4489 = vadd.f32 %v4015, %v4303
  %v4490 = vadd.f32 %v4016, %v4308
  %v4491 = vadd.f32 %v4017, %v4313
  %v4492 = vadd.f32 %v4018, %v4318
  %v4493 = vadd.f32 %v4019, %v4323
  %v4494 = vadd.f32 %v4020, %v4328
  %v4495 = vadd.f32 %v4021, %v4333
  %v4496 = vadd.f32 %v4022, %v4338
  %v4497 = vadd.f32 %v4023, %v4343
  %v4498 = vadd.f32 %v4024, %v4348
  %v4499 = vadd.f32 %v4025, %v4353
  %v4500 = vadd.f32 %v4026, %v4358
  %v4501 = vadd.f32 %v4027, %v4363
  %v4502 = vadd.f32 %v4028, %v4368
  %v4503 = vadd.f32 %v4029, %v4373
  %v4504 = vadd.f32 %v4030, %v4378
  %v4505 = vadd.f32 %v4031, %v4383
  %v4506 = vadd.f32 %v4032, %v4388
  %v4507 = vadd.f32 %v4033, %v4393
  %v4508 = vadd.f32 %v4034, %v4398
  %v4509 = vadd.f32 %v4035, %v4403
  %v4510 = vadd.f32 %v4036, %v4408
  %v4511 = vadd.f32 %v4037, %v4413
  %v4512 = vadd.f32 %v4038, %v4418
  %v4513 = vadd.f32 %v4039, %v4423
  %v4514 = vadd.f32 %v4040, %v4428
  %v4515 = vadd.f32 %v4041, %v4433
  %v4516 = vadd.f32 %v4042, %v4438
  %v4517 = vadd.f32 %v4043, %v4443
  %v4518 = vadd.f32 %v4044, %v4448
  %v4519 = vadd.f32 %v4045, %v4453
  %v4520 = vrot.slane %v74, 2
  %v4521 = vrot.slane %v75, 2
  %v4522 = vsel %vm1425, %v4520, %v4521
  %v4523 = vrot.slane %v76, 2
  %v4524 = vsel %vm1425, %v4521, %v4523
  %v4525 = vrot.slane %v128, 2
  %v4526 = vrot.slane %v129, 2
  %v4527 = vsel %vm1425, %v4525, %v4526
  %v4528 = vrot.slane %v130, 2
  %v4529 = vsel %vm1425, %v4526, %v4528
  %s4530 = scalar_lea.vmem %s1, 32
  %v4531 = vld [vmem:[%s4530] sm:$0xf]
  %v4532 = vsel %vm391, %v4522, 0
  %v4534 = vsel %vm391, %v4524, 0
  %v4536 = vsel %vm391, %v4527, 0
  %v4538 = vsel %vm391, %v4529, 0
  %v4541 = vsel %vm520, %v4531, 0
  %4543 = vmatprep.subr.mxu0 0.0
  %4544 = vmatpush1.msra.mxu0 %v4541
  %4545 = vmatprep.subr.mxu0 0.0
  %4546 = vmatpush1.msra.mxu0 0.0
  %4547 = vmatprep.subr.mxu0 0.0
  %4548 = vmatpush1.msra.mxu0 0.0
  %4549 = vmatprep.subr.mxu0 0.0
  %4550 = vmatpush1.msra.mxu0 0.0
  %4551 = vmatprep.subr.mxu0 0.0
  %4552 = vmatpush1.msra.mxu0 0.0
  %4553 = vmatprep.subr.mxu0 0.0
  %4554 = vmatpush1.msra.mxu0 0.0
  %4555 = vmatprep.subr.mxu0 0.0
  %4556 = vmatpush1.msra.mxu0 0.0
  %4557 = vmatprep.subr.mxu0 0.0
  %4558 = vmatpush1.msra.mxu0 0.0
  %4559 = vmatprep.subr.mxu0 0.0
  %4560 = vmatpush1.msra.mxu0 0.0
  %4561 = vmatprep.subr.mxu0 0.0
  %4562 = vmatpush1.msra.mxu0 0.0
  %4563 = vmatprep.subr.mxu0 0.0
  %4564 = vmatpush1.msra.mxu0 0.0
  %4565 = vmatprep.subr.mxu0 0.0
  %4566 = vmatpush1.msra.mxu0 0.0
  %4567 = vmatprep.subr.mxu0 0.0
  %4568 = vmatpush1.msra.mxu0 0.0
  %4569 = vmatprep.subr.mxu0 0.0
  %4570 = vmatpush1.msra.mxu0 0.0
  %4571 = vmatprep.subr.mxu0 0.0
  %4572 = vmatpush1.msra.mxu0 0.0
  %4573 = vmatprep.subr.mxu0 0.0
  %4574 = vmatpush1.msra.mxu0 0.0
  %4575 = vmatprep.subr.mxu0 0.0
  %4576 = vmatpush1.msra.mxu0 0.0
  %4577 = vmatprep.subr.mxu0 0.0
  %4578 = vmatpush1.msra.mxu0 0.0
  %4579 = vmatprep.subr.mxu0 0.0
  %4580 = vmatpush1.msra.mxu0 0.0
  %4581 = vmatprep.subr.mxu0 0.0
  %4582 = vmatpush1.msra.mxu0 0.0
  %4583 = vmatprep.subr.mxu0 0.0
  %4584 = vmatpush1.msra.mxu0 0.0
  %4585 = vmatprep.subr.mxu0 0.0
  %4586 = vmatpush1.msra.mxu0 0.0
  %4587 = vmatprep.subr.mxu0 0.0
  %4588 = vmatpush1.msra.mxu0 0.0
  %4589 = vmatprep.subr.mxu0 0.0
  %4590 = vmatpush1.msra.mxu0 0.0
  %4591 = vmatprep.subr.mxu0 0.0
  %4592 = vmatpush1.msra.mxu0 0.0
  %4593 = vmatprep.subr.mxu0 0.0
  %4594 = vmatpush1.msra.mxu0 0.0
  %4595 = vmatprep.subr.mxu0 0.0
  %4596 = vmatpush1.msra.mxu0 0.0
  %4597 = vmatprep.subr.mxu0 0.0
  %4598 = vmatpush1.msra.mxu0 0.0
  %4599 = vmatprep.subr.mxu0 0.0
  %4600 = vmatpush1.msra.mxu0 0.0
  %4601 = vmatprep.subr.mxu0 0.0
  %4602 = vmatpush1.msra.mxu0 0.0
  %4603 = vmatprep.subr.mxu0 0.0
  %4604 = vmatpush1.msra.mxu0 0.0
  %4605 = vmatprep.subr.mxu0 0.0
  %4606 = vmatpush1.msra.mxu0 0.0
  %4607 = vmatprep.mubr.f32.mxu0 0.0
  %4608 = vmatmul.mubr.f32.gmra.mrb[0].mxu0 %v1596
  %v4609 = vpop.f32.mrb[0].mxu0
  %v4610 = vadd.f32 0.0, %v4609
  %v4611 = vpop.f32.mrb[0].mxu0
  %4612 = vmatprep.mubr.f32.mxu0 0.0
  %4613 = vmatmul.mubr.f32.gmra.mrb[0].mxu0 %v1598
  %v4614 = vpop.f32.mrb[0].mxu0
  %v4615 = vadd.f32 0.0, %v4614
  %v4616 = vpop.f32.mrb[0].mxu0
  %4617 = vmatprep.mubr.f32.mxu0 0.0
  %4618 = vmatmul.mubr.f32.gmra.mrb[0].mxu0 %v1600
  %v4619 = vpop.f32.mrb[0].mxu0
  %v4620 = vadd.f32 0.0, %v4619
  %v4621 = vpop.f32.mrb[0].mxu0
  %4622 = vmatprep.mubr.f32.mxu0 0.0
  %4623 = vmatmul.mubr.f32.gmra.mrb[0].mxu0 %v1602
  %v4624 = vpop.f32.mrb[0].mxu0
  %v4625 = vadd.f32 0.0, %v4624
  %v4626 = vpop.f32.mrb[0].mxu0
  %4627 = vmatprep.mubr.f32.mxu0 0.0
  %4628 = vmatmul.mubr.f32.gmra.mrb[0].mxu0 %v1604
  %v4629 = vpop.f32.mrb[0].mxu0
  %v4630 = vadd.f32 0.0, %v4629
  %v4631 = vpop.f32.mrb[0].mxu0
  %4632 = vmatprep.mubr.f32.mxu0 0.0
  %4633 = vmatmul.mubr.f32.gmra.mrb[0].mxu0 %v1606
  %v4634 = vpop.f32.mrb[0].mxu0
  %v4635 = vadd.f32 0.0, %v4634
  %v4636 = vpop.f32.mrb[0].mxu0
  %4637 = vmatprep.mubr.f32.mxu0 0.0
  %4638 = vmatmul.mubr.f32.gmra.mrb[0].mxu0 %v1608
  %v4639 = vpop.f32.mrb[0].mxu0
  %v4640 = vadd.f32 0.0, %v4639
  %v4641 = vpop.f32.mrb[0].mxu0
  %4642 = vmatprep.mubr.f32.mxu0 0.0
  %4643 = vmatmul.mubr.f32.gmra.mrb[0].mxu0 %v1610
  %v4644 = vpop.f32.mrb[0].mxu0
  %v4645 = vadd.f32 0.0, %v4644
  %v4646 = vpop.f32.mrb[0].mxu0
  %4647 = vmatprep.mubr.f32.mxu0 0.0
  %4648 = vmatmul.mubr.f32.gmra.mrb[0].mxu0 %v1612
  %v4649 = vpop.f32.mrb[0].mxu0
  %v4650 = vadd.f32 0.0, %v4649
  %v4651 = vpop.f32.mrb[0].mxu0
  %4652 = vmatprep.mubr.f32.mxu0 0.0
  %4653 = vmatmul.mubr.f32.gmra.mrb[0].mxu0 %v1614
  %v4654 = vpop.f32.mrb[0].mxu0
  %v4655 = vadd.f32 0.0, %v4654
  %v4656 = vpop.f32.mrb[0].mxu0
  %4657 = vmatprep.mubr.f32.mxu0 0.0
  %4658 = vmatmul.mubr.f32.gmra.mrb[0].mxu0 %v1616
  %v4659 = vpop.f32.mrb[0].mxu0
  %v4660 = vadd.f32 0.0, %v4659
  %v4661 = vpop.f32.mrb[0].mxu0
  %4662 = vmatprep.mubr.f32.mxu0 0.0
  %4663 = vmatmul.mubr.f32.gmra.mrb[0].mxu0 %v1618
  %v4664 = vpop.f32.mrb[0].mxu0
  %v4665 = vadd.f32 0.0, %v4664
  %v4666 = vpop.f32.mrb[0].mxu0
  %4667 = vmatprep.mubr.f32.mxu0 0.0
  %4668 = vmatmul.mubr.f32.gmra.mrb[0].mxu0 %v1620
  %v4669 = vpop.f32.mrb[0].mxu0
  %v4670 = vadd.f32 0.0, %v4669
  %v4671 = vpop.f32.mrb[0].mxu0
  %4672 = vmatprep.mubr.f32.mxu0 0.0
  %4673 = vmatmul.mubr.f32.gmra.mrb[0].mxu0 %v1622
  %v4674 = vpop.f32.mrb[0].mxu0
  %v4675 = vadd.f32 0.0, %v4674
  %v4676 = vpop.f32.mrb[0].mxu0
  %4677 = vmatprep.mubr.f32.mxu0 0.0
  %4678 = vmatmul.mubr.f32.gmra.mrb[0].mxu0 %v1624
  %v4679 = vpop.f32.mrb[0].mxu0
  %v4680 = vadd.f32 0.0, %v4679
  %v4681 = vpop.f32.mrb[0].mxu0
  %4682 = vmatprep.mubr.f32.mxu0 0.0
  %4683 = vmatmul.mubr.f32.gmra.mrb[0].mxu0 %v1626
  %v4684 = vpop.f32.mrb[0].mxu0
  %v4685 = vadd.f32 0.0, %v4684
  %v4686 = vpop.f32.mrb[0].mxu0
  %4687 = vmatprep.mubr.f32.mxu0 0.0
  %4688 = vmatmul.mubr.f32.gmra.mrb[0].mxu0 %v1628
  %v4689 = vpop.f32.mrb[0].mxu0
  %v4690 = vadd.f32 0.0, %v4689
  %v4691 = vpop.f32.mrb[0].mxu0
  %4692 = vmatprep.mubr.f32.mxu0 0.0
  %4693 = vmatmul.mubr.f32.gmra.mrb[0].mxu0 %v1630
  %v4694 = vpop.f32.mrb[0].mxu0
  %v4695 = vadd.f32 0.0, %v4694
  %v4696 = vpop.f32.mrb[0].mxu0
  %4697 = vmatprep.mubr.f32.mxu0 0.0
  %4698 = vmatmul.mubr.f32.gmra.mrb[0].mxu0 %v1632
  %v4699 = vpop.f32.mrb[0].mxu0
  %v4700 = vadd.f32 0.0, %v4699
  %v4701 = vpop.f32.mrb[0].mxu0
  %4702 = vmatprep.mubr.f32.mxu0 0.0
  %4703 = vmatmul.mubr.f32.gmra.mrb[0].mxu0 %v1634
  %v4704 = vpop.f32.mrb[0].mxu0
  %v4705 = vadd.f32 0.0, %v4704
  %v4706 = vpop.f32.mrb[0].mxu0
  %4707 = vmatprep.mubr.f32.mxu0 0.0
  %4708 = vmatmul.mubr.f32.gmra.mrb[0].mxu0 %v1636
  %v4709 = vpop.f32.mrb[0].mxu0
  %v4710 = vadd.f32 0.0, %v4709
  %v4711 = vpop.f32.mrb[0].mxu0
  %4712 = vmatprep.mubr.f32.mxu0 0.0
  %4713 = vmatmul.mubr.f32.gmra.mrb[0].mxu0 %v1638
  %v4714 = vpop.f32.mrb[0].mxu0
  %v4715 = vadd.f32 0.0, %v4714
  %v4716 = vpop.f32.mrb[0].mxu0
  %4717 = vmatprep.mubr.f32.mxu0 0.0
  %4718 = vmatmul.mubr.f32.gmra.mrb[0].mxu0 %v1640
  %v4719 = vpop.f32.mrb[0].mxu0
  %v4720 = vadd.f32 0.0, %v4719
  %v4721 = vpop.f32.mrb[0].mxu0
  %4722 = vmatprep.mubr.f32.mxu0 0.0
  %4723 = vmatmul.mubr.f32.gmra.mrb[0].mxu0 %v1642
  %v4724 = vpop.f32.mrb[0].mxu0
  %v4725 = vadd.f32 0.0, %v4724
  %v4726 = vpop.f32.mrb[0].mxu0
  %4727 = vmatprep.mubr.f32.mxu0 0.0
  %4728 = vmatmul.mubr.f32.gmra.mrb[0].mxu0 %v1644
  %v4729 = vpop.f32.mrb[0].mxu0
  %v4730 = vadd.f32 0.0, %v4729
  %v4731 = vpop.f32.mrb[0].mxu0
  %4732 = vmatprep.mubr.f32.mxu0 0.0
  %4733 = vmatmul.mubr.f32.gmra.mrb[0].mxu0 %v1646
  %v4734 = vpop.f32.mrb[0].mxu0
  %v4735 = vadd.f32 0.0, %v4734
  %v4736 = vpop.f32.mrb[0].mxu0
  %4737 = vmatprep.mubr.f32.mxu0 0.0
  %4738 = vmatmul.mubr.f32.gmra.mrb[0].mxu0 %v1648
  %v4739 = vpop.f32.mrb[0].mxu0
  %v4740 = vadd.f32 0.0, %v4739
  %v4741 = vpop.f32.mrb[0].mxu0
  %4742 = vmatprep.mubr.f32.mxu0 0.0
  %4743 = vmatmul.mubr.f32.gmra.mrb[0].mxu0 %v1650
  %v4744 = vpop.f32.mrb[0].mxu0
  %v4745 = vadd.f32 0.0, %v4744
  %v4746 = vpop.f32.mrb[0].mxu0
  %4747 = vmatprep.mubr.f32.mxu0 0.0
  %4748 = vmatmul.mubr.f32.gmra.mrb[0].mxu0 %v3120
  %v4749 = vpop.f32.mrb[0].mxu0
  %v4750 = vadd.f32 0.0, %v4749
  %v4751 = vpop.f32.mrb[0].mxu0
  %4752 = vmatprep.mubr.f32.mxu0 0.0
  %4753 = vmatmul.mubr.f32.gmra.mrb[0].mxu0 %v3122
  %v4754 = vpop.f32.mrb[0].mxu0
  %v4755 = vadd.f32 0.0, %v4754
  %v4756 = vpop.f32.mrb[0].mxu0
  %4757 = vmatprep.mubr.f32.mxu0 0.0
  %4758 = vmatmul.mubr.f32.gmra.mrb[0].mxu0 %v4532
  %v4759 = vpop.f32.mrb[0].mxu0
  %v4760 = vadd.f32 0.0, %v4759
  %v4761 = vpop.f32.mrb[0].mxu0
  %4762 = vmatprep.mubr.f32.mxu0 0.0
  %4763 = vmatmul.mubr.f32.gmra.mrb[0].mxu0 %v4534
  %v4764 = vpop.f32.mrb[0].mxu0
  %v4765 = vadd.f32 0.0, %v4764
  %v4766 = vpop.f32.mrb[0].mxu0
  %4767 = vmatprep.mubr.f32.mxu0 0.0
  %4768 = vmatmul.mubr.f32.gmra.mrb[0].mxu0 %v1660
  %v4769 = vpop.f32.mrb[0].mxu0
  %v4770 = vadd.f32 0.0, %v4769
  %v4771 = vpop.f32.mrb[0].mxu0
  %4772 = vmatprep.mubr.f32.mxu0 0.0
  %4773 = vmatmul.mubr.f32.gmra.mrb[0].mxu0 %v1662
  %v4774 = vpop.f32.mrb[0].mxu0
  %v4775 = vadd.f32 0.0, %v4774
  %v4776 = vpop.f32.mrb[0].mxu0
  %4777 = vmatprep.mubr.f32.mxu0 0.0
  %4778 = vmatmul.mubr.f32.gmra.mrb[0].mxu0 %v1664
  %v4779 = vpop.f32.mrb[0].mxu0
  %v4780 = vadd.f32 0.0, %v4779
  %v4781 = vpop.f32.mrb[0].mxu0
  %4782 = vmatprep.mubr.f32.mxu0 0.0
  %4783 = vmatmul.mubr.f32.gmra.mrb[0].mxu0 %v1666
  %v4784 = vpop.f32.mrb[0].mxu0
  %v4785 = vadd.f32 0.0, %v4784
  %v4786 = vpop.f32.mrb[0].mxu0
  %4787 = vmatprep.mubr.f32.mxu0 0.0
  %4788 = vmatmul.mubr.f32.gmra.mrb[0].mxu0 %v1668
  %v4789 = vpop.f32.mrb[0].mxu0
  %v4790 = vadd.f32 0.0, %v4789
  %v4791 = vpop.f32.mrb[0].mxu0
  %4792 = vmatprep.mubr.f32.mxu0 0.0
  %4793 = vmatmul.mubr.f32.gmra.mrb[0].mxu0 %v1670
  %v4794 = vpop.f32.mrb[0].mxu0
  %v4795 = vadd.f32 0.0, %v4794
  %v4796 = vpop.f32.mrb[0].mxu0
  %4797 = vmatprep.mubr.f32.mxu0 0.0
  %4798 = vmatmul.mubr.f32.gmra.mrb[0].mxu0 %v1672
  %v4799 = vpop.f32.mrb[0].mxu0
  %v4800 = vadd.f32 0.0, %v4799
  %v4801 = vpop.f32.mrb[0].mxu0
  %4802 = vmatprep.mubr.f32.mxu0 0.0
  %4803 = vmatmul.mubr.f32.gmra.mrb[0].mxu0 %v1674
  %v4804 = vpop.f32.mrb[0].mxu0
  %v4805 = vadd.f32 0.0, %v4804
  %v4806 = vpop.f32.mrb[0].mxu0
  %4807 = vmatprep.mubr.f32.mxu0 0.0
  %4808 = vmatmul.mubr.f32.gmra.mrb[0].mxu0 %v1676
  %v4809 = vpop.f32.mrb[0].mxu0
  %v4810 = vadd.f32 0.0, %v4809
  %v4811 = vpop.f32.mrb[0].mxu0
  %4812 = vmatprep.mubr.f32.mxu0 0.0
  %4813 = vmatmul.mubr.f32.gmra.mrb[0].mxu0 %v1678
  %v4814 = vpop.f32.mrb[0].mxu0
  %v4815 = vadd.f32 0.0, %v4814
  %v4816 = vpop.f32.mrb[0].mxu0
  %4817 = vmatprep.mubr.f32.mxu0 0.0
  %4818 = vmatmul.mubr.f32.gmra.mrb[0].mxu0 %v1680
  %v4819 = vpop.f32.mrb[0].mxu0
  %v4820 = vadd.f32 0.0, %v4819
  %v4821 = vpop.f32.mrb[0].mxu0
  %4822 = vmatprep.mubr.f32.mxu0 0.0
  %4823 = vmatmul.mubr.f32.gmra.mrb[0].mxu0 %v1682
  %v4824 = vpop.f32.mrb[0].mxu0
  %v4825 = vadd.f32 0.0, %v4824
  %v4826 = vpop.f32.mrb[0].mxu0
  %4827 = vmatprep.mubr.f32.mxu0 0.0
  %4828 = vmatmul.mubr.f32.gmra.mrb[0].mxu0 %v1684
  %v4829 = vpop.f32.mrb[0].mxu0
  %v4830 = vadd.f32 0.0, %v4829
  %v4831 = vpop.f32.mrb[0].mxu0
  %4832 = vmatprep.mubr.f32.mxu0 0.0
  %4833 = vmatmul.mubr.f32.gmra.mrb[0].mxu0 %v1686
  %v4834 = vpop.f32.mrb[0].mxu0
  %v4835 = vadd.f32 0.0, %v4834
  %v4836 = vpop.f32.mrb[0].mxu0
  %4837 = vmatprep.mubr.f32.mxu0 0.0
  %4838 = vmatmul.mubr.f32.gmra.mrb[0].mxu0 %v1688
  %v4839 = vpop.f32.mrb[0].mxu0
  %v4840 = vadd.f32 0.0, %v4839
  %v4841 = vpop.f32.mrb[0].mxu0
  %4842 = vmatprep.mubr.f32.mxu0 0.0
  %4843 = vmatmul.mubr.f32.gmra.mrb[0].mxu0 %v1690
  %v4844 = vpop.f32.mrb[0].mxu0
  %v4845 = vadd.f32 0.0, %v4844
  %v4846 = vpop.f32.mrb[0].mxu0
  %4847 = vmatprep.mubr.f32.mxu0 0.0
  %4848 = vmatmul.mubr.f32.gmra.mrb[0].mxu0 %v1692
  %v4849 = vpop.f32.mrb[0].mxu0
  %v4850 = vadd.f32 0.0, %v4849
  %v4851 = vpop.f32.mrb[0].mxu0
  %4852 = vmatprep.mubr.f32.mxu0 0.0
  %4853 = vmatmul.mubr.f32.gmra.mrb[0].mxu0 %v1694
  %v4854 = vpop.f32.mrb[0].mxu0
  %v4855 = vadd.f32 0.0, %v4854
  %v4856 = vpop.f32.mrb[0].mxu0
  %4857 = vmatprep.mubr.f32.mxu0 0.0
  %4858 = vmatmul.mubr.f32.gmra.mrb[0].mxu0 %v1696
  %v4859 = vpop.f32.mrb[0].mxu0
  %v4860 = vadd.f32 0.0, %v4859
  %v4861 = vpop.f32.mrb[0].mxu0
  %4862 = vmatprep.mubr.f32.mxu0 0.0
  %4863 = vmatmul.mubr.f32.gmra.mrb[0].mxu0 %v1698
  %v4864 = vpop.f32.mrb[0].mxu0
  %v4865 = vadd.f32 0.0, %v4864
  %v4866 = vpop.f32.mrb[0].mxu0
  %4867 = vmatprep.mubr.f32.mxu0 0.0
  %4868 = vmatmul.mubr.f32.gmra.mrb[0].mxu0 %v1700
  %v4869 = vpop.f32.mrb[0].mxu0
  %v4870 = vadd.f32 0.0, %v4869
  %v4871 = vpop.f32.mrb[0].mxu0
  %4872 = vmatprep.mubr.f32.mxu0 0.0
  %4873 = vmatmul.mubr.f32.gmra.mrb[0].mxu0 %v1702
  %v4874 = vpop.f32.mrb[0].mxu0
  %v4875 = vadd.f32 0.0, %v4874
  %v4876 = vpop.f32.mrb[0].mxu0
  %4877 = vmatprep.mubr.f32.mxu0 0.0
  %4878 = vmatmul.mubr.f32.gmra.mrb[0].mxu0 %v1704
  %v4879 = vpop.f32.mrb[0].mxu0
  %v4880 = vadd.f32 0.0, %v4879
  %v4881 = vpop.f32.mrb[0].mxu0
  %4882 = vmatprep.mubr.f32.mxu0 0.0
  %4883 = vmatmul.mubr.f32.gmra.mrb[0].mxu0 %v1706
  %v4884 = vpop.f32.mrb[0].mxu0
  %v4885 = vadd.f32 0.0, %v4884
  %v4886 = vpop.f32.mrb[0].mxu0
  %4887 = vmatprep.mubr.f32.mxu0 0.0
  %4888 = vmatmul.mubr.f32.gmra.mrb[0].mxu0 %v1708
  %v4889 = vpop.f32.mrb[0].mxu0
  %v4890 = vadd.f32 0.0, %v4889
  %v4891 = vpop.f32.mrb[0].mxu0
  %4892 = vmatprep.mubr.f32.mxu0 0.0
  %4893 = vmatmul.mubr.f32.gmra.mrb[0].mxu0 %v1710
  %v4894 = vpop.f32.mrb[0].mxu0
  %v4895 = vadd.f32 0.0, %v4894
  %v4896 = vpop.f32.mrb[0].mxu0
  %4897 = vmatprep.mubr.f32.mxu0 0.0
  %4898 = vmatmul.mubr.f32.gmra.mrb[0].mxu0 %v1712
  %v4899 = vpop.f32.mrb[0].mxu0
  %v4900 = vadd.f32 0.0, %v4899
  %v4901 = vpop.f32.mrb[0].mxu0
  %4902 = vmatprep.mubr.f32.mxu0 0.0
  %4903 = vmatmul.mubr.f32.gmra.mrb[0].mxu0 %v1714
  %v4904 = vpop.f32.mrb[0].mxu0
  %v4905 = vadd.f32 0.0, %v4904
  %v4906 = vpop.f32.mrb[0].mxu0
  %4907 = vmatprep.mubr.f32.mxu0 0.0
  %4908 = vmatmul.mubr.f32.gmra.mrb[0].mxu0 %v3124
  %v4909 = vpop.f32.mrb[0].mxu0
  %v4910 = vadd.f32 0.0, %v4909
  %v4911 = vpop.f32.mrb[0].mxu0
  %4912 = vmatprep.mubr.f32.mxu0 0.0
  %4913 = vmatmul.mubr.f32.gmra.mrb[0].mxu0 %v3126
  %v4914 = vpop.f32.mrb[0].mxu0
  %v4915 = vadd.f32 0.0, %v4914
  %v4916 = vpop.f32.mrb[0].mxu0
  %4917 = vmatprep.mubr.f32.mxu0 0.0
  %4918 = vmatmul.mubr.f32.gmra.mrb[0].mxu0 %v4536
  %v4919 = vpop.f32.mrb[0].mxu0
  %v4920 = vadd.f32 0.0, %v4919
  %v4921 = vpop.f32.mrb[0].mxu0
  %4922 = vmatprep.mubr.f32.mxu0 0.0
  %4923 = vmatmul.mubr.f32.gmra.mrb[0].mxu0 %v4538
  %v4924 = vpop.f32.mrb[0].mxu0
  %v4925 = vadd.f32 0.0, %v4924
  %v4926 = vpop.f32.mrb[0].mxu0
  %4927 = vdwg.mxu0
  %v4928 = vadd.f32 %v4456, %v4610
  %v4929 = vadd.f32 %v4457, %v4615
  %v4930 = vadd.f32 %v4458, %v4620
  %v4931 = vadd.f32 %v4459, %v4625
  %v4932 = vadd.f32 %v4460, %v4630
  %v4933 = vadd.f32 %v4461, %v4635
  %v4934 = vadd.f32 %v4462, %v4640
  %v4935 = vadd.f32 %v4463, %v4645
  %v4936 = vadd.f32 %v4464, %v4650
  %v4937 = vadd.f32 %v4465, %v4655
  %v4938 = vadd.f32 %v4466, %v4660
  %v4939 = vadd.f32 %v4467, %v4665
  %v4940 = vadd.f32 %v4468, %v4670
  %v4941 = vadd.f32 %v4469, %v4675
  %v4942 = vadd.f32 %v4470, %v4680
  %v4943 = vadd.f32 %v4471, %v4685
  %v4944 = vadd.f32 %v4472, %v4690
  %v4945 = vadd.f32 %v4473, %v4695
  %v4946 = vadd.f32 %v4474, %v4700
  %v4947 = vadd.f32 %v4475, %v4705
  %v4948 = vadd.f32 %v4476, %v4710
  %v4949 = vadd.f32 %v4477, %v4715
  %v4950 = vadd.f32 %v4478, %v4720
  %v4951 = vadd.f32 %v4479, %v4725
  %v4952 = vadd.f32 %v4480, %v4730
  %v4953 = vadd.f32 %v4481, %v4735
  %v4954 = vadd.f32 %v4482, %v4740
  %v4955 = vadd.f32 %v4483, %v4745
  %v4956 = vadd.f32 %v4484, %v4750
  %v4957 = vadd.f32 %v4485, %v4755
  %v4958 = vadd.f32 %v4486, %v4760
  %v4959 = vadd.f32 %v4487, %v4765
  %v4960 = vadd.f32 %v4488, %v4770
  %v4961 = vadd.f32 %v4489, %v4775
  %v4962 = vadd.f32 %v4490, %v4780
  %v4963 = vadd.f32 %v4491, %v4785
  %v4964 = vadd.f32 %v4492, %v4790
  %v4965 = vadd.f32 %v4493, %v4795
  %v4966 = vadd.f32 %v4494, %v4800
  %v4967 = vadd.f32 %v4495, %v4805
  %v4968 = vadd.f32 %v4496, %v4810
  %v4969 = vadd.f32 %v4497, %v4815
  %v4970 = vadd.f32 %v4498, %v4820
  %v4971 = vadd.f32 %v4499, %v4825
  %v4972 = vadd.f32 %v4500, %v4830
  %v4973 = vadd.f32 %v4501, %v4835
  %v4974 = vadd.f32 %v4502, %v4840
  %v4975 = vadd.f32 %v4503, %v4845
  %v4976 = vadd.f32 %v4504, %v4850
  %v4977 = vadd.f32 %v4505, %v4855
  %v4978 = vadd.f32 %v4506, %v4860
  %v4979 = vadd.f32 %v4507, %v4865
  %v4980 = vadd.f32 %v4508, %v4870
  %v4981 = vadd.f32 %v4509, %v4875
  %v4982 = vadd.f32 %v4510, %v4880
  %v4983 = vadd.f32 %v4511, %v4885
  %v4984 = vadd.f32 %v4512, %v4890
  %v4985 = vadd.f32 %v4513, %v4895
  %v4986 = vadd.f32 %v4514, %v4900
  %v4987 = vadd.f32 %v4515, %v4905
  %v4988 = vadd.f32 %v4516, %v4910
  %v4989 = vadd.f32 %v4517, %v4915
  %v4990 = vadd.f32 %v4518, %v4920
  %v4991 = vadd.f32 %v4519, %v4925
  %v4992 = vld [vmem:[%s2] sm:$0x1]
  %v4994 = vlaneseq
  %v4995 = vshrl.u32 %v4994, 7
  %v4996 = vsub.s32 0, %v4995
  %v4997 = vrot.slane %v4992, %v4996
  %v4999 = vadd.f32 %v4928, %v4997
  %v5000 = vadd.f32 %v4929, %v4997
  %v5001 = vadd.f32 %v4930, %v4997
  %v5002 = vadd.f32 %v4931, %v4997
  %v5003 = vadd.f32 %v4932, %v4997
  %v5004 = vadd.f32 %v4933, %v4997
  %v5005 = vadd.f32 %v4934, %v4997
  %v5006 = vadd.f32 %v4935, %v4997
  %v5007 = vadd.f32 %v4936, %v4997
  %v5008 = vadd.f32 %v4937, %v4997
  %v5009 = vadd.f32 %v4938, %v4997
  %v5010 = vadd.f32 %v4939, %v4997
  %v5011 = vadd.f32 %v4940, %v4997
  %v5012 = vadd.f32 %v4941, %v4997
  %v5013 = vadd.f32 %v4942, %v4997
  %v5014 = vadd.f32 %v4943, %v4997
  %v5015 = vadd.f32 %v4944, %v4997
  %v5016 = vadd.f32 %v4945, %v4997
  %v5017 = vadd.f32 %v4946, %v4997
  %v5018 = vadd.f32 %v4947, %v4997
  %v5019 = vadd.f32 %v4948, %v4997
  %v5020 = vadd.f32 %v4949, %v4997
  %v5021 = vadd.f32 %v4950, %v4997
  %v5022 = vadd.f32 %v4951, %v4997
  %v5023 = vadd.f32 %v4952, %v4997
  %v5024 = vadd.f32 %v4953, %v4997
  %v5025 = vadd.f32 %v4954, %v4997
  %v5026 = vadd.f32 %v4955, %v4997
  %v5027 = vadd.f32 %v4956, %v4997
  %v5028 = vadd.f32 %v4957, %v4997
  %v5029 = vadd.f32 %v4958, %v4997
  %v5030 = vadd.f32 %v4959, %v4997
  %v5031 = vadd.f32 %v4960, %v4997
  %v5032 = vadd.f32 %v4961, %v4997
  %v5033 = vadd.f32 %v4962, %v4997
  %v5034 = vadd.f32 %v4963, %v4997
  %v5035 = vadd.f32 %v4964, %v4997
  %v5036 = vadd.f32 %v4965, %v4997
  %v5037 = vadd.f32 %v4966, %v4997
  %v5038 = vadd.f32 %v4967, %v4997
  %v5039 = vadd.f32 %v4968, %v4997
  %v5040 = vadd.f32 %v4969, %v4997
  %v5041 = vadd.f32 %v4970, %v4997
  %v5042 = vadd.f32 %v4971, %v4997
  %v5043 = vadd.f32 %v4972, %v4997
  %v5044 = vadd.f32 %v4973, %v4997
  %v5045 = vadd.f32 %v4974, %v4997
  %v5046 = vadd.f32 %v4975, %v4997
  %v5047 = vadd.f32 %v4976, %v4997
  %v5048 = vadd.f32 %v4977, %v4997
  %v5049 = vadd.f32 %v4978, %v4997
  %v5050 = vadd.f32 %v4979, %v4997
  %v5051 = vadd.f32 %v4980, %v4997
  %v5052 = vadd.f32 %v4981, %v4997
  %v5053 = vadd.f32 %v4982, %v4997
  %v5054 = vadd.f32 %v4983, %v4997
  %v5055 = vadd.f32 %v4984, %v4997
  %v5056 = vadd.f32 %v4985, %v4997
  %v5057 = vadd.f32 %v4986, %v4997
  %v5058 = vadd.f32 %v4987, %v4997
  %v5059 = vadd.f32 %v4988, %v4997
  %v5060 = vadd.f32 %v4989, %v4997
  %v5061 = vadd.f32 %v4990, %v4997
  %v5062 = vadd.f32 %v4991, %v4997
  %v5063 = vmax.f32 %v4999, 0.0
  %v5064 = vmax.f32 %v5000, 0.0
  %v5065 = vmax.f32 %v5001, 0.0
  %v5066 = vmax.f32 %v5002, 0.0
  %v5067 = vmax.f32 %v5003, 0.0
  %v5068 = vmax.f32 %v5004, 0.0
  %v5069 = vmax.f32 %v5005, 0.0
  %v5070 = vmax.f32 %v5006, 0.0
  %v5071 = vmax.f32 %v5007, 0.0
  %v5072 = vmax.f32 %v5008, 0.0
  %v5073 = vmax.f32 %v5009, 0.0
  %v5074 = vmax.f32 %v5010, 0.0
  %v5075 = vmax.f32 %v5011, 0.0
  %v5076 = vmax.f32 %v5012, 0.0
  %v5077 = vmax.f32 %v5013, 0.0
  %v5078 = vmax.f32 %v5014, 0.0
  %v5079 = vmax.f32 %v5015, 0.0
  %v5080 = vmax.f32 %v5016, 0.0
  %v5081 = vmax.f32 %v5017, 0.0
  %v5082 = vmax.f32 %v5018, 0.0
  %v5083 = vmax.f32 %v5019, 0.0
  %v5084 = vmax.f32 %v5020, 0.0
  %v5085 = vmax.f32 %v5021, 0.0
  %v5086 = vmax.f32 %v5022, 0.0
  %v5087 = vmax.f32 %v5023, 0.0
  %v5088 = vmax.f32 %v5024, 0.0
  %v5089 = vmax.f32 %v5025, 0.0
  %v5090 = vmax.f32 %v5026, 0.0
  %v5091 = vmax.f32 %v5027, 0.0
  %v5092 = vmax.f32 %v5028, 0.0
  %v5093 = vmax.f32 %v5029, 0.0
  %v5094 = vmax.f32 %v5030, 0.0
  %v5095 = vmax.f32 %v5031, 0.0
  %v5096 = vmax.f32 %v5032, 0.0
  %v5097 = vmax.f32 %v5033, 0.0
  %v5098 = vmax.f32 %v5034, 0.0
  %v5099 = vmax.f32 %v5035, 0.0
  %v5100 = vmax.f32 %v5036, 0.0
  %v5101 = vmax.f32 %v5037, 0.0
  %v5102 = vmax.f32 %v5038, 0.0
  %v5103 = vmax.f32 %v5039, 0.0
  %v5104 = vmax.f32 %v5040, 0.0
  %v5105 = vmax.f32 %v5041, 0.0
  %v5106 = vmax.f32 %v5042, 0.0
  %v5107 = vmax.f32 %v5043, 0.0
  %v5108 = vmax.f32 %v5044, 0.0
  %v5109 = vmax.f32 %v5045, 0.0
  %v5110 = vmax.f32 %v5046, 0.0
  %v5111 = vmax.f32 %v5047, 0.0
  %v5112 = vmax.f32 %v5048, 0.0
  %v5113 = vmax.f32 %v5049, 0.0
  %v5114 = vmax.f32 %v5050, 0.0
  %v5115 = vmax.f32 %v5051, 0.0
  %v5116 = vmax.f32 %v5052, 0.0
  %v5117 = vmax.f32 %v5053, 0.0
  %v5118 = vmax.f32 %v5054, 0.0
  %v5119 = vmax.f32 %v5055, 0.0
  %v5120 = vmax.f32 %v5056, 0.0
  %v5121 = vmax.f32 %v5057, 0.0
  %v5122 = vmax.f32 %v5058, 0.0
  %v5123 = vmax.f32 %v5059, 0.0
  %v5124 = vmax.f32 %v5060, 0.0
  %v5125 = vmax.f32 %v5061, 0.0
  %v5126 = vmax.f32 %v5062, 0.0
  %v5127 = vld [vmem:[%s3] sm:$0xff]
  %v5128 = vld [vmem:[%s3 + $0x8] sm:$0xff]
  %v5129 = vld [vmem:[%s3 + $0x10] sm:$0xff]
  %v5130 = vld [vmem:[%s3 + $0x18] sm:$0xff]
  %5131 = vmatprep.subr.mxu0 0.0
  %5132 = vmatpush1.msra.mxu0 %v5063
  %5133 = vmatprep.subr.mxu0 0.0
  %5134 = vmatpush1.msra.mxu0 %v5064
  %5135 = vmatprep.subr.mxu0 0.0
  %5136 = vmatpush1.msra.mxu0 %v5065
  %5137 = vmatprep.subr.mxu0 0.0
  %5138 = vmatpush1.msra.mxu0 %v5066
  %5139 = vmatprep.subr.mxu0 0.0
  %5140 = vmatpush1.msra.mxu0 %v5067
  %5141 = vmatprep.subr.mxu0 0.0
  %5142 = vmatpush1.msra.mxu0 %v5068
  %5143 = vmatprep.subr.mxu0 0.0
  %5144 = vmatpush1.msra.mxu0 %v5069
  %5145 = vmatprep.subr.mxu0 0.0
  %5146 = vmatpush1.msra.mxu0 %v5070
  %5147 = vmatprep.subr.mxu0 0.0
  %5148 = vmatpush1.msra.mxu0 %v5071
  %5149 = vmatprep.subr.mxu0 0.0
  %5150 = vmatpush1.msra.mxu0 %v5072
  %5151 = vmatprep.subr.mxu0 0.0
  %5152 = vmatpush1.msra.mxu0 %v5073
  %5153 = vmatprep.subr.mxu0 0.0
  %5154 = vmatpush1.msra.mxu0 %v5074
  %5155 = vmatprep.subr.mxu0 0.0
  %5156 = vmatpush1.msra.mxu0 %v5075
  %5157 = vmatprep.subr.mxu0 0.0
  %5158 = vmatpush1.msra.mxu0 %v5076
  %5159 = vmatprep.subr.mxu0 0.0
  %5160 = vmatpush1.msra.mxu0 %v5077
  %5161 = vmatprep.subr.mxu0 0.0
  %5162 = vmatpush1.msra.mxu0 %v5078
  %5163 = vmatprep.subr.mxu0 0.0
  %5164 = vmatpush1.msra.mxu0 %v5079
  %5165 = vmatprep.subr.mxu0 0.0
  %5166 = vmatpush1.msra.mxu0 %v5080
  %5167 = vmatprep.subr.mxu0 0.0
  %5168 = vmatpush1.msra.mxu0 %v5081
  %5169 = vmatprep.subr.mxu0 0.0
  %5170 = vmatpush1.msra.mxu0 %v5082
  %5171 = vmatprep.subr.mxu0 0.0
  %5172 = vmatpush1.msra.mxu0 %v5083
  %5173 = vmatprep.subr.mxu0 0.0
  %5174 = vmatpush1.msra.mxu0 %v5084
  %5175 = vmatprep.subr.mxu0 0.0
  %5176 = vmatpush1.msra.mxu0 %v5085
  %5177 = vmatprep.subr.mxu0 0.0
  %5178 = vmatpush1.msra.mxu0 %v5086
  %5179 = vmatprep.subr.mxu0 0.0
  %5180 = vmatpush1.msra.mxu0 %v5087
  %5181 = vmatprep.subr.mxu0 0.0
  %5182 = vmatpush1.msra.mxu0 %v5088
  %5183 = vmatprep.subr.mxu0 0.0
  %5184 = vmatpush1.msra.mxu0 %v5089
  %5185 = vmatprep.subr.mxu0 0.0
  %5186 = vmatpush1.msra.mxu0 %v5090
  %5187 = vmatprep.subr.mxu0 0.0
  %5188 = vmatpush1.msra.mxu0 %v5091
  %5189 = vmatprep.subr.mxu0 0.0
  %5190 = vmatpush1.msra.mxu0 %v5092
  %5191 = vmatprep.subr.mxu0 0.0
  %5192 = vmatpush1.msra.mxu0 %v5093
  %5193 = vmatprep.subr.mxu0 0.0
  %5194 = vmatpush1.msra.mxu0 %v5094
  %5195 = vmatprep.mubr.f32.mxu0 %v5128
  %5196 = vmatmul.mubr.f32.gmra.mrb[0].mxu0 %v5127
  %v5197 = vpop.f32.mrb[0].mxu0
  %v5198 = vadd.f32 0.0, %v5197
  %v5199 = vpop.f32.mrb[0].mxu0
  %5200 = vdwg.mxu0
  %5201 = vmatprep.subr.mxu0 0.0
  %5202 = vmatpush1.msra.mxu0 %v5095
  %5203 = vmatprep.subr.mxu0 0.0
  %5204 = vmatpush1.msra.mxu0 %v5096
  %5205 = vmatprep.subr.mxu0 0.0
  %5206 = vmatpush1.msra.mxu0 %v5097
  %5207 = vmatprep.subr.mxu0 0.0
  %5208 = vmatpush1.msra.mxu0 %v5098
  %5209 = vmatprep.subr.mxu0 0.0
  %5210 = vmatpush1.msra.mxu0 %v5099
  %5211 = vmatprep.subr.mxu0 0.0
  %5212 = vmatpush1.msra.mxu0 %v5100
  %5213 = vmatprep.subr.mxu0 0.0
  %5214 = vmatpush1.msra.mxu0 %v5101
  %5215 = vmatprep.subr.mxu0 0.0
  %5216 = vmatpush1.msra.mxu0 %v5102
  %5217 = vmatprep.subr.mxu0 0.0
  %5218 = vmatpush1.msra.mxu0 %v5103
  %5219 = vmatprep.subr.mxu0 0.0
  %5220 = vmatpush1.msra.mxu0 %v5104
  %5221 = vmatprep.subr.mxu0 0.0
  %5222 = vmatpush1.msra.mxu0 %v5105
  %5223 = vmatprep.subr.mxu0 0.0
  %5224 = vmatpush1.msra.mxu0 %v5106
  %5225 = vmatprep.subr.mxu0 0.0
  %5226 = vmatpush1.msra.mxu0 %v5107
  %5227 = vmatprep.subr.mxu0 0.0
  %5228 = vmatpush1.msra.mxu0 %v5108
  %5229 = vmatprep.subr.mxu0 0.0
  %5230 = vmatpush1.msra.mxu0 %v5109
  %5231 = vmatprep.subr.mxu0 0.0
  %5232 = vmatpush1.msra.mxu0 %v5110
  %5233 = vmatprep.subr.mxu0 0.0
  %5234 = vmatpush1.msra.mxu0 %v5111
  %5235 = vmatprep.subr.mxu0 0.0
  %5236 = vmatpush1.msra.mxu0 %v5112
  %5237 = vmatprep.subr.mxu0 0.0
  %5238 = vmatpush1.msra.mxu0 %v5113
  %5239 = vmatprep.subr.mxu0 0.0
  %5240 = vmatpush1.msra.mxu0 %v5114
  %5241 = vmatprep.subr.mxu0 0.0
  %5242 = vmatpush1.msra.mxu0 %v5115
  %5243 = vmatprep.subr.mxu0 0.0
  %5244 = vmatpush1.msra.mxu0 %v5116
  %5245 = vmatprep.subr.mxu0 0.0
  %5246 = vmatpush1.msra.mxu0 %v5117
  %5247 = vmatprep.subr.mxu0 0.0
  %5248 = vmatpush1.msra.mxu0 %v5118
  %5249 = vmatprep.subr.mxu0 0.0
  %5250 = vmatpush1.msra.mxu0 %v5119
  %5251 = vmatprep.subr.mxu0 0.0
  %5252 = vmatpush1.msra.mxu0 %v5120
  %5253 = vmatprep.subr.mxu0 0.0
  %5254 = vmatpush1.msra.mxu0 %v5121
  %5255 = vmatprep.subr.mxu0 0.0
  %5256 = vmatpush1.msra.mxu0 %v5122
  %5257 = vmatprep.subr.mxu0 0.0
  %5258 = vmatpush1.msra.mxu0 %v5123
  %5259 = vmatprep.subr.mxu0 0.0
  %5260 = vmatpush1.msra.mxu0 %v5124
  %5261 = vmatprep.subr.mxu0 0.0
  %5262 = vmatpush1.msra.mxu0 %v5125
  %5263 = vmatprep.subr.mxu0 0.0
  %5264 = vmatpush1.msra.mxu0 %v5126
  %5265 = vmatprep.mubr.f32.mxu0 %v5130
  %5266 = vmatmul.mubr.f32.gmra.mrb[0].mxu0 %v5129
  %v5267 = vpop.f32.mrb[0].mxu0
  %v5268 = vadd.f32 %v5198, %v5267
  %v5269 = vpop.f32.mrb[0].mxu0
  %5270 = vdwg.mxu0
  %v5271 = vld [vmem:[%s4] sm:$0xff]
  %v5272 = vld [vmem:[%s4 + $0x8] sm:$0xff]
  %v5273 = vld [vmem:[%s4 + $0x10] sm:$0xff]
  %v5274 = vld [vmem:[%s4 + $0x18] sm:$0xff]
  %v5275 = vld [vmem:[%s4 + $0x20] sm:$0xff]
  %v5276 = vld [vmem:[%s4 + $0x28] sm:$0xff]
  %v5277 = vld [vmem:[%s4 + $0x30] sm:$0xff]
  %v5278 = vld [vmem:[%s4 + $0x38] sm:$0xff]
  %v5279 = vld [vmem:[%s4 + $0x40] sm:$0xff]
  %v5280 = vld [vmem:[%s4 + $0x48] sm:$0xff]
  %v5281 = vld [vmem:[%s4 + $0x50] sm:$0xff]
  %v5282 = vld [vmem:[%s4 + $0x58] sm:$0xff]
  %v5283 = vld [vmem:[%s4 + $0x60] sm:$0xff]
  %v5284 = vld [vmem:[%s4 + $0x68] sm:$0xff]
  %v5285 = vld [vmem:[%s4 + $0x70] sm:$0xff]
  %v5286 = vld [vmem:[%s4 + $0x78] sm:$0xff]
  %v5287 = vld [vmem:[%s5] sm:$0x1]
  %v5289 = vlaneseq
  %v5290 = vshrl.u32 %v5289, 7
  %v5291 = vsub.s32 0, %v5290
  %v5292 = vrot.slane %v5287, %v5291
  %5294 = vmatprep.subr.mxu0 0.0
  %5295 = vmatpush1.msra.mxu0 %v5271
  %5296 = vmatprep.subr.mxu0 0.0
  %5297 = vmatpush1.msra.mxu0 %v5272
  %5298 = vmatprep.subr.mxu0 0.0
  %5299 = vmatpush1.msra.mxu0 %v5273
  %5300 = vmatprep.subr.mxu0 0.0
  %5301 = vmatpush1.msra.mxu0 %v5274
  %5302 = vmatprep.subr.mxu0 0.0
  %5303 = vmatpush1.msra.mxu0 %v5275
  %5304 = vmatprep.subr.mxu0 0.0
  %5305 = vmatpush1.msra.mxu0 %v5276
  %5306 = vmatprep.subr.mxu0 0.0
  %5307 = vmatpush1.msra.mxu0 %v5277
  %5308 = vmatprep.subr.mxu0 0.0
  %5309 = vmatpush1.msra.mxu0 %v5278
  %5310 = vmatprep.subr.mxu0 0.0
  %5311 = vmatpush1.msra.mxu0 %v5279
  %5312 = vmatprep.subr.mxu0 0.0
  %5313 = vmatpush1.msra.mxu0 %v5280
  %5314 = vmatprep.subr.mxu0 0.0
  %5315 = vmatpush1.msra.mxu0 %v5281
  %5316 = vmatprep.subr.mxu0 0.0
  %5317 = vmatpush1.msra.mxu0 %v5282
  %5318 = vmatprep.subr.mxu0 0.0
  %5319 = vmatpush1.msra.mxu0 %v5283
  %5320 = vmatprep.subr.mxu0 0.0
  %5321 = vmatpush1.msra.mxu0 %v5284
  %5322 = vmatprep.subr.mxu0 0.0
  %5323 = vmatpush1.msra.mxu0 %v5285
  %5324 = vmatprep.subr.mxu0 0.0
  %5325 = vmatpush1.msra.mxu0 %v5286
  %5326 = vmatprep.subr.mxu0 0.0
  %5327 = vmatpush1.msra.mxu0 0.0
  %5328 = vmatprep.subr.mxu0 0.0
  %5329 = vmatpush1.msra.mxu0 0.0
  %5330 = vmatprep.subr.mxu0 0.0
  %5331 = vmatpush1.msra.mxu0 0.0
  %5332 = vmatprep.subr.mxu0 0.0
  %5333 = vmatpush1.msra.mxu0 0.0
  %5334 = vmatprep.subr.mxu0 0.0
  %5335 = vmatpush1.msra.mxu0 0.0
  %5336 = vmatprep.subr.mxu0 0.0
  %5337 = vmatpush1.msra.mxu0 0.0
  %5338 = vmatprep.subr.mxu0 0.0
  %5339 = vmatpush1.msra.mxu0 0.0
  %5340 = vmatprep.subr.mxu0 0.0
  %5341 = vmatpush1.msra.mxu0 0.0
  %5342 = vmatprep.subr.mxu0 0.0
  %5343 = vmatpush1.msra.mxu0 0.0
  %5344 = vmatprep.subr.mxu0 0.0
  %5345 = vmatpush1.msra.mxu0 0.0
  %5346 = vmatprep.subr.mxu0 0.0
  %5347 = vmatpush1.msra.mxu0 0.0
  %5348 = vmatprep.subr.mxu0 0.0
  %5349 = vmatpush1.msra.mxu0 0.0
  %5350 = vmatprep.subr.mxu0 0.0
  %5351 = vmatpush1.msra.mxu0 0.0
  %5352 = vmatprep.subr.mxu0 0.0
  %5353 = vmatpush1.msra.mxu0 0.0
  %5354 = vmatprep.subr.mxu0 0.0
  %5355 = vmatpush1.msra.mxu0 0.0
  %5356 = vmatprep.subr.mxu0 0.0
  %5357 = vmatpush1.msra.mxu0 0.0
  %5358 = vmatprep.mubr.f32.mxu0 0.0
  %5359 = vmatmul.mubr.f32.gmra.mrb[0].mxu0 %v5268
  %v5360 = vpop.f32.mrb[0].mxu0
  %v5361 = vadd.f32 %v5292, %v5360
  %v5362 = vpop.f32.mrb[0].mxu0
  %5363 = vdwg.mxu0
  %5364 = vst [vmem:[%s6] sm:$0xff] %v5361
  // Predicated region
  $region26: #{forward.1} parent=0 // pred_check
    _
  $region27: #{forward.1} parent=0 // pred_check_branch
    %5366 = sbr.rel (0) target = $region29
  $region28: #{forward.1} parent=0 // pred_region
    _
  $region29: #{forward.1} parent=0 // pred_fallthru
    _
  // Predicated region
  $region30: #{forward.1} parent=0 // pred_check
    _
  $region31: #{forward.1} parent=0 // pred_check_branch
    %5368 = sbr.rel (0) target = $region33
  $region32: #{forward.1} parent=0 // pred_region
    _
  $region33: #{forward.1} parent=0 // pred_fallthru
    _

</llo_original>
